<compile_context>
chip_gen: v7x
topology: tpu7x:2x2x1
jax: 0.10.0
libtpu: 0.0.40
codegen_flags: <defaults>
</compile_context>

<pallas_src>
import numpy as np
import jax
import jax.numpy as jnp
from jax.experimental import pallas as pl
from jax.experimental.pallas import tpu as pltpu

_A = -0.75  # PyTorch bicubic coefficient


def _cubic1(t):
    return ((_A + 2.0) * t - (_A + 3.0)) * t * t + 1.0


def _cubic2(t):
    return ((_A * t - 5.0 * _A) * t + 8.0 * _A) * t - 4.0 * _A


def bicubic_half_matrix(n_in: int) -> np.ndarray:
    """Dense (n_out, n_in) matrix reproducing F.interpolate(scale_factor=0.5,
    mode='bicubic', align_corners=False, a=-0.75, replicate border) along one axis."""
    n_out = n_in // 2
    D = np.zeros((n_out, n_in), dtype=np.float32)
    for o in range(n_out):
        src = (o + 0.5) * (n_in / n_out) - 0.5
        fl = int(np.floor(src))
        t = src - fl
        w = (_cubic2(t + 1.0), _cubic1(t), _cubic1(1.0 - t), _cubic2(2.0 - t))
        for k in range(4):
            idx = min(max(fl - 1 + k, 0), n_in - 1)
            D[o, idx] += float(w[k])
    return D


def _downsample_kernel(x_ref, mbd_ref, w_ref, o_ref, zs_ref):
    # x_ref  : (bb, C, H*W)    NCHW images, spatial flattened (C on sublanes)
    # mbd_ref: (2W, 2Wo)       block-diag width stencil: [x_even | x_odd] -> [even_ds | odd_ds]
    # w_ref  : (Co, C)         weight-normed 1x1-conv weight
    # o_ref  : (bb, Co, Ho*Wo) lane-dense output block
    # zs_ref : (C, Ho*Wo)      VMEM staging of one spatially-downsampled image
    bb, C, HW = x_ref.shape
    W2, Wo2 = mbd_ref.shape
    W, Wo = W2 // 2, Wo2 // 2
    H = HW // W
    Ho = H // 2
    cdt = jnp.dtype(x_ref.dtype)

    # exact 0.5x bicubic: t == 0.5 for every output row -> symmetric taps (w0, w1, w1, w0)
    w0 = float(_cubic2(1.5))   # -0.09375
    w1 = float(_cubic1(0.5))   #  0.59375

    prec = jax.lax.Precision.HIGHEST if cdt == jnp.float32 else None
    mbd = mbd_ref[...]
    wmat = w_ref[...]

    for b in range(bb):
        # ---- width pass (MXU) + height stencil (VPU): one output row per step with a
        #      one-pair lookahead so every input row-pair is matmul'ed exactly once ----
        p = jnp.dot(x_ref[b, :, 0:2 * W], mbd,
                    preferred_element_type=jnp.float32, precision=prec)        # (C, 2Wo)
        pe, po = p[:, :Wo], p[:, Wo:]          # width-downsampled rows 0 and 1
        a = pe                                 # tap at row -1 -> replicate row 0
        for j in range(Ho):
            if j + 1 < Ho:
                pn = jnp.dot(x_ref[b, :, (j + 1) * 2 * W:(j + 2) * 2 * W], mbd,
                             preferred_element_type=jnp.float32, precision=prec)
                pe_n, po_n = pn[:, :Wo], pn[:, Wo:]
                d = pe_n                       # tap at row 2j+2
            else:
                d = po                         # tap at row H -> replicate row H-1
            z = w1 * (pe + po) + w0 * (a + d)  # (C, Wo) f32, symmetric 4-tap stencil
            zs_ref[:, j * Wo:(j + 1) * Wo] = z.astype(cdt)   # C-sublane-dense store
            a = po
            if j + 1 < Ho:
                pe, po = pe_n, po_n

        # ---- weight-normed 1x1 conv: one lane-dense MXU matmul + one dense store ----
        out = jnp.dot(wmat, zs_ref[...],
                      preferred_element_type=jnp.float32, precision=prec)      # (Co, Ho*Wo)
        o_ref[b] = out.astype(o_ref.dtype)


def _vmem_limit_bytes():
    cap = 64 * 1024 * 1024            # conservative fallback (v7x has 64 MiB / TC)
    try:
        info = pltpu.get_tpu_info()
        cap = int(getattr(info, "vmem_capacity_bytes", cap) or cap)
    except Exception:
        pass
    # leave headroom for compiler scratch / double buffers; never ask for >100 MiB
    return int(min(cap * 3 // 4, 100 * 1024 * 1024))


def _pick_batch_block(n, c, h, w, co, itemsize, budget):
    """Fold batch elements per grid step so the HBM tile is big enough to amortize the
    ~0.35us per-step overhead, while staying inside the VMEM budget and keeping >= 4
    grid steps when the batch allows (v7x shards the parallel grid over 2 TCs)."""
    ho, wo = h // 2, w // 2
    s = ho * wo

    def footprint(bb):
        x_blk = bb * c * h * w * itemsize              # double-buffered by the pipeline
        o_blk = bb * co * s * itemsize                 # double-buffered
        zs = c * s * itemsize                          # staging scratch
        consts = (2 * w) * (2 * wo) * itemsize + co * c * itemsize
        live = 8 * c * wo * 4                          # f32 sliding-window temporaries
        return 2 * x_blk + 2 * o_blk + zs + consts + live

    best = 1
    for bb in range(1, n + 1):
        if n % bb:
            continue
        steps = n // bb
        if footprint(bb) > budget:
            break
        if n >= 4 and steps < 4:
            break
        if n >= 2 and steps < 2:
            break
        best = bb
        if bb * c * h * w * itemsize >= (2 << 20):     # ~2 MiB HBM tile per step is enough
            break
    return best


def downsample_forward(x, v, g, *, batch_block=None):
    """x: (N, C, H, W) NCHW.  v: (Co, C, 1, 1), g: (Co, 1, 1, 1) weight-norm params."""
    N, C, H, W = x.shape
    assert H % 2 == 0 and W % 2 == 0, "spatial dims must be even for 0.5x bicubic"
    Co = v.shape[0]
    Ho, Wo = H // 2, W // 2
    S = Ho * Wo
    dt = x.dtype
    itemsize = jnp.dtype(dt).itemsize

    # weight_norm(dim=0): w = g * v / ||v||  (norm over (in, kh, kw) per out-channel)
    vf = v.astype(jnp.float32)
    norm = jnp.sqrt(jnp.sum(jnp.square(vf), axis=(1, 2, 3), keepdims=True))
    weight = (g.astype(jnp.float32) * vf / norm)[:, :, 0, 0].astype(dt)     # (Co, C)

    # block-diagonal width stencil: [x[2j,:] | x[2j+1,:]] (2W) -> [even_ds | odd_ds] (2Wo)
    dw_t = bicubic_half_matrix(W).T                                          # (W, Wo)
    mbd_np = np.zeros((2 * W, 2 * Wo), dtype=np.float32)
    mbd_np[:W, :Wo] = dw_t
    mbd_np[W:, Wo:] = dw_t
    mbd = jnp.asarray(mbd_np, dtype=dt)

    x_flat = x.reshape(N, C, H * W)        # free (contiguous) reshape, no copy

    vmem_limit = _vmem_limit_bytes()
    if batch_block is None:
        batch_block = _pick_batch_block(N, C, H, W, Co, itemsize,
                                        budget=int(vmem_limit * 0.55))
    bb = batch_block
    assert N % bb == 0, "batch_block must divide the batch size"

    flops = N * (2 * Ho * C * (2 * W) * (2 * Wo)   # width-pass matmuls (incl. block-diag zeros)
                 + 6 * C * Ho * Wo                  # height stencil (VPU)
                 + 2 * Co * C * S)                  # 1x1 conv (MXU)
    bytes_accessed = (x.size + N * Co * S + mbd.size + weight.size) * itemsize

    out_flat = pl.pallas_call(
        _downsample_kernel,
        out_shape=jax.ShapeDtypeStruct((N, Co, S), dt),
        grid_spec=pltpu.PrefetchScalarGridSpec(
            num_scalar_prefetch=0,
            grid=(N // bb,),
            in_specs=[
                pl.BlockSpec((bb, C, H * W), lambda n: (n, 0, 0)),
                pl.BlockSpec((2 * W, 2 * Wo), lambda n: (0, 0)),   # grid-invariant
                pl.BlockSpec((Co, C), lambda n: (0, 0)),           # grid-invariant
            ],
            out_specs=pl.BlockSpec((bb, Co, S), lambda n: (n, 0, 0)),
            scratch_shapes=[pltpu.VMEM((C, S), dt)],
        ),
        compiler_params=pltpu.CompilerParams(
            dimension_semantics=("parallel",),
            vmem_limit_bytes=vmem_limit,
        ),
        cost_estimate=pl.CostEstimate(flops=flops, transcendentals=0,
                                      bytes_accessed=bytes_accessed),
    )(x_flat, mbd, weight)

    return out_flat.reshape(N, Co, Ho, Wo)


if __name__ == "__main__":
    key = jax.random.PRNGKey(0)
    kx, kv = jax.random.split(key)

    N, C_IN, C_OUT, H, W = 2, 4, 8, 16, 16
    x = jax.random.normal(kx, (N, C_IN, H, W), dtype=jnp.float32)

    # weight_norm parametrization of Conv2d(ch_in, ch_out, 1, bias=False):
    # v is the direction tensor, g initialized to ||v|| (effective weight == v at init).
    v = 0.1 * jax.random.normal(kv, (C_OUT, C_IN, 1, 1), dtype=jnp.float32)
    g = jnp.sqrt(jnp.sum(v * v, axis=(1, 2, 3), keepdims=True))

    out = downsample_forward(x, v, g)
    jax.block_until_ready(out)

    # pure-JAX reference of the same math (separable 0.5x bicubic + weight-normed 1x1 conv)
    Dh = jnp.asarray(bicubic_half_matrix(H))
    Dw = jnp.asarray(bicubic_half_matrix(W))
    norm = jnp.sqrt(jnp.sum(v * v, axis=(1, 2, 3), keepdims=True))
    weight = (g * v / norm)[:, :, 0, 0]
    x_ds = jnp.einsum("nchw,oh,pw->ncop", x, Dh, Dw, precision="highest")
    ref = jnp.einsum("oc,ncij->noij", weight, x_ds, precision="highest")

    assert out.shape == (N, C_OUT, H // 2, W // 2)
    err = float(jnp.max(jnp.abs(out - ref)))
    assert jnp.allclose(out, ref, atol=2e-4, rtol=2e-4), err

    print("KERNEL_OK")
</pallas_src>

<mosaic_0001>
module attributes {stable_mosaic.version = 11 : i64} {
  func.func @_downsample_kernel(%arg0: i32, %arg1: memref<1x4x256xf32, #tpu.memory_space<vmem>>, %arg2: memref<32x16xf32, #tpu.memory_space<vmem>>, %arg3: memref<8x4xf32, #tpu.memory_space<vmem>>, %arg4: memref<1x8x64xf32, #tpu.memory_space<vmem>>, %arg5: memref<4x64xf32, #tpu.memory_space<vmem>>) attributes {dimension_semantics = [#tpu.dimension_semantics<parallel>], iteration_bounds = array<i64: 2>, scalar_prefetch = 0 : i64, scratch_operands = 1 : i64, tpu.core_type = #tpu.core_type<tc>, window_params = [{transform_indices = @transform_0, window_bounds = array<i64: 1, 4, 256>}, {pipeline_mode = #tpu.pipeline_mode<synchronous>, transform_indices = @transform_1, window_bounds = array<i64: 32, 16>}, {pipeline_mode = #tpu.pipeline_mode<synchronous>, transform_indices = @transform_2, window_bounds = array<i64: 8, 4>}, {transform_indices = @transform_3, window_bounds = array<i64: 1, 8, 64>}]} {
    %c0 = arith.constant 0 : index
    %c0_0 = arith.constant 0 : index
    %0 = vector.load %arg2[%c0, %c0_0] : memref<32x16xf32, #tpu.memory_space<vmem>>, vector<32x16xf32>
    %c0_1 = arith.constant 0 : index
    %c0_2 = arith.constant 0 : index
    %1 = vector.load %arg3[%c0_1, %c0_2] : memref<8x4xf32, #tpu.memory_space<vmem>>, vector<8x4xf32>
    %c0_3 = arith.constant 0 : index
    %c0_4 = arith.constant 0 : index
    %c0_5 = arith.constant 0 : index
    %2 = vector.load %arg1[%c0_3, %c0_4, %c0_5] : memref<1x4x256xf32, #tpu.memory_space<vmem>>, vector<1x4x32xf32>
    %3 = vector.shape_cast %2 : vector<1x4x32xf32> to vector<4x32xf32>
    %cst = arith.constant dense<0.000000e+00> : vector<4x16xf32>
    %4 = tpu.matmul %3, %0, %cst {dimension_numbers = #tpu.dot_dimension_numbers<[1], [0], [0], [1], [0, 0, 1, 1], [], []>, precision = #tpu.contract_precision<fp32>} : vector<4x32xf32>, vector<32x16xf32>, vector<4x16xf32> -> vector<4x16xf32>
    %5 = vector.extract_strided_slice %4 {offsets = [0, 0], sizes = [4, 8], strides = [1, 1]} : vector<4x16xf32> to vector<4x8xf32>
    %6 = vector.extract_strided_slice %4 {offsets = [0, 8], sizes = [4, 8], strides = [1, 1]} : vector<4x16xf32> to vector<4x8xf32>
    %c0_6 = arith.constant 0 : index
    %c0_7 = arith.constant 0 : index
    %c32 = arith.constant 32 : index
    %7 = vector.load %arg1[%c0_6, %c0_7, %c32] : memref<1x4x256xf32, #tpu.memory_space<vmem>>, vector<1x4x32xf32>
    %8 = vector.shape_cast %7 : vector<1x4x32xf32> to vector<4x32xf32>
    %cst_8 = arith.constant dense<0.000000e+00> : vector<4x16xf32>
    %9 = tpu.matmul %8, %0, %cst_8 {dimension_numbers = #tpu.dot_dimension_numbers<[1], [0], [0], [1], [0, 0, 1, 1], [], []>, precision = #tpu.contract_precision<fp32>} : vector<4x32xf32>, vector<32x16xf32>, vector<4x16xf32> -> vector<4x16xf32>
    %10 = vector.extract_strided_slice %9 {offsets = [0, 0], sizes = [4, 8], strides = [1, 1]} : vector<4x16xf32> to vector<4x8xf32>
    %11 = vector.extract_strided_slice %9 {offsets = [0, 8], sizes = [4, 8], strides = [1, 1]} : vector<4x16xf32> to vector<4x8xf32>
    %12 = arith.addf %5, %6 : vector<4x8xf32>
    %cst_9 = arith.constant 5.937500e-01 : f32
    %13 = vector.broadcast %cst_9 : f32 to vector<4x8xf32>
    %14 = arith.mulf %13, %12 : vector<4x8xf32>
    %15 = arith.addf %5, %10 : vector<4x8xf32>
    %cst_10 = arith.constant -9.375000e-02 : f32
    %16 = vector.broadcast %cst_10 : f32 to vector<4x8xf32>
    %17 = arith.mulf %16, %15 : vector<4x8xf32>
    %18 = arith.addf %14, %17 : vector<4x8xf32>
    %c0_11 = arith.constant 0 : index
    %c0_12 = arith.constant 0 : index
    %19 = vector.load %arg5[%c0_11, %c0_12] : memref<4x64xf32, #tpu.memory_space<vmem>>, vector<4x8xf32>
    tpu.vector_store %arg5[%c0_11, %c0_12], %18 {strides = array<i32>} : memref<4x64xf32, #tpu.memory_space<vmem>>, vector<4x8xf32>,
    %c0_13 = arith.constant 0 : index
    %c0_14 = arith.constant 0 : index
    %c64 = arith.constant 64 : index
    %20 = vector.load %arg1[%c0_13, %c0_14, %c64] : memref<1x4x256xf32, #tpu.memory_space<vmem>>, vector<1x4x32xf32>
    %21 = vector.shape_cast %20 : vector<1x4x32xf32> to vector<4x32xf32>
    %cst_15 = arith.constant dense<0.000000e+00> : vector<4x16xf32>
    %22 = tpu.matmul %21, %0, %cst_15 {dimension_numbers = #tpu.dot_dimension_numbers<[1], [0], [0], [1], [0, 0, 1, 1], [], []>, precision = #tpu.contract_precision<fp32>} : vector<4x32xf32>, vector<32x16xf32>, vector<4x16xf32> -> vector<4x16xf32>
    %23 = vector.extract_strided_slice %22 {offsets = [0, 0], sizes = [4, 8], strides = [1, 1]} : vector<4x16xf32> to vector<4x8xf32>
    %24 = vector.extract_strided_slice %22 {offsets = [0, 8], sizes = [4, 8], strides = [1, 1]} : vector<4x16xf32> to vector<4x8xf32>
    %25 = arith.addf %10, %11 : vector<4x8xf32>
    %cst_16 = arith.constant 5.937500e-01 : f32
    %26 = vector.broadcast %cst_16 : f32 to vector<4x8xf32>
    %27 = arith.mulf %26, %25 : vector<4x8xf32>
    %28 = arith.addf %6, %23 : vector<4x8xf32>
    %cst_17 = arith.constant -9.375000e-02 : f32
    %29 = vector.broadcast %cst_17 : f32 to vector<4x8xf32>
    %30 = arith.mulf %29, %28 : vector<4x8xf32>
    %31 = arith.addf %27, %30 : vector<4x8xf32>
    %c0_18 = arith.constant 0 : index
    %c8 = arith.constant 8 : index
    %32 = vector.load %arg5[%c0_18, %c8] : memref<4x64xf32, #tpu.memory_space<vmem>>, vector<4x8xf32>
    tpu.vector_store %arg5[%c0_18, %c8], %31 {strides = array<i32>} : memref<4x64xf32, #tpu.memory_space<vmem>>, vector<4x8xf32>,
    %c0_19 = arith.constant 0 : index
    %c0_20 = arith.constant 0 : index
    %c96 = arith.constant 96 : index
    %33 = vector.load %arg1[%c0_19, %c0_20, %c96] : memref<1x4x256xf32, #tpu.memory_space<vmem>>, vector<1x4x32xf32>
    %34 = vector.shape_cast %33 : vector<1x4x32xf32> to vector<4x32xf32>
    %cst_21 = arith.constant dense<0.000000e+00> : vector<4x16xf32>
    %35 = tpu.matmul %34, %0, %cst_21 {dimension_numbers = #tpu.dot_dimension_numbers<[1], [0], [0], [1], [0, 0, 1, 1], [], []>, precision = #tpu.contract_precision<fp32>} : vector<4x32xf32>, vector<32x16xf32>, vector<4x16xf32> -> vector<4x16xf32>
    %36 = vector.extract_strided_slice %35 {offsets = [0, 0], sizes = [4, 8], strides = [1, 1]} : vector<4x16xf32> to vector<4x8xf32>
    %37 = vector.extract_strided_slice %35 {offsets = [0, 8], sizes = [4, 8], strides = [1, 1]} : vector<4x16xf32> to vector<4x8xf32>
    %38 = arith.addf %23, %24 : vector<4x8xf32>
    %cst_22 = arith.constant 5.937500e-01 : f32
    %39 = vector.broadcast %cst_22 : f32 to vector<4x8xf32>
    %40 = arith.mulf %39, %38 : vector<4x8xf32>
    %41 = arith.addf %11, %36 : vector<4x8xf32>
    %cst_23 = arith.constant -9.375000e-02 : f32
    %42 = vector.broadcast %cst_23 : f32 to vector<4x8xf32>
    %43 = arith.mulf %42, %41 : vector<4x8xf32>
    %44 = arith.addf %40, %43 : vector<4x8xf32>
    %c0_24 = arith.constant 0 : index
    %c16 = arith.constant 16 : index
    %45 = vector.load %arg5[%c0_24, %c16] : memref<4x64xf32, #tpu.memory_space<vmem>>, vector<4x8xf32>
    tpu.vector_store %arg5[%c0_24, %c16], %44 {strides = array<i32>} : memref<4x64xf32, #tpu.memory_space<vmem>>, vector<4x8xf32>,
    %c0_25 = arith.constant 0 : index
    %c0_26 = arith.constant 0 : index
    %c128 = arith.constant 128 : index
    %46 = vector.load %arg1[%c0_25, %c0_26, %c128] : memref<1x4x256xf32, #tpu.memory_space<vmem>>, vector<1x4x32xf32>
    %47 = vector.shape_cast %46 : vector<1x4x32xf32> to vector<4x32xf32>
    %cst_27 = arith.constant dense<0.000000e+00> : vector<4x16xf32>
    %48 = tpu.matmul %47, %0, %cst_27 {dimension_numbers = #tpu.dot_dimension_numbers<[1], [0], [0], [1], [0, 0, 1, 1], [], []>, precision = #tpu.contract_precision<fp32>} : vector<4x32xf32>, vector<32x16xf32>, vector<4x16xf32> -> vector<4x16xf32>
    %49 = vector.extract_strided_slice %48 {offsets = [0, 0], sizes = [4, 8], strides = [1, 1]} : vector<4x16xf32> to vector<4x8xf32>
    %50 = vector.extract_strided_slice %48 {offsets = [0, 8], sizes = [4, 8], strides = [1, 1]} : vector<4x16xf32> to vector<4x8xf32>
    %51 = arith.addf %36, %37 : vector<4x8xf32>
    %cst_28 = arith.constant 5.937500e-01 : f32
    %52 = vector.broadcast %cst_28 : f32 to vector<4x8xf32>
    %53 = arith.mulf %52, %51 : vector<4x8xf32>
    %54 = arith.addf %24, %49 : vector<4x8xf32>
    %cst_29 = arith.constant -9.375000e-02 : f32
    %55 = vector.broadcast %cst_29 : f32 to vector<4x8xf32>
    %56 = arith.mulf %55, %54 : vector<4x8xf32>
    %57 = arith.addf %53, %56 : vector<4x8xf32>
    %c0_30 = arith.constant 0 : index
    %c24 = arith.constant 24 : index
    %58 = vector.load %arg5[%c0_30, %c24] : memref<4x64xf32, #tpu.memory_space<vmem>>, vector<4x8xf32>
    tpu.vector_store %arg5[%c0_30, %c24], %57 {strides = array<i32>} : memref<4x64xf32, #tpu.memory_space<vmem>>, vector<4x8xf32>,
    %c0_31 = arith.constant 0 : index
    %c0_32 = arith.constant 0 : index
    %c160 = arith.constant 160 : index
    %59 = vector.load %arg1[%c0_31, %c0_32, %c160] : memref<1x4x256xf32, #tpu.memory_space<vmem>>, vector<1x4x32xf32>
    %60 = vector.shape_cast %59 : vector<1x4x32xf32> to vector<4x32xf32>
    %cst_33 = arith.constant dense<0.000000e+00> : vector<4x16xf32>
    %61 = tpu.matmul %60, %0, %cst_33 {dimension_numbers = #tpu.dot_dimension_numbers<[1], [0], [0], [1], [0, 0, 1, 1], [], []>, precision = #tpu.contract_precision<fp32>} : vector<4x32xf32>, vector<32x16xf32>, vector<4x16xf32> -> vector<4x16xf32>
    %62 = vector.extract_strided_slice %61 {offsets = [0, 0], sizes = [4, 8], strides = [1, 1]} : vector<4x16xf32> to vector<4x8xf32>
    %63 = vector.extract_strided_slice %61 {offsets = [0, 8], sizes = [4, 8], strides = [1, 1]} : vector<4x16xf32> to vector<4x8xf32>
    %64 = arith.addf %49, %50 : vector<4x8xf32>
    %cst_34 = arith.constant 5.937500e-01 : f32
    %65 = vector.broadcast %cst_34 : f32 to vector<4x8xf32>
    %66 = arith.mulf %65, %64 : vector<4x8xf32>
    %67 = arith.addf %37, %62 : vector<4x8xf32>
    %cst_35 = arith.constant -9.375000e-02 : f32
    %68 = vector.broadcast %cst_35 : f32 to vector<4x8xf32>
    %69 = arith.mulf %68, %67 : vector<4x8xf32>
    %70 = arith.addf %66, %69 : vector<4x8xf32>
    %c0_36 = arith.constant 0 : index
    %c32_37 = arith.constant 32 : index
    %71 = vector.load %arg5[%c0_36, %c32_37] : memref<4x64xf32, #tpu.memory_space<vmem>>, vector<4x8xf32>
    tpu.vector_store %arg5[%c0_36, %c32_37], %70 {strides = array<i32>} : memref<4x64xf32, #tpu.memory_space<vmem>>, vector<4x8xf32>,
    %c0_38 = arith.constant 0 : index
    %c0_39 = arith.constant 0 : index
    %c192 = arith.constant 192 : index
    %72 = vector.load %arg1[%c0_38, %c0_39, %c192] : memref<1x4x256xf32, #tpu.memory_space<vmem>>, vector<1x4x32xf32>
    %73 = vector.shape_cast %72 : vector<1x4x32xf32> to vector<4x32xf32>
    %cst_40 = arith.constant dense<0.000000e+00> : vector<4x16xf32>
    %74 = tpu.matmul %73, %0, %cst_40 {dimension_numbers = #tpu.dot_dimension_numbers<[1], [0], [0], [1], [0, 0, 1, 1], [], []>, precision = #tpu.contract_precision<fp32>} : vector<4x32xf32>, vector<32x16xf32>, vector<4x16xf32> -> vector<4x16xf32>
    %75 = vector.extract_strided_slice %74 {offsets = [0, 0], sizes = [4, 8], strides = [1, 1]} : vector<4x16xf32> to vector<4x8xf32>
    %76 = vector.extract_strided_slice %74 {offsets = [0, 8], sizes = [4, 8], strides = [1, 1]} : vector<4x16xf32> to vector<4x8xf32>
    %77 = arith.addf %62, %63 : vector<4x8xf32>
    %cst_41 = arith.constant 5.937500e-01 : f32
    %78 = vector.broadcast %cst_41 : f32 to vector<4x8xf32>
    %79 = arith.mulf %78, %77 : vector<4x8xf32>
    %80 = arith.addf %50, %75 : vector<4x8xf32>
    %cst_42 = arith.constant -9.375000e-02 : f32
    %81 = vector.broadcast %cst_42 : f32 to vector<4x8xf32>
    %82 = arith.mulf %81, %80 : vector<4x8xf32>
    %83 = arith.addf %79, %82 : vector<4x8xf32>
    %c0_43 = arith.constant 0 : index
    %c40 = arith.constant 40 : index
    %84 = vector.load %arg5[%c0_43, %c40] : memref<4x64xf32, #tpu.memory_space<vmem>>, vector<4x8xf32>
    tpu.vector_store %arg5[%c0_43, %c40], %83 {strides = array<i32>} : memref<4x64xf32, #tpu.memory_space<vmem>>, vector<4x8xf32>,
    %c0_44 = arith.constant 0 : index
    %c0_45 = arith.constant 0 : index
    %c224 = arith.constant 224 : index
    %85 = vector.load %arg1[%c0_44, %c0_45, %c224] : memref<1x4x256xf32, #tpu.memory_space<vmem>>, vector<1x4x32xf32>
    %86 = vector.shape_cast %85 : vector<1x4x32xf32> to vector<4x32xf32>
    %cst_46 = arith.constant dense<0.000000e+00> : vector<4x16xf32>
    %87 = tpu.matmul %86, %0, %cst_46 {dimension_numbers = #tpu.dot_dimension_numbers<[1], [0], [0], [1], [0, 0, 1, 1], [], []>, precision = #tpu.contract_precision<fp32>} : vector<4x32xf32>, vector<32x16xf32>, vector<4x16xf32> -> vector<4x16xf32>
    %88 = vector.extract_strided_slice %87 {offsets = [0, 0], sizes = [4, 8], strides = [1, 1]} : vector<4x16xf32> to vector<4x8xf32>
    %89 = vector.extract_strided_slice %87 {offsets = [0, 8], sizes = [4, 8], strides = [1, 1]} : vector<4x16xf32> to vector<4x8xf32>
    %90 = arith.addf %75, %76 : vector<4x8xf32>
    %cst_47 = arith.constant 5.937500e-01 : f32
    %91 = vector.broadcast %cst_47 : f32 to vector<4x8xf32>
    %92 = arith.mulf %91, %90 : vector<4x8xf32>
    %93 = arith.addf %63, %88 : vector<4x8xf32>
    %cst_48 = arith.constant -9.375000e-02 : f32
    %94 = vector.broadcast %cst_48 : f32 to vector<4x8xf32>
    %95 = arith.mulf %94, %93 : vector<4x8xf32>
    %96 = arith.addf %92, %95 : vector<4x8xf32>
    %c0_49 = arith.constant 0 : index
    %c48 = arith.constant 48 : index
    %97 = vector.load %arg5[%c0_49, %c48] : memref<4x64xf32, #tpu.memory_space<vmem>>, vector<4x8xf32>
    tpu.vector_store %arg5[%c0_49, %c48], %96 {strides = array<i32>} : memref<4x64xf32, #tpu.memory_space<vmem>>, vector<4x8xf32>,
    %98 = arith.addf %88, %89 : vector<4x8xf32>
    %cst_50 = arith.constant 5.937500e-01 : f32
    %99 = vector.broadcast %cst_50 : f32 to vector<4x8xf32>
    %100 = arith.mulf %99, %98 : vector<4x8xf32>
    %101 = arith.addf %76, %89 : vector<4x8xf32>
    %cst_51 = arith.constant -9.375000e-02 : f32
    %102 = vector.broadcast %cst_51 : f32 to vector<4x8xf32>
    %103 = arith.mulf %102, %101 : vector<4x8xf32>
    %104 = arith.addf %100, %103 : vector<4x8xf32>
    %c0_52 = arith.constant 0 : index
    %c56 = arith.constant 56 : index
    %105 = vector.load %arg5[%c0_52, %c56] : memref<4x64xf32, #tpu.memory_space<vmem>>, vector<4x8xf32>
    tpu.vector_store %arg5[%c0_52, %c56], %104 {strides = array<i32>} : memref<4x64xf32, #tpu.memory_space<vmem>>, vector<4x8xf32>,
    %c0_53 = arith.constant 0 : index
    %c0_54 = arith.constant 0 : index
    %106 = vector.load %arg5[%c0_53, %c0_54] : memref<4x64xf32, #tpu.memory_space<vmem>>, vector<4x64xf32>
    %cst_55 = arith.constant dense<0.000000e+00> : vector<8x64xf32>
    %107 = tpu.matmul %1, %106, %cst_55 {dimension_numbers = #tpu.dot_dimension_numbers<[1], [0], [0], [1], [0, 0, 1, 1], [], []>, precision = #tpu.contract_precision<fp32>} : vector<8x4xf32>, vector<4x64xf32>, vector<8x64xf32> -> vector<8x64xf32>
    %c0_56 = arith.constant 0 : index
    %c0_57 = arith.constant 0 : index
    %c0_58 = arith.constant 0 : index
    %108 = vector.load %arg4[%c0_56, %c0_57, %c0_58] : memref<1x8x64xf32, #tpu.memory_space<vmem>>, vector<1x8x64xf32>
    %109 = vector.shape_cast %108 : vector<1x8x64xf32> to vector<8x64xf32>
    %110 = vector.shape_cast %107 : vector<8x64xf32> to vector<1x8x64xf32>
    tpu.vector_store %arg4[%c0_56, %c0_57, %c0_58], %110 {strides = array<i32>} : memref<1x8x64xf32, #tpu.memory_space<vmem>>, vector<1x8x64xf32>,
    return
  }
  func.func @transform_0(%arg0: i32) -> (i32, i32, i32) {
    %c0_i32 = arith.constant 0 : i32
    %c0_i32_0 = arith.constant 0 : i32
    %c0_i32_1 = arith.constant 0 : i32
    return %arg0, %c0_i32, %c0_i32_0 : i32, i32, i32
  }
  func.func @transform_1(%arg0: i32) -> (i32, i32) {
    %c0_i32 = arith.constant 0 : i32
    %c0_i32_0 = arith.constant 0 : i32
    %c0_i32_1 = arith.constant 0 : i32
    return %c0_i32, %c0_i32_0 : i32, i32
  }
  func.func @transform_2(%arg0: i32) -> (i32, i32) {
    %c0_i32 = arith.constant 0 : i32
    %c0_i32_0 = arith.constant 0 : i32
    %c0_i32_1 = arith.constant 0 : i32
    return %c0_i32, %c0_i32_0 : i32, i32
  }
  func.func @transform_3(%arg0: i32) -> (i32, i32, i32) {
    %c0_i32 = arith.constant 0 : i32
    %c0_i32_0 = arith.constant 0 : i32
    %c0_i32_1 = arith.constant 0 : i32
    return %arg0, %c0_i32, %c0_i32_0 : i32, i32, i32
  }
}

</mosaic_0001>

<llo_original>
// kernel: tpu_custom_call.1
$region0: #{tpu_custom_call.1}
  #allocation0 [shape = 'u32[]', space=smem, size = 0x4, offset = 0x4, fixed_abs, tag = 'smem constant byte address 0x4 - core index']
  #allocation1 [shape = 'u32[144,128]{1,0:T(1,128)}', space=vmem, size = 0x12000, scoped, tag = 'internal scratch']
  #allocation2 [shape = 'f32[4,64]{1,0:T(4,128)}', space=vmem, size = 0x800, scoped, tag = 'scratch operand']
  %s0 = inlined_call_operand.vmem [shape: f32[2,4,256], index: 0, kind: input, shape index: {}]
  %s1 = inlined_call_operand.vmem [shape: f32[32,16], index: 1, kind: input, shape index: {}]
  %s2 = inlined_call_operand.vmem [shape: f32[8,4], index: 2, kind: input, shape index: {}]
  %s3 = inlined_call_operand.hbm [shape: f32[2,8,64], index: 3, kind: output, shape index: {}]
  %s4 = sld [smem:[#allocation0]]
  $region45: #{tpu_custom_call.1} parent=0
    _
  %s6 = ssub.s32 1, %s4
  %s7 = scalar_select 0, %s6, %s4
  $region1: #{tpu_custom_call.1} parent=0
    #allocation3 [shape = 'u8[8192]{0}', space=vmem, size = 0x2000, scoped, tag = 'output window, operand 0']
    #allocation4 [shape = 's32[2]{0}', space=sflag, size = 0x8, scoped, tag = 'scoped memory for tpu_custom_call.1']
    %8 = vsyncpa [#allocation4], 0
    %s9 = scalar_lea.sflag [#allocation4], 1
    %10 = vsyncpa %s9, 0
    loop: start=0, step=1, limit=4
    $region2: #{tpu_custom_call.1} parent=1 // loop_pre_header
      _
    $region3: #{tpu_custom_call.1} parent=1 // loop_header
      %s12 = sphi 0, %s16
      %p13 = scmp.ge.s32.totalorder %s12, 4
      %s22 = sphi 0, %s24
      %s25 = sphi 0, %s22
      %s26 = sphi 0, %s25
      %s42 = sphi 0, %s26
      %s46 = sphi 0, %s46
      %s48 = sphi 0, %s46
      %s49 = sphi 0, %s48
      %s63 = sphi 0, %s49
      %s67 = sphi 0, %s67
      %s69 = sphi 0, %s67
      %s70 = sphi 0, %s69
      %s84 = sphi 0, %s70
      %s90 = sphi 0, %s92
      %s93 = sphi 0, %s90
      %s94 = sphi 0, %s93
      %s110 = sphi 0, %s94
    $region4: #{tpu_custom_call.1} parent=1 // loop_header_branch
      %15 = sbr.rel (%p13) target = $region8
    $region5: #{tpu_custom_call.1} parent=1 // loop_body
      %s17 = ssub.s32 %s12, 1
      %s18 = ssub.s32 %s12, 2
      %s19 = sadd.s32 %s12, 1
      %s20 = ssub.s32 %s12, %s19
      %p21 = scmp.eq.s32.totalorder %s20, 0
      %s23 = sadd.s32 %s22, 1
      %s24 = scalar_select %p21, %s22, %s23
      %p27 = pneg %p21
      %p28 = scmp.eq.s32.totalorder %s12, 1
      %p29 = por %p27, %p28
      %p30 = scmp.ne.s32.totalorder %s22, %s25
      %p31 = scmp.eq.s32.totalorder %s12, 0
      %p32 = por %p30, %p31
      %p33 = scmp.ne.s32.totalorder %s22, %s25
      %p34 = scmp.eq.s32.totalorder %s17, 1
      %p35 = por %p33, %p34
      %p36 = scmp.ne.s32.totalorder %s25, %s26
      %p37 = scmp.eq.s32.totalorder %s17, 0
      %p38 = por %p36, %p37
      %p39 = scmp.ne.s32.totalorder %s25, %s26
      %p40 = scmp.eq.s32.totalorder %s18, 1
      %p41 = por %p39, %p40
      %p43 = scmp.ne.s32.totalorder %s26, %s42
      %p44 = scmp.eq.s32.totalorder %s18, 0
      %p45 = por %p43, %p44
      %s47 = sadd.s32 %s46, 1
      %p50 = scmp.eq.s32.totalorder %s12, 1
      %p51 = scmp.ne.s32.totalorder %s46, %s48
      %p52 = scmp.eq.s32.totalorder %s12, 0
      %p53 = por %p51, %p52
      %p54 = scmp.ne.s32.totalorder %s46, %s48
      %p55 = scmp.eq.s32.totalorder %s17, 1
      %p56 = por %p54, %p55
      %p57 = scmp.ne.s32.totalorder %s48, %s49
      %p58 = scmp.eq.s32.totalorder %s17, 0
      %p59 = por %p57, %p58
      %p60 = scmp.ne.s32.totalorder %s48, %s49
      %p61 = scmp.eq.s32.totalorder %s18, 1
      %p62 = por %p60, %p61
      %p64 = scmp.ne.s32.totalorder %s49, %s63
      %p65 = scmp.eq.s32.totalorder %s18, 0
      %p66 = por %p64, %p65
      %s68 = sadd.s32 %s67, 1
      %p71 = scmp.eq.s32.totalorder %s12, 1
      %p72 = scmp.ne.s32.totalorder %s67, %s69
      %p73 = scmp.eq.s32.totalorder %s12, 0
      %p74 = por %p72, %p73
      %p75 = scmp.ne.s32.totalorder %s67, %s69
      %p76 = scmp.eq.s32.totalorder %s17, 1
      %p77 = por %p75, %p76
      %p78 = scmp.ne.s32.totalorder %s69, %s70
      %p79 = scmp.eq.s32.totalorder %s17, 0
      %p80 = por %p78, %p79
      %p81 = scmp.ne.s32.totalorder %s69, %s70
      %p82 = scmp.eq.s32.totalorder %s18, 1
      %p83 = por %p81, %p82
      %p85 = scmp.ne.s32.totalorder %s70, %s84
      %p86 = scmp.eq.s32.totalorder %s18, 0
      %p87 = por %p85, %p86
      %s88 = ssub.s32 %s12, %s19
      %p89 = scmp.eq.s32.totalorder %s88, 0
      %s91 = sadd.s32 %s90, 1
      %s92 = scalar_select %p89, %s90, %s91
      %p95 = pneg %p89
      %p96 = scmp.eq.s32.totalorder %s12, 1
      %p97 = por %p95, %p96
      %p98 = scmp.ne.s32.totalorder %s90, %s93
      %p99 = scmp.eq.s32.totalorder %s12, 0
      %p100 = por %p98, %p99
      %p101 = scmp.ne.s32.totalorder %s90, %s93
      %p102 = scmp.eq.s32.totalorder %s17, 1
      %p103 = por %p101, %p102
      %p104 = scmp.ne.s32.totalorder %s93, %s94
      %p105 = scmp.eq.s32.totalorder %s17, 0
      %p106 = por %p104, %p105
      %p107 = scmp.ne.s32.totalorder %s93, %s94
      %p108 = scmp.eq.s32.totalorder %s18, 1
      %p109 = por %p107, %p108
      %p111 = scmp.ne.s32.totalorder %s94, %s110
      %p112 = scmp.eq.s32.totalorder %s18, 0
      %p113 = por %p111, %p112
      %p114 = scmp.le.s32.totalorder 1, %s12
      %p115 = scmp.lt.s32.totalorder %s12, 3
      %p116 = pnand %p114, %p115
      %p117 = pneg %p116
      // Predicated region
      $region9: #{tpu_custom_call.1} parent=5 // pred_check
        _
      $region10: #{tpu_custom_call.1} parent=5 // pred_check_branch
        %119 = sbr.rel (%p116) target = $region12
      $region11: #{tpu_custom_call.1} parent=5 // pred_region
        %s120 = ssub.s32 %s12, 1
        // Predicated region
        $region13: #{tpu_custom_call.1} parent=11 // pred_check
          %p121 = pneg %p59
        $region14: #{tpu_custom_call.1} parent=11 // pred_check_branch
          %123 = sbr.rel (%p121) target = $region16
        $region15: #{tpu_custom_call.1} parent=11 // pred_region
          _
        $region16: #{tpu_custom_call.1} parent=11 // pred_fallthru
          _
        // Predicated region
        $region17: #{tpu_custom_call.1} parent=11 // pred_check
          %p124 = pneg %p80
        $region18: #{tpu_custom_call.1} parent=11 // pred_check_branch
          %126 = sbr.rel (%p124) target = $region20
        $region19: #{tpu_custom_call.1} parent=11 // pred_region
          _
        $region20: #{tpu_custom_call.1} parent=11 // pred_fallthru
          _
      $region12: #{tpu_custom_call.1} parent=5 // pred_fallthru
        _
      %p127 = scmp.lt.s32.totalorder %s12, 2
      // Predicated region
      $region21: #{tpu_custom_call.1} parent=5 // pred_check
        %p128 = pneg %p127
      $region22: #{tpu_custom_call.1} parent=5 // pred_check_branch
        %130 = sbr.rel (%p128) target = $region24
      $region23: #{tpu_custom_call.1} parent=5 // pred_region
        // Predicated region
        $region25: #{tpu_custom_call.1} parent=23 // pred_check
          %p131 = pneg %p32
        $region26: #{tpu_custom_call.1} parent=23 // pred_check_branch
          %133 = sbr.rel (%p131) target = $region28
        $region27: #{tpu_custom_call.1} parent=23 // pred_region
          %p134 = scmp.lt.s32.totalorder %s12, 1
          %s135 = scalar_select %p134, %s12, 1
          %s136 = smul.addr %s135, 2
          %s137 = smul.addr %s136, 4
          %s138 = scalar_lea.vmem %s0, %s137
        $region28: #{tpu_custom_call.1} parent=23 // pred_fallthru
          _
      $region24: #{tpu_custom_call.1} parent=5 // pred_fallthru
        _
      %p139 = scmp.le.s32.totalorder 1, %s12
      %p140 = scmp.lt.s32.totalorder %s12, 3
      %p141 = pnand %p139, %p140
      %p142 = pneg %p141
      // Predicated region
      $region29: #{tpu_custom_call.1} parent=5 // pred_check
        _
      $region30: #{tpu_custom_call.1} parent=5 // pred_check_branch
        %144 = sbr.rel (%p141) target = $region32
      $region31: #{tpu_custom_call.1} parent=5 // pred_region
        %s145 = ssub.s32 %s12, 1
        %p146 = scmp.lt.s32.totalorder %s17, 1
        %s147 = scalar_select %p146, %s17, 1
        %s148 = smul.addr %s147, 2
        %s149 = smul.addr %s148, 4
        %s150 = scalar_lea.vmem %s0, %s149
        %p151 = pneg %p38
        %p152 = pneg %p35
        %p153 = pneg %p59
        %p154 = pneg %p56
        %p155 = pneg %p80
        %p156 = pneg %p77
        %p157 = pneg %p106
        %p158 = pneg %p103
        %s159 = sand.u32 %s93, 1
        %s160 = scalar_lea.sflag [#allocation4], %s159
        %s161 = sand.u32 %s93, 1
        %s162 = smul.addr %s161, 8
        %s163 = scalar_lea.vmem [#allocation3], %s162
        %p164 = scmp.lt.s32.totalorder %s17, 1
        %s165 = scalar_select %p164, %s17, 1
        %s166 = smul.addr %s165, 2
        %s167 = smul.addr %s166, 4
        %s168 = scalar_lea.vmem %s0, %s167
        %v169 = vld [vmem:[%s1] sm:$0xff]
        %v170 = vld [vmem:[%s1 + $0x8] sm:$0xff]
        %v171 = vld [vmem:[%s1 + $0x10] sm:$0xff]
        %v172 = vld [vmem:[%s1 + $0x18] sm:$0xff]
        %v173 = vld [vmem:[%s2] sm:$0xff]
        %v174 = vld [vmem:[%s168] sm:$0xf]
        %vm175 = vcmask 261120
        %v177 = vsel %vm175, %v174, 0
        %179 = vmatprep.subr.mxu0 0.0
        %v180 = vand.u32 %v169, 4294901760
        %181 = vmatpush1.msra.mxu0 %v180
        %182 = vmatprep.subr.mxu0 0.0
        %v183 = vand.u32 %v170, 4294901760
        %184 = vmatpush1.msra.mxu0 %v183
        %185 = vmatprep.subr.mxu0 0.0
        %v186 = vand.u32 %v171, 4294901760
        %187 = vmatpush1.msra.mxu0 %v186
        %188 = vmatprep.subr.mxu0 0.0
        %v189 = vand.u32 %v172, 4294901760
        %190 = vmatpush1.msra.mxu0 %v189
        %191 = vmatprep.subr.mxu0 0.0
        %192 = vmatpush1.msra.mxu0 0.0
        %193 = vmatprep.subr.mxu0 0.0
        %194 = vmatpush1.msra.mxu0 0.0
        %195 = vmatprep.subr.mxu0 0.0
        %196 = vmatpush1.msra.mxu0 0.0
        %197 = vmatprep.subr.mxu0 0.0
        %198 = vmatpush1.msra.mxu0 0.0
        %199 = vmatprep.subr.mxu0 0.0
        %200 = vmatpush1.msra.mxu0 0.0
        %201 = vmatprep.subr.mxu0 0.0
        %202 = vmatpush1.msra.mxu0 0.0
        %203 = vmatprep.subr.mxu0 0.0
        %204 = vmatpush1.msra.mxu0 0.0
        %205 = vmatprep.subr.mxu0 0.0
        %206 = vmatpush1.msra.mxu0 0.0
        %207 = vmatprep.subr.mxu0 0.0
        %208 = vmatpush1.msra.mxu0 0.0
        %209 = vmatprep.subr.mxu0 0.0
        %210 = vmatpush1.msra.mxu0 0.0
        %211 = vmatprep.subr.mxu0 0.0
        %212 = vmatpush1.msra.mxu0 0.0
        %213 = vmatprep.subr.mxu0 0.0
        %214 = vmatpush1.msra.mxu0 0.0
        %215 = vmatprep.subr.mxu0 0.0
        %216 = vmatpush1.msra.mxu0 0.0
        %217 = vmatprep.subr.mxu0 0.0
        %218 = vmatpush1.msra.mxu0 0.0
        %219 = vmatprep.subr.mxu0 0.0
        %220 = vmatpush1.msra.mxu0 0.0
        %221 = vmatprep.subr.mxu0 0.0
        %222 = vmatpush1.msra.mxu0 0.0
        %223 = vmatprep.subr.mxu0 0.0
        %224 = vmatpush1.msra.mxu0 0.0
        %225 = vmatprep.subr.mxu0 0.0
        %226 = vmatpush1.msra.mxu0 0.0
        %227 = vmatprep.subr.mxu0 0.0
        %228 = vmatpush1.msra.mxu0 0.0
        %229 = vmatprep.subr.mxu0 0.0
        %230 = vmatpush1.msra.mxu0 0.0
        %231 = vmatprep.subr.mxu0 0.0
        %232 = vmatpush1.msra.mxu0 0.0
        %233 = vmatprep.subr.mxu0 0.0
        %234 = vmatpush1.msra.mxu0 0.0
        %235 = vmatprep.subr.mxu0 0.0
        %236 = vmatpush1.msra.mxu0 0.0
        %237 = vmatprep.subr.mxu0 0.0
        %238 = vmatpush1.msra.mxu0 0.0
        %239 = vmatprep.subr.mxu0 0.0
        %240 = vmatpush1.msra.mxu0 0.0
        %241 = vmatprep.subr.mxu0 0.0
        %242 = vmatpush1.msra.mxu0 0.0
        %243 = vmatprep.subr.mxu0 0.0
        %244 = vmatpush1.msra.mxu0 0.0
        %245 = vmatprep.subr.mxu0 0.0
        %246 = vmatpush1.msra.mxu0 0.0
        %247 = vmatprep.mubr.f32.mxu0 0.0
        %v248 = vand.u32 %v177, 4294901760
        %v249 = vsub.f32 %v177, %v248
        %v250 = vand.u32 %v249, 4294901760
        %v251 = vsub.f32 %v249, %v250
        %v252 = vand.u32 %v251, 4294901760
        %253 = vmatmul.mubr.f32.gmra.mrb[0].mxu0 %v252
        %v254 = vpop.f32.mrb[0].mxu0
        %v255 = vadd.f32 0.0, %v254
        %v256 = vpop.f32.mrb[0].mxu0
        %257 = vdwg.mxu0
        %258 = vmatprep.subr.mxu0 0.0
        %v259 = vand.u32 %v169, 4294901760
        %v260 = vsub.f32 %v169, %v259
        %v261 = vand.u32 %v260, 4294901760
        %v262 = vsub.f32 %v260, %v261
        %v263 = vand.u32 %v262, 4294901760
        %264 = vmatpush1.msra.mxu0 %v263
        %265 = vmatprep.subr.mxu0 0.0
        %v266 = vand.u32 %v170, 4294901760
        %v267 = vsub.f32 %v170, %v266
        %v268 = vand.u32 %v267, 4294901760
        %v269 = vsub.f32 %v267, %v268
        %v270 = vand.u32 %v269, 4294901760
        %271 = vmatpush1.msra.mxu0 %v270
        %272 = vmatprep.subr.mxu0 0.0
        %v273 = vand.u32 %v171, 4294901760
        %v274 = vsub.f32 %v171, %v273
        %v275 = vand.u32 %v274, 4294901760
        %v276 = vsub.f32 %v274, %v275
        %v277 = vand.u32 %v276, 4294901760
        %278 = vmatpush1.msra.mxu0 %v277
        %279 = vmatprep.subr.mxu0 0.0
        %v280 = vand.u32 %v172, 4294901760
        %v281 = vsub.f32 %v172, %v280
        %v282 = vand.u32 %v281, 4294901760
        %v283 = vsub.f32 %v281, %v282
        %v284 = vand.u32 %v283, 4294901760
        %285 = vmatpush1.msra.mxu0 %v284
        %286 = vmatprep.subr.mxu0 0.0
        %287 = vmatpush1.msra.mxu0 0.0
        %288 = vmatprep.subr.mxu0 0.0
        %289 = vmatpush1.msra.mxu0 0.0
        %290 = vmatprep.subr.mxu0 0.0
        %291 = vmatpush1.msra.mxu0 0.0
        %292 = vmatprep.subr.mxu0 0.0
        %293 = vmatpush1.msra.mxu0 0.0
        %294 = vmatprep.subr.mxu0 0.0
        %295 = vmatpush1.msra.mxu0 0.0
        %296 = vmatprep.subr.mxu0 0.0
        %297 = vmatpush1.msra.mxu0 0.0
        %298 = vmatprep.subr.mxu0 0.0
        %299 = vmatpush1.msra.mxu0 0.0
        %300 = vmatprep.subr.mxu0 0.0
        %301 = vmatpush1.msra.mxu0 0.0
        %302 = vmatprep.subr.mxu0 0.0
        %303 = vmatpush1.msra.mxu0 0.0
        %304 = vmatprep.subr.mxu0 0.0
        %305 = vmatpush1.msra.mxu0 0.0
        %306 = vmatprep.subr.mxu0 0.0
        %307 = vmatpush1.msra.mxu0 0.0
        %308 = vmatprep.subr.mxu0 0.0
        %309 = vmatpush1.msra.mxu0 0.0
        %310 = vmatprep.subr.mxu0 0.0
        %311 = vmatpush1.msra.mxu0 0.0
        %312 = vmatprep.subr.mxu0 0.0
        %313 = vmatpush1.msra.mxu0 0.0
        %314 = vmatprep.subr.mxu0 0.0
        %315 = vmatpush1.msra.mxu0 0.0
        %316 = vmatprep.subr.mxu0 0.0
        %317 = vmatpush1.msra.mxu0 0.0
        %318 = vmatprep.subr.mxu0 0.0
        %319 = vmatpush1.msra.mxu0 0.0
        %320 = vmatprep.subr.mxu0 0.0
        %321 = vmatpush1.msra.mxu0 0.0
        %322 = vmatprep.subr.mxu0 0.0
        %323 = vmatpush1.msra.mxu0 0.0
        %324 = vmatprep.subr.mxu0 0.0
        %325 = vmatpush1.msra.mxu0 0.0
        %326 = vmatprep.subr.mxu0 0.0
        %327 = vmatpush1.msra.mxu0 0.0
        %328 = vmatprep.subr.mxu0 0.0
        %329 = vmatpush1.msra.mxu0 0.0
        %330 = vmatprep.subr.mxu0 0.0
        %331 = vmatpush1.msra.mxu0 0.0
        %332 = vmatprep.subr.mxu0 0.0
        %333 = vmatpush1.msra.mxu0 0.0
        %334 = vmatprep.subr.mxu0 0.0
        %335 = vmatpush1.msra.mxu0 0.0
        %336 = vmatprep.subr.mxu0 0.0
        %337 = vmatpush1.msra.mxu0 0.0
        %338 = vmatprep.subr.mxu0 0.0
        %339 = vmatpush1.msra.mxu0 0.0
        %340 = vmatprep.subr.mxu0 0.0
        %341 = vmatpush1.msra.mxu0 0.0
        %342 = vmatprep.mubr.f32.mxu0 0.0
        %v343 = vand.u32 %v177, 4294901760
        %344 = vmatmul.mubr.f32.gmra.mrb[0].mxu0 %v343
        %v345 = vpop.f32.mrb[0].mxu0
        %v346 = vadd.f32 %v255, %v345
        %v347 = vpop.f32.mrb[0].mxu0
        %348 = vdwg.mxu0
        %349 = vmatprep.subr.mxu0 0.0
        %v350 = vand.u32 %v169, 4294901760
        %v351 = vsub.f32 %v169, %v350
        %352 = vmatpush1.msra.mxu0 %v351
        %353 = vmatprep.subr.mxu0 0.0
        %v354 = vand.u32 %v170, 4294901760
        %v355 = vsub.f32 %v170, %v354
        %356 = vmatpush1.msra.mxu0 %v355
        %357 = vmatprep.subr.mxu0 0.0
        %v358 = vand.u32 %v171, 4294901760
        %v359 = vsub.f32 %v171, %v358
        %360 = vmatpush1.msra.mxu0 %v359
        %361 = vmatprep.subr.mxu0 0.0
        %v362 = vand.u32 %v172, 4294901760
        %v363 = vsub.f32 %v172, %v362
        %364 = vmatpush1.msra.mxu0 %v363
        %365 = vmatprep.subr.mxu0 0.0
        %366 = vmatpush1.msra.mxu0 0.0
        %367 = vmatprep.subr.mxu0 0.0
        %368 = vmatpush1.msra.mxu0 0.0
        %369 = vmatprep.subr.mxu0 0.0
        %370 = vmatpush1.msra.mxu0 0.0
        %371 = vmatprep.subr.mxu0 0.0
        %372 = vmatpush1.msra.mxu0 0.0
        %373 = vmatprep.subr.mxu0 0.0
        %374 = vmatpush1.msra.mxu0 0.0
        %375 = vmatprep.subr.mxu0 0.0
        %376 = vmatpush1.msra.mxu0 0.0
        %377 = vmatprep.subr.mxu0 0.0
        %378 = vmatpush1.msra.mxu0 0.0
        %379 = vmatprep.subr.mxu0 0.0
        %380 = vmatpush1.msra.mxu0 0.0
        %381 = vmatprep.subr.mxu0 0.0
        %382 = vmatpush1.msra.mxu0 0.0
        %383 = vmatprep.subr.mxu0 0.0
        %384 = vmatpush1.msra.mxu0 0.0
        %385 = vmatprep.subr.mxu0 0.0
        %386 = vmatpush1.msra.mxu0 0.0
        %387 = vmatprep.subr.mxu0 0.0
        %388 = vmatpush1.msra.mxu0 0.0
        %389 = vmatprep.subr.mxu0 0.0
        %390 = vmatpush1.msra.mxu0 0.0
        %391 = vmatprep.subr.mxu0 0.0
        %392 = vmatpush1.msra.mxu0 0.0
        %393 = vmatprep.subr.mxu0 0.0
        %394 = vmatpush1.msra.mxu0 0.0
        %395 = vmatprep.subr.mxu0 0.0
        %396 = vmatpush1.msra.mxu0 0.0
        %397 = vmatprep.subr.mxu0 0.0
        %398 = vmatpush1.msra.mxu0 0.0
        %399 = vmatprep.subr.mxu0 0.0
        %400 = vmatpush1.msra.mxu0 0.0
        %401 = vmatprep.subr.mxu0 0.0
        %402 = vmatpush1.msra.mxu0 0.0
        %403 = vmatprep.subr.mxu0 0.0
        %404 = vmatpush1.msra.mxu0 0.0
        %405 = vmatprep.subr.mxu0 0.0
        %406 = vmatpush1.msra.mxu0 0.0
        %407 = vmatprep.subr.mxu0 0.0
        %408 = vmatpush1.msra.mxu0 0.0
        %409 = vmatprep.subr.mxu0 0.0
        %410 = vmatpush1.msra.mxu0 0.0
        %411 = vmatprep.subr.mxu0 0.0
        %412 = vmatpush1.msra.mxu0 0.0
        %413 = vmatprep.subr.mxu0 0.0
        %414 = vmatpush1.msra.mxu0 0.0
        %415 = vmatprep.subr.mxu0 0.0
        %416 = vmatpush1.msra.mxu0 0.0
        %417 = vmatprep.subr.mxu0 0.0
        %418 = vmatpush1.msra.mxu0 0.0
        %419 = vmatprep.subr.mxu0 0.0
        %420 = vmatpush1.msra.mxu0 0.0
        %421 = vmatprep.mubr.f32.mxu0 0.0
        %v422 = vand.u32 %v177, 4294901760
        %v423 = vsub.f32 %v177, %v422
        %424 = vmatmul.mubr.f32.gmra.mrb[0].mxu0 %v423
        %v425 = vpop.f32.mrb[0].mxu0
        %v426 = vadd.f32 %v346, %v425
        %v427 = vpop.f32.mrb[0].mxu0
        %428 = vdwg.mxu0
        %429 = vmatprep.subr.mxu0 0.0
        %v430 = vand.u32 %v169, 4294901760
        %431 = vmatpush1.msra.mxu0 %v430
        %432 = vmatprep.subr.mxu0 0.0
        %v433 = vand.u32 %v170, 4294901760
        %434 = vmatpush1.msra.mxu0 %v433
        %435 = vmatprep.subr.mxu0 0.0
        %v436 = vand.u32 %v171, 4294901760
        %437 = vmatpush1.msra.mxu0 %v436
        %438 = vmatprep.subr.mxu0 0.0
        %v439 = vand.u32 %v172, 4294901760
        %440 = vmatpush1.msra.mxu0 %v439
        %441 = vmatprep.subr.mxu0 0.0
        %442 = vmatpush1.msra.mxu0 0.0
        %443 = vmatprep.subr.mxu0 0.0
        %444 = vmatpush1.msra.mxu0 0.0
        %445 = vmatprep.subr.mxu0 0.0
        %446 = vmatpush1.msra.mxu0 0.0
        %447 = vmatprep.subr.mxu0 0.0
        %448 = vmatpush1.msra.mxu0 0.0
        %449 = vmatprep.subr.mxu0 0.0
        %450 = vmatpush1.msra.mxu0 0.0
        %451 = vmatprep.subr.mxu0 0.0
        %452 = vmatpush1.msra.mxu0 0.0
        %453 = vmatprep.subr.mxu0 0.0
        %454 = vmatpush1.msra.mxu0 0.0
        %455 = vmatprep.subr.mxu0 0.0
        %456 = vmatpush1.msra.mxu0 0.0
        %457 = vmatprep.subr.mxu0 0.0
        %458 = vmatpush1.msra.mxu0 0.0
        %459 = vmatprep.subr.mxu0 0.0
        %460 = vmatpush1.msra.mxu0 0.0
        %461 = vmatprep.subr.mxu0 0.0
        %462 = vmatpush1.msra.mxu0 0.0
        %463 = vmatprep.subr.mxu0 0.0
        %464 = vmatpush1.msra.mxu0 0.0
        %465 = vmatprep.subr.mxu0 0.0
        %466 = vmatpush1.msra.mxu0 0.0
        %467 = vmatprep.subr.mxu0 0.0
        %468 = vmatpush1.msra.mxu0 0.0
        %469 = vmatprep.subr.mxu0 0.0
        %470 = vmatpush1.msra.mxu0 0.0
        %471 = vmatprep.subr.mxu0 0.0
        %472 = vmatpush1.msra.mxu0 0.0
        %473 = vmatprep.subr.mxu0 0.0
        %474 = vmatpush1.msra.mxu0 0.0
        %475 = vmatprep.subr.mxu0 0.0
        %476 = vmatpush1.msra.mxu0 0.0
        %477 = vmatprep.subr.mxu0 0.0
        %478 = vmatpush1.msra.mxu0 0.0
        %479 = vmatprep.subr.mxu0 0.0
        %480 = vmatpush1.msra.mxu0 0.0
        %481 = vmatprep.subr.mxu0 0.0
        %482 = vmatpush1.msra.mxu0 0.0
        %483 = vmatprep.subr.mxu0 0.0
        %484 = vmatpush1.msra.mxu0 0.0
        %485 = vmatprep.subr.mxu0 0.0
        %486 = vmatpush1.msra.mxu0 0.0
        %487 = vmatprep.subr.mxu0 0.0
        %488 = vmatpush1.msra.mxu0 0.0
        %489 = vmatprep.subr.mxu0 0.0
        %490 = vmatpush1.msra.mxu0 0.0
        %491 = vmatprep.subr.mxu0 0.0
        %492 = vmatpush1.msra.mxu0 0.0
        %493 = vmatprep.subr.mxu0 0.0
        %494 = vmatpush1.msra.mxu0 0.0
        %495 = vmatprep.subr.mxu0 0.0
        %496 = vmatpush1.msra.mxu0 0.0
        %497 = vmatprep.mubr.f32.mxu0 0.0
        %v498 = vand.u32 %v177, 4294901760
        %v499 = vsub.f32 %v177, %v498
        %v500 = vand.u32 %v499, 4294901760
        %501 = vmatmul.mubr.f32.gmra.mrb[0].mxu0 %v500
        %v502 = vpop.f32.mrb[0].mxu0
        %v503 = vadd.f32 %v426, %v502
        %v504 = vpop.f32.mrb[0].mxu0
        %505 = vdwg.mxu0
        %506 = vmatprep.subr.mxu0 0.0
        %v507 = vand.u32 %v169, 4294901760
        %v508 = vsub.f32 %v169, %v507
        %v509 = vand.u32 %v508, 4294901760
        %510 = vmatpush1.msra.mxu0 %v509
        %511 = vmatprep.subr.mxu0 0.0
        %v512 = vand.u32 %v170, 4294901760
        %v513 = vsub.f32 %v170, %v512
        %v514 = vand.u32 %v513, 4294901760
        %515 = vmatpush1.msra.mxu0 %v514
        %516 = vmatprep.subr.mxu0 0.0
        %v517 = vand.u32 %v171, 4294901760
        %v518 = vsub.f32 %v171, %v517
        %v519 = vand.u32 %v518, 4294901760
        %520 = vmatpush1.msra.mxu0 %v519
        %521 = vmatprep.subr.mxu0 0.0
        %v522 = vand.u32 %v172, 4294901760
        %v523 = vsub.f32 %v172, %v522
        %v524 = vand.u32 %v523, 4294901760
        %525 = vmatpush1.msra.mxu0 %v524
        %526 = vmatprep.subr.mxu0 0.0
        %527 = vmatpush1.msra.mxu0 0.0
        %528 = vmatprep.subr.mxu0 0.0
        %529 = vmatpush1.msra.mxu0 0.0
        %530 = vmatprep.subr.mxu0 0.0
        %531 = vmatpush1.msra.mxu0 0.0
        %532 = vmatprep.subr.mxu0 0.0
        %533 = vmatpush1.msra.mxu0 0.0
        %534 = vmatprep.subr.mxu0 0.0
        %535 = vmatpush1.msra.mxu0 0.0
        %536 = vmatprep.subr.mxu0 0.0
        %537 = vmatpush1.msra.mxu0 0.0
        %538 = vmatprep.subr.mxu0 0.0
        %539 = vmatpush1.msra.mxu0 0.0
        %540 = vmatprep.subr.mxu0 0.0
        %541 = vmatpush1.msra.mxu0 0.0
        %542 = vmatprep.subr.mxu0 0.0
        %543 = vmatpush1.msra.mxu0 0.0
        %544 = vmatprep.subr.mxu0 0.0
        %545 = vmatpush1.msra.mxu0 0.0
        %546 = vmatprep.subr.mxu0 0.0
        %547 = vmatpush1.msra.mxu0 0.0
        %548 = vmatprep.subr.mxu0 0.0
        %549 = vmatpush1.msra.mxu0 0.0
        %550 = vmatprep.subr.mxu0 0.0
        %551 = vmatpush1.msra.mxu0 0.0
        %552 = vmatprep.subr.mxu0 0.0
        %553 = vmatpush1.msra.mxu0 0.0
        %554 = vmatprep.subr.mxu0 0.0
        %555 = vmatpush1.msra.mxu0 0.0
        %556 = vmatprep.subr.mxu0 0.0
        %557 = vmatpush1.msra.mxu0 0.0
        %558 = vmatprep.subr.mxu0 0.0
        %559 = vmatpush1.msra.mxu0 0.0
        %560 = vmatprep.subr.mxu0 0.0
        %561 = vmatpush1.msra.mxu0 0.0
        %562 = vmatprep.subr.mxu0 0.0
        %563 = vmatpush1.msra.mxu0 0.0
        %564 = vmatprep.subr.mxu0 0.0
        %565 = vmatpush1.msra.mxu0 0.0
        %566 = vmatprep.subr.mxu0 0.0
        %567 = vmatpush1.msra.mxu0 0.0
        %568 = vmatprep.subr.mxu0 0.0
        %569 = vmatpush1.msra.mxu0 0.0
        %570 = vmatprep.subr.mxu0 0.0
        %571 = vmatpush1.msra.mxu0 0.0
        %572 = vmatprep.subr.mxu0 0.0
        %573 = vmatpush1.msra.mxu0 0.0
        %574 = vmatprep.subr.mxu0 0.0
        %575 = vmatpush1.msra.mxu0 0.0
        %576 = vmatprep.subr.mxu0 0.0
        %577 = vmatpush1.msra.mxu0 0.0
        %578 = vmatprep.subr.mxu0 0.0
        %579 = vmatpush1.msra.mxu0 0.0
        %580 = vmatprep.subr.mxu0 0.0
        %581 = vmatpush1.msra.mxu0 0.0
        %582 = vmatprep.mubr.f32.mxu0 0.0
        %v583 = vand.u32 %v177, 4294901760
        %584 = vmatmul.mubr.f32.gmra.mrb[0].mxu0 %v583
        %v585 = vpop.f32.mrb[0].mxu0
        %v586 = vadd.f32 %v503, %v585
        %v587 = vpop.f32.mrb[0].mxu0
        %588 = vdwg.mxu0
        %589 = vmatprep.subr.mxu0 0.0
        %v590 = vand.u32 %v169, 4294901760
        %591 = vmatpush1.msra.mxu0 %v590
        %592 = vmatprep.subr.mxu0 0.0
        %v593 = vand.u32 %v170, 4294901760
        %594 = vmatpush1.msra.mxu0 %v593
        %595 = vmatprep.subr.mxu0 0.0
        %v596 = vand.u32 %v171, 4294901760
        %597 = vmatpush1.msra.mxu0 %v596
        %598 = vmatprep.subr.mxu0 0.0
        %v599 = vand.u32 %v172, 4294901760
        %600 = vmatpush1.msra.mxu0 %v599
        %601 = vmatprep.subr.mxu0 0.0
        %602 = vmatpush1.msra.mxu0 0.0
        %603 = vmatprep.subr.mxu0 0.0
        %604 = vmatpush1.msra.mxu0 0.0
        %605 = vmatprep.subr.mxu0 0.0
        %606 = vmatpush1.msra.mxu0 0.0
        %607 = vmatprep.subr.mxu0 0.0
        %608 = vmatpush1.msra.mxu0 0.0
        %609 = vmatprep.subr.mxu0 0.0
        %610 = vmatpush1.msra.mxu0 0.0
        %611 = vmatprep.subr.mxu0 0.0
        %612 = vmatpush1.msra.mxu0 0.0
        %613 = vmatprep.subr.mxu0 0.0
        %614 = vmatpush1.msra.mxu0 0.0
        %615 = vmatprep.subr.mxu0 0.0
        %616 = vmatpush1.msra.mxu0 0.0
        %617 = vmatprep.subr.mxu0 0.0
        %618 = vmatpush1.msra.mxu0 0.0
        %619 = vmatprep.subr.mxu0 0.0
        %620 = vmatpush1.msra.mxu0 0.0
        %621 = vmatprep.subr.mxu0 0.0
        %622 = vmatpush1.msra.mxu0 0.0
        %623 = vmatprep.subr.mxu0 0.0
        %624 = vmatpush1.msra.mxu0 0.0
        %625 = vmatprep.subr.mxu0 0.0
        %626 = vmatpush1.msra.mxu0 0.0
        %627 = vmatprep.subr.mxu0 0.0
        %628 = vmatpush1.msra.mxu0 0.0
        %629 = vmatprep.subr.mxu0 0.0
        %630 = vmatpush1.msra.mxu0 0.0
        %631 = vmatprep.subr.mxu0 0.0
        %632 = vmatpush1.msra.mxu0 0.0
        %633 = vmatprep.subr.mxu0 0.0
        %634 = vmatpush1.msra.mxu0 0.0
        %635 = vmatprep.subr.mxu0 0.0
        %636 = vmatpush1.msra.mxu0 0.0
        %637 = vmatprep.subr.mxu0 0.0
        %638 = vmatpush1.msra.mxu0 0.0
        %639 = vmatprep.subr.mxu0 0.0
        %640 = vmatpush1.msra.mxu0 0.0
        %641 = vmatprep.subr.mxu0 0.0
        %642 = vmatpush1.msra.mxu0 0.0
        %643 = vmatprep.subr.mxu0 0.0
        %644 = vmatpush1.msra.mxu0 0.0
        %645 = vmatprep.subr.mxu0 0.0
        %646 = vmatpush1.msra.mxu0 0.0
        %647 = vmatprep.subr.mxu0 0.0
        %648 = vmatpush1.msra.mxu0 0.0
        %649 = vmatprep.subr.mxu0 0.0
        %650 = vmatpush1.msra.mxu0 0.0
        %651 = vmatprep.subr.mxu0 0.0
        %652 = vmatpush1.msra.mxu0 0.0
        %653 = vmatprep.subr.mxu0 0.0
        %654 = vmatpush1.msra.mxu0 0.0
        %655 = vmatprep.subr.mxu0 0.0
        %656 = vmatpush1.msra.mxu0 0.0
        %657 = vmatprep.mubr.f32.mxu0 0.0
        %v658 = vand.u32 %v177, 4294901760
        %659 = vmatmul.mubr.f32.gmra.mrb[0].mxu0 %v658
        %v660 = vpop.f32.mrb[0].mxu0
        %v661 = vadd.f32 %v586, %v660
        %v662 = vpop.f32.mrb[0].mxu0
        %663 = vdwg.mxu0
        %664 = vrot.lane.b32.xlu0 %v174, 96
        %v665 = vpop.permute.xlu0 %664
        %v666 = vsel %vm175, %v665, 0
        %668 = vmatprep.subr.mxu0 0.0
        %v669 = vand.u32 %v169, 4294901760
        %670 = vmatpush1.msra.mxu0 %v669
        %671 = vmatprep.subr.mxu0 0.0
        %v672 = vand.u32 %v170, 4294901760
        %673 = vmatpush1.msra.mxu0 %v672
        %674 = vmatprep.subr.mxu0 0.0
        %v675 = vand.u32 %v171, 4294901760
        %676 = vmatpush1.msra.mxu0 %v675
        %677 = vmatprep.subr.mxu0 0.0
        %v678 = vand.u32 %v172, 4294901760
        %679 = vmatpush1.msra.mxu0 %v678
        %680 = vmatprep.subr.mxu0 0.0
        %681 = vmatpush1.msra.mxu0 0.0
        %682 = vmatprep.subr.mxu0 0.0
        %683 = vmatpush1.msra.mxu0 0.0
        %684 = vmatprep.subr.mxu0 0.0
        %685 = vmatpush1.msra.mxu0 0.0
        %686 = vmatprep.subr.mxu0 0.0
        %687 = vmatpush1.msra.mxu0 0.0
        %688 = vmatprep.subr.mxu0 0.0
        %689 = vmatpush1.msra.mxu0 0.0
        %690 = vmatprep.subr.mxu0 0.0
        %691 = vmatpush1.msra.mxu0 0.0
        %692 = vmatprep.subr.mxu0 0.0
        %693 = vmatpush1.msra.mxu0 0.0
        %694 = vmatprep.subr.mxu0 0.0
        %695 = vmatpush1.msra.mxu0 0.0
        %696 = vmatprep.subr.mxu0 0.0
        %697 = vmatpush1.msra.mxu0 0.0
        %698 = vmatprep.subr.mxu0 0.0
        %699 = vmatpush1.msra.mxu0 0.0
        %700 = vmatprep.subr.mxu0 0.0
        %701 = vmatpush1.msra.mxu0 0.0
        %702 = vmatprep.subr.mxu0 0.0
        %703 = vmatpush1.msra.mxu0 0.0
        %704 = vmatprep.subr.mxu0 0.0
        %705 = vmatpush1.msra.mxu0 0.0
        %706 = vmatprep.subr.mxu0 0.0
        %707 = vmatpush1.msra.mxu0 0.0
        %708 = vmatprep.subr.mxu0 0.0
        %709 = vmatpush1.msra.mxu0 0.0
        %710 = vmatprep.subr.mxu0 0.0
        %711 = vmatpush1.msra.mxu0 0.0
        %712 = vmatprep.subr.mxu0 0.0
        %713 = vmatpush1.msra.mxu0 0.0
        %714 = vmatprep.subr.mxu0 0.0
        %715 = vmatpush1.msra.mxu0 0.0
        %716 = vmatprep.subr.mxu0 0.0
        %717 = vmatpush1.msra.mxu0 0.0
        %718 = vmatprep.subr.mxu0 0.0
        %719 = vmatpush1.msra.mxu0 0.0
        %720 = vmatprep.subr.mxu0 0.0
        %721 = vmatpush1.msra.mxu0 0.0
        %722 = vmatprep.subr.mxu0 0.0
        %723 = vmatpush1.msra.mxu0 0.0
        %724 = vmatprep.subr.mxu0 0.0
        %725 = vmatpush1.msra.mxu0 0.0
        %726 = vmatprep.subr.mxu0 0.0
        %727 = vmatpush1.msra.mxu0 0.0
        %728 = vmatprep.subr.mxu0 0.0
        %729 = vmatpush1.msra.mxu0 0.0
        %730 = vmatprep.subr.mxu0 0.0
        %731 = vmatpush1.msra.mxu0 0.0
        %732 = vmatprep.subr.mxu0 0.0
        %733 = vmatpush1.msra.mxu0 0.0
        %734 = vmatprep.subr.mxu0 0.0
        %735 = vmatpush1.msra.mxu0 0.0
        %736 = vmatprep.mubr.f32.mxu0 0.0
        %v737 = vand.u32 %v666, 4294901760
        %v738 = vsub.f32 %v666, %v737
        %v739 = vand.u32 %v738, 4294901760
        %v740 = vsub.f32 %v738, %v739
        %v741 = vand.u32 %v740, 4294901760
        %742 = vmatmul.mubr.f32.gmra.mrb[0].mxu0 %v741
        %v743 = vpop.f32.mrb[0].mxu0
        %v744 = vadd.f32 0.0, %v743
        %v745 = vpop.f32.mrb[0].mxu0
        %746 = vdwg.mxu0
        %747 = vmatprep.subr.mxu0 0.0
        %v748 = vand.u32 %v169, 4294901760
        %v749 = vsub.f32 %v169, %v748
        %v750 = vand.u32 %v749, 4294901760
        %v751 = vsub.f32 %v749, %v750
        %v752 = vand.u32 %v751, 4294901760
        %753 = vmatpush1.msra.mxu0 %v752
        %754 = vmatprep.subr.mxu0 0.0
        %v755 = vand.u32 %v170, 4294901760
        %v756 = vsub.f32 %v170, %v755
        %v757 = vand.u32 %v756, 4294901760
        %v758 = vsub.f32 %v756, %v757
        %v759 = vand.u32 %v758, 4294901760
        %760 = vmatpush1.msra.mxu0 %v759
        %761 = vmatprep.subr.mxu0 0.0
        %v762 = vand.u32 %v171, 4294901760
        %v763 = vsub.f32 %v171, %v762
        %v764 = vand.u32 %v763, 4294901760
        %v765 = vsub.f32 %v763, %v764
        %v766 = vand.u32 %v765, 4294901760
        %767 = vmatpush1.msra.mxu0 %v766
        %768 = vmatprep.subr.mxu0 0.0
        %v769 = vand.u32 %v172, 4294901760
        %v770 = vsub.f32 %v172, %v769
        %v771 = vand.u32 %v770, 4294901760
        %v772 = vsub.f32 %v770, %v771
        %v773 = vand.u32 %v772, 4294901760
        %774 = vmatpush1.msra.mxu0 %v773
        %775 = vmatprep.subr.mxu0 0.0
        %776 = vmatpush1.msra.mxu0 0.0
        %777 = vmatprep.subr.mxu0 0.0
        %778 = vmatpush1.msra.mxu0 0.0
        %779 = vmatprep.subr.mxu0 0.0
        %780 = vmatpush1.msra.mxu0 0.0
        %781 = vmatprep.subr.mxu0 0.0
        %782 = vmatpush1.msra.mxu0 0.0
        %783 = vmatprep.subr.mxu0 0.0
        %784 = vmatpush1.msra.mxu0 0.0
        %785 = vmatprep.subr.mxu0 0.0
        %786 = vmatpush1.msra.mxu0 0.0
        %787 = vmatprep.subr.mxu0 0.0
        %788 = vmatpush1.msra.mxu0 0.0
        %789 = vmatprep.subr.mxu0 0.0
        %790 = vmatpush1.msra.mxu0 0.0
        %791 = vmatprep.subr.mxu0 0.0
        %792 = vmatpush1.msra.mxu0 0.0
        %793 = vmatprep.subr.mxu0 0.0
        %794 = vmatpush1.msra.mxu0 0.0
        %795 = vmatprep.subr.mxu0 0.0
        %796 = vmatpush1.msra.mxu0 0.0
        %797 = vmatprep.subr.mxu0 0.0
        %798 = vmatpush1.msra.mxu0 0.0
        %799 = vmatprep.subr.mxu0 0.0
        %800 = vmatpush1.msra.mxu0 0.0
        %801 = vmatprep.subr.mxu0 0.0
        %802 = vmatpush1.msra.mxu0 0.0
        %803 = vmatprep.subr.mxu0 0.0
        %804 = vmatpush1.msra.mxu0 0.0
        %805 = vmatprep.subr.mxu0 0.0
        %806 = vmatpush1.msra.mxu0 0.0
        %807 = vmatprep.subr.mxu0 0.0
        %808 = vmatpush1.msra.mxu0 0.0
        %809 = vmatprep.subr.mxu0 0.0
        %810 = vmatpush1.msra.mxu0 0.0
        %811 = vmatprep.subr.mxu0 0.0
        %812 = vmatpush1.msra.mxu0 0.0
        %813 = vmatprep.subr.mxu0 0.0
        %814 = vmatpush1.msra.mxu0 0.0
        %815 = vmatprep.subr.mxu0 0.0
        %816 = vmatpush1.msra.mxu0 0.0
        %817 = vmatprep.subr.mxu0 0.0
        %818 = vmatpush1.msra.mxu0 0.0
        %819 = vmatprep.subr.mxu0 0.0
        %820 = vmatpush1.msra.mxu0 0.0
        %821 = vmatprep.subr.mxu0 0.0
        %822 = vmatpush1.msra.mxu0 0.0
        %823 = vmatprep.subr.mxu0 0.0
        %824 = vmatpush1.msra.mxu0 0.0
        %825 = vmatprep.subr.mxu0 0.0
        %826 = vmatpush1.msra.mxu0 0.0
        %827 = vmatprep.subr.mxu0 0.0
        %828 = vmatpush1.msra.mxu0 0.0
        %829 = vmatprep.subr.mxu0 0.0
        %830 = vmatpush1.msra.mxu0 0.0
        %831 = vmatprep.mubr.f32.mxu0 0.0
        %v832 = vand.u32 %v666, 4294901760
        %833 = vmatmul.mubr.f32.gmra.mrb[0].mxu0 %v832
        %v834 = vpop.f32.mrb[0].mxu0
        %v835 = vadd.f32 %v744, %v834
        %v836 = vpop.f32.mrb[0].mxu0
        %837 = vdwg.mxu0
        %838 = vmatprep.subr.mxu0 0.0
        %v839 = vand.u32 %v169, 4294901760
        %v840 = vsub.f32 %v169, %v839
        %841 = vmatpush1.msra.mxu0 %v840
        %842 = vmatprep.subr.mxu0 0.0
        %v843 = vand.u32 %v170, 4294901760
        %v844 = vsub.f32 %v170, %v843
        %845 = vmatpush1.msra.mxu0 %v844
        %846 = vmatprep.subr.mxu0 0.0
        %v847 = vand.u32 %v171, 4294901760
        %v848 = vsub.f32 %v171, %v847
        %849 = vmatpush1.msra.mxu0 %v848
        %850 = vmatprep.subr.mxu0 0.0
        %v851 = vand.u32 %v172, 4294901760
        %v852 = vsub.f32 %v172, %v851
        %853 = vmatpush1.msra.mxu0 %v852
        %854 = vmatprep.subr.mxu0 0.0
        %855 = vmatpush1.msra.mxu0 0.0
        %856 = vmatprep.subr.mxu0 0.0
        %857 = vmatpush1.msra.mxu0 0.0
        %858 = vmatprep.subr.mxu0 0.0
        %859 = vmatpush1.msra.mxu0 0.0
        %860 = vmatprep.subr.mxu0 0.0
        %861 = vmatpush1.msra.mxu0 0.0
        %862 = vmatprep.subr.mxu0 0.0
        %863 = vmatpush1.msra.mxu0 0.0
        %864 = vmatprep.subr.mxu0 0.0
        %865 = vmatpush1.msra.mxu0 0.0
        %866 = vmatprep.subr.mxu0 0.0
        %867 = vmatpush1.msra.mxu0 0.0
        %868 = vmatprep.subr.mxu0 0.0
        %869 = vmatpush1.msra.mxu0 0.0
        %870 = vmatprep.subr.mxu0 0.0
        %871 = vmatpush1.msra.mxu0 0.0
        %872 = vmatprep.subr.mxu0 0.0
        %873 = vmatpush1.msra.mxu0 0.0
        %874 = vmatprep.subr.mxu0 0.0
        %875 = vmatpush1.msra.mxu0 0.0
        %876 = vmatprep.subr.mxu0 0.0
        %877 = vmatpush1.msra.mxu0 0.0
        %878 = vmatprep.subr.mxu0 0.0
        %879 = vmatpush1.msra.mxu0 0.0
        %880 = vmatprep.subr.mxu0 0.0
        %881 = vmatpush1.msra.mxu0 0.0
        %882 = vmatprep.subr.mxu0 0.0
        %883 = vmatpush1.msra.mxu0 0.0
        %884 = vmatprep.subr.mxu0 0.0
        %885 = vmatpush1.msra.mxu0 0.0
        %886 = vmatprep.subr.mxu0 0.0
        %887 = vmatpush1.msra.mxu0 0.0
        %888 = vmatprep.subr.mxu0 0.0
        %889 = vmatpush1.msra.mxu0 0.0
        %890 = vmatprep.subr.mxu0 0.0
        %891 = vmatpush1.msra.mxu0 0.0
        %892 = vmatprep.subr.mxu0 0.0
        %893 = vmatpush1.msra.mxu0 0.0
        %894 = vmatprep.subr.mxu0 0.0
        %895 = vmatpush1.msra.mxu0 0.0
        %896 = vmatprep.subr.mxu0 0.0
        %897 = vmatpush1.msra.mxu0 0.0
        %898 = vmatprep.subr.mxu0 0.0
        %899 = vmatpush1.msra.mxu0 0.0
        %900 = vmatprep.subr.mxu0 0.0
        %901 = vmatpush1.msra.mxu0 0.0
        %902 = vmatprep.subr.mxu0 0.0
        %903 = vmatpush1.msra.mxu0 0.0
        %904 = vmatprep.subr.mxu0 0.0
        %905 = vmatpush1.msra.mxu0 0.0
        %906 = vmatprep.subr.mxu0 0.0
        %907 = vmatpush1.msra.mxu0 0.0
        %908 = vmatprep.subr.mxu0 0.0
        %909 = vmatpush1.msra.mxu0 0.0
        %910 = vmatprep.mubr.f32.mxu0 0.0
        %v911 = vand.u32 %v666, 4294901760
        %v912 = vsub.f32 %v666, %v911
        %913 = vmatmul.mubr.f32.gmra.mrb[0].mxu0 %v912
        %v914 = vpop.f32.mrb[0].mxu0
        %v915 = vadd.f32 %v835, %v914
        %v916 = vpop.f32.mrb[0].mxu0
        %917 = vdwg.mxu0
        %918 = vmatprep.subr.mxu0 0.0
        %v919 = vand.u32 %v169, 4294901760
        %920 = vmatpush1.msra.mxu0 %v919
        %921 = vmatprep.subr.mxu0 0.0
        %v922 = vand.u32 %v170, 4294901760
        %923 = vmatpush1.msra.mxu0 %v922
        %924 = vmatprep.subr.mxu0 0.0
        %v925 = vand.u32 %v171, 4294901760
        %926 = vmatpush1.msra.mxu0 %v925
        %927 = vmatprep.subr.mxu0 0.0
        %v928 = vand.u32 %v172, 4294901760
        %929 = vmatpush1.msra.mxu0 %v928
        %930 = vmatprep.subr.mxu0 0.0
        %931 = vmatpush1.msra.mxu0 0.0
        %932 = vmatprep.subr.mxu0 0.0
        %933 = vmatpush1.msra.mxu0 0.0
        %934 = vmatprep.subr.mxu0 0.0
        %935 = vmatpush1.msra.mxu0 0.0
        %936 = vmatprep.subr.mxu0 0.0
        %937 = vmatpush1.msra.mxu0 0.0
        %938 = vmatprep.subr.mxu0 0.0
        %939 = vmatpush1.msra.mxu0 0.0
        %940 = vmatprep.subr.mxu0 0.0
        %941 = vmatpush1.msra.mxu0 0.0
        %942 = vmatprep.subr.mxu0 0.0
        %943 = vmatpush1.msra.mxu0 0.0
        %944 = vmatprep.subr.mxu0 0.0
        %945 = vmatpush1.msra.mxu0 0.0
        %946 = vmatprep.subr.mxu0 0.0
        %947 = vmatpush1.msra.mxu0 0.0
        %948 = vmatprep.subr.mxu0 0.0
        %949 = vmatpush1.msra.mxu0 0.0
        %950 = vmatprep.subr.mxu0 0.0
        %951 = vmatpush1.msra.mxu0 0.0
        %952 = vmatprep.subr.mxu0 0.0
        %953 = vmatpush1.msra.mxu0 0.0
        %954 = vmatprep.subr.mxu0 0.0
        %955 = vmatpush1.msra.mxu0 0.0
        %956 = vmatprep.subr.mxu0 0.0
        %957 = vmatpush1.msra.mxu0 0.0
        %958 = vmatprep.subr.mxu0 0.0
        %959 = vmatpush1.msra.mxu0 0.0
        %960 = vmatprep.subr.mxu0 0.0
        %961 = vmatpush1.msra.mxu0 0.0
        %962 = vmatprep.subr.mxu0 0.0
        %963 = vmatpush1.msra.mxu0 0.0
        %964 = vmatprep.subr.mxu0 0.0
        %965 = vmatpush1.msra.mxu0 0.0
        %966 = vmatprep.subr.mxu0 0.0
        %967 = vmatpush1.msra.mxu0 0.0
        %968 = vmatprep.subr.mxu0 0.0
        %969 = vmatpush1.msra.mxu0 0.0
        %970 = vmatprep.subr.mxu0 0.0
        %971 = vmatpush1.msra.mxu0 0.0
        %972 = vmatprep.subr.mxu0 0.0
        %973 = vmatpush1.msra.mxu0 0.0
        %974 = vmatprep.subr.mxu0 0.0
        %975 = vmatpush1.msra.mxu0 0.0
        %976 = vmatprep.subr.mxu0 0.0
        %977 = vmatpush1.msra.mxu0 0.0
        %978 = vmatprep.subr.mxu0 0.0
        %979 = vmatpush1.msra.mxu0 0.0
        %980 = vmatprep.subr.mxu0 0.0
        %981 = vmatpush1.msra.mxu0 0.0
        %982 = vmatprep.subr.mxu0 0.0
        %983 = vmatpush1.msra.mxu0 0.0
        %984 = vmatprep.subr.mxu0 0.0
        %985 = vmatpush1.msra.mxu0 0.0
        %986 = vmatprep.mubr.f32.mxu0 0.0
        %v987 = vand.u32 %v666, 4294901760
        %v988 = vsub.f32 %v666, %v987
        %v989 = vand.u32 %v988, 4294901760
        %990 = vmatmul.mubr.f32.gmra.mrb[0].mxu0 %v989
        %v991 = vpop.f32.mrb[0].mxu0
        %v992 = vadd.f32 %v915, %v991
        %v993 = vpop.f32.mrb[0].mxu0
        %994 = vdwg.mxu0
        %995 = vmatprep.subr.mxu0 0.0
        %v996 = vand.u32 %v169, 4294901760
        %v997 = vsub.f32 %v169, %v996
        %v998 = vand.u32 %v997, 4294901760
        %999 = vmatpush1.msra.mxu0 %v998
        %1000 = vmatprep.subr.mxu0 0.0
        %v1001 = vand.u32 %v170, 4294901760
        %v1002 = vsub.f32 %v170, %v1001
        %v1003 = vand.u32 %v1002, 4294901760
        %1004 = vmatpush1.msra.mxu0 %v1003
        %1005 = vmatprep.subr.mxu0 0.0
        %v1006 = vand.u32 %v171, 4294901760
        %v1007 = vsub.f32 %v171, %v1006
        %v1008 = vand.u32 %v1007, 4294901760
        %1009 = vmatpush1.msra.mxu0 %v1008
        %1010 = vmatprep.subr.mxu0 0.0
        %v1011 = vand.u32 %v172, 4294901760
        %v1012 = vsub.f32 %v172, %v1011
        %v1013 = vand.u32 %v1012, 4294901760
        %1014 = vmatpush1.msra.mxu0 %v1013
        %1015 = vmatprep.subr.mxu0 0.0
        %1016 = vmatpush1.msra.mxu0 0.0
        %1017 = vmatprep.subr.mxu0 0.0
        %1018 = vmatpush1.msra.mxu0 0.0
        %1019 = vmatprep.subr.mxu0 0.0
        %1020 = vmatpush1.msra.mxu0 0.0
        %1021 = vmatprep.subr.mxu0 0.0
        %1022 = vmatpush1.msra.mxu0 0.0
        %1023 = vmatprep.subr.mxu0 0.0
        %1024 = vmatpush1.msra.mxu0 0.0
        %1025 = vmatprep.subr.mxu0 0.0
        %1026 = vmatpush1.msra.mxu0 0.0
        %1027 = vmatprep.subr.mxu0 0.0
        %1028 = vmatpush1.msra.mxu0 0.0
        %1029 = vmatprep.subr.mxu0 0.0
        %1030 = vmatpush1.msra.mxu0 0.0
        %1031 = vmatprep.subr.mxu0 0.0
        %1032 = vmatpush1.msra.mxu0 0.0
        %1033 = vmatprep.subr.mxu0 0.0
        %1034 = vmatpush1.msra.mxu0 0.0
        %1035 = vmatprep.subr.mxu0 0.0
        %1036 = vmatpush1.msra.mxu0 0.0
        %1037 = vmatprep.subr.mxu0 0.0
        %1038 = vmatpush1.msra.mxu0 0.0
        %1039 = vmatprep.subr.mxu0 0.0
        %1040 = vmatpush1.msra.mxu0 0.0
        %1041 = vmatprep.subr.mxu0 0.0
        %1042 = vmatpush1.msra.mxu0 0.0
        %1043 = vmatprep.subr.mxu0 0.0
        %1044 = vmatpush1.msra.mxu0 0.0
        %1045 = vmatprep.subr.mxu0 0.0
        %1046 = vmatpush1.msra.mxu0 0.0
        %1047 = vmatprep.subr.mxu0 0.0
        %1048 = vmatpush1.msra.mxu0 0.0
        %1049 = vmatprep.subr.mxu0 0.0
        %1050 = vmatpush1.msra.mxu0 0.0
        %1051 = vmatprep.subr.mxu0 0.0
        %1052 = vmatpush1.msra.mxu0 0.0
        %1053 = vmatprep.subr.mxu0 0.0
        %1054 = vmatpush1.msra.mxu0 0.0
        %1055 = vmatprep.subr.mxu0 0.0
        %1056 = vmatpush1.msra.mxu0 0.0
        %1057 = vmatprep.subr.mxu0 0.0
        %1058 = vmatpush1.msra.mxu0 0.0
        %1059 = vmatprep.subr.mxu0 0.0
        %1060 = vmatpush1.msra.mxu0 0.0
        %1061 = vmatprep.subr.mxu0 0.0
        %1062 = vmatpush1.msra.mxu0 0.0
        %1063 = vmatprep.subr.mxu0 0.0
        %1064 = vmatpush1.msra.mxu0 0.0
        %1065 = vmatprep.subr.mxu0 0.0
        %1066 = vmatpush1.msra.mxu0 0.0
        %1067 = vmatprep.subr.mxu0 0.0
        %1068 = vmatpush1.msra.mxu0 0.0
        %1069 = vmatprep.subr.mxu0 0.0
        %1070 = vmatpush1.msra.mxu0 0.0
        %1071 = vmatprep.mubr.f32.mxu0 0.0
        %v1072 = vand.u32 %v666, 4294901760
        %1073 = vmatmul.mubr.f32.gmra.mrb[0].mxu0 %v1072
        %v1074 = vpop.f32.mrb[0].mxu0
        %v1075 = vadd.f32 %v992, %v1074
        %v1076 = vpop.f32.mrb[0].mxu0
        %1077 = vdwg.mxu0
        %1078 = vmatprep.subr.mxu0 0.0
        %v1079 = vand.u32 %v169, 4294901760
        %1080 = vmatpush1.msra.mxu0 %v1079
        %1081 = vmatprep.subr.mxu0 0.0
        %v1082 = vand.u32 %v170, 4294901760
        %1083 = vmatpush1.msra.mxu0 %v1082
        %1084 = vmatprep.subr.mxu0 0.0
        %v1085 = vand.u32 %v171, 4294901760
        %1086 = vmatpush1.msra.mxu0 %v1085
        %1087 = vmatprep.subr.mxu0 0.0
        %v1088 = vand.u32 %v172, 4294901760
        %1089 = vmatpush1.msra.mxu0 %v1088
        %1090 = vmatprep.subr.mxu0 0.0
        %1091 = vmatpush1.msra.mxu0 0.0
        %1092 = vmatprep.subr.mxu0 0.0
        %1093 = vmatpush1.msra.mxu0 0.0
        %1094 = vmatprep.subr.mxu0 0.0
        %1095 = vmatpush1.msra.mxu0 0.0
        %1096 = vmatprep.subr.mxu0 0.0
        %1097 = vmatpush1.msra.mxu0 0.0
        %1098 = vmatprep.subr.mxu0 0.0
        %1099 = vmatpush1.msra.mxu0 0.0
        %1100 = vmatprep.subr.mxu0 0.0
        %1101 = vmatpush1.msra.mxu0 0.0
        %1102 = vmatprep.subr.mxu0 0.0
        %1103 = vmatpush1.msra.mxu0 0.0
        %1104 = vmatprep.subr.mxu0 0.0
        %1105 = vmatpush1.msra.mxu0 0.0
        %1106 = vmatprep.subr.mxu0 0.0
        %1107 = vmatpush1.msra.mxu0 0.0
        %1108 = vmatprep.subr.mxu0 0.0
        %1109 = vmatpush1.msra.mxu0 0.0
        %1110 = vmatprep.subr.mxu0 0.0
        %1111 = vmatpush1.msra.mxu0 0.0
        %1112 = vmatprep.subr.mxu0 0.0
        %1113 = vmatpush1.msra.mxu0 0.0
        %1114 = vmatprep.subr.mxu0 0.0
        %1115 = vmatpush1.msra.mxu0 0.0
        %1116 = vmatprep.subr.mxu0 0.0
        %1117 = vmatpush1.msra.mxu0 0.0
        %1118 = vmatprep.subr.mxu0 0.0
        %1119 = vmatpush1.msra.mxu0 0.0
        %1120 = vmatprep.subr.mxu0 0.0
        %1121 = vmatpush1.msra.mxu0 0.0
        %1122 = vmatprep.subr.mxu0 0.0
        %1123 = vmatpush1.msra.mxu0 0.0
        %1124 = vmatprep.subr.mxu0 0.0
        %1125 = vmatpush1.msra.mxu0 0.0
        %1126 = vmatprep.subr.mxu0 0.0
        %1127 = vmatpush1.msra.mxu0 0.0
        %1128 = vmatprep.subr.mxu0 0.0
        %1129 = vmatpush1.msra.mxu0 0.0
        %1130 = vmatprep.subr.mxu0 0.0
        %1131 = vmatpush1.msra.mxu0 0.0
        %1132 = vmatprep.subr.mxu0 0.0
        %1133 = vmatpush1.msra.mxu0 0.0
        %1134 = vmatprep.subr.mxu0 0.0
        %1135 = vmatpush1.msra.mxu0 0.0
        %1136 = vmatprep.subr.mxu0 0.0
        %1137 = vmatpush1.msra.mxu0 0.0
        %1138 = vmatprep.subr.mxu0 0.0
        %1139 = vmatpush1.msra.mxu0 0.0
        %1140 = vmatprep.subr.mxu0 0.0
        %1141 = vmatpush1.msra.mxu0 0.0
        %1142 = vmatprep.subr.mxu0 0.0
        %1143 = vmatpush1.msra.mxu0 0.0
        %1144 = vmatprep.subr.mxu0 0.0
        %1145 = vmatpush1.msra.mxu0 0.0
        %1146 = vmatprep.mubr.f32.mxu0 0.0
        %v1147 = vand.u32 %v666, 4294901760
        %1148 = vmatmul.mubr.f32.gmra.mrb[0].mxu0 %v1147
        %v1149 = vpop.f32.mrb[0].mxu0
        %v1150 = vadd.f32 %v1075, %v1149
        %v1151 = vpop.f32.mrb[0].mxu0
        %1152 = vdwg.mxu0
        %1154 = vrot.lane.b32.xlu0 %v661, 120
        %v1155 = vpop.permute.xlu0 %1154
        %v1157 = vadd.f32 %v661, %v1155
        %v1158 = vmul.f32 %v1157, 0.59375
        %v1159 = vadd.f32 %v661, %v1150
        %v1160 = vmul.f32 %v1159, -0.09375
        %v1161 = vadd.f32 %v1158, %v1160
        %vm1162 = vcmask 60416
        %1163 = vst.msk [vmem:[#allocation2] sm:$0xf] %vm1162, %v1161
        %v1164 = vld [vmem:[%s168] sm:$0xf]
        %1166 = vrot.lane.b32.xlu0 %v1164, 64
        %v1167 = vpop.permute.xlu0 %1166
        %v1168 = vsel %vm175, %v1167, 0
        %1170 = vmatprep.subr.mxu0 0.0
        %v1171 = vand.u32 %v169, 4294901760
        %1172 = vmatpush1.msra.mxu0 %v1171
        %1173 = vmatprep.subr.mxu0 0.0
        %v1174 = vand.u32 %v170, 4294901760
        %1175 = vmatpush1.msra.mxu0 %v1174
        %1176 = vmatprep.subr.mxu0 0.0
        %v1177 = vand.u32 %v171, 4294901760
        %1178 = vmatpush1.msra.mxu0 %v1177
        %1179 = vmatprep.subr.mxu0 0.0
        %v1180 = vand.u32 %v172, 4294901760
        %1181 = vmatpush1.msra.mxu0 %v1180
        %1182 = vmatprep.subr.mxu0 0.0
        %1183 = vmatpush1.msra.mxu0 0.0
        %1184 = vmatprep.subr.mxu0 0.0
        %1185 = vmatpush1.msra.mxu0 0.0
        %1186 = vmatprep.subr.mxu0 0.0
        %1187 = vmatpush1.msra.mxu0 0.0
        %1188 = vmatprep.subr.mxu0 0.0
        %1189 = vmatpush1.msra.mxu0 0.0
        %1190 = vmatprep.subr.mxu0 0.0
        %1191 = vmatpush1.msra.mxu0 0.0
        %1192 = vmatprep.subr.mxu0 0.0
        %1193 = vmatpush1.msra.mxu0 0.0
        %1194 = vmatprep.subr.mxu0 0.0
        %1195 = vmatpush1.msra.mxu0 0.0
        %1196 = vmatprep.subr.mxu0 0.0
        %1197 = vmatpush1.msra.mxu0 0.0
        %1198 = vmatprep.subr.mxu0 0.0
        %1199 = vmatpush1.msra.mxu0 0.0
        %1200 = vmatprep.subr.mxu0 0.0
        %1201 = vmatpush1.msra.mxu0 0.0
        %1202 = vmatprep.subr.mxu0 0.0
        %1203 = vmatpush1.msra.mxu0 0.0
        %1204 = vmatprep.subr.mxu0 0.0
        %1205 = vmatpush1.msra.mxu0 0.0
        %1206 = vmatprep.subr.mxu0 0.0
        %1207 = vmatpush1.msra.mxu0 0.0
        %1208 = vmatprep.subr.mxu0 0.0
        %1209 = vmatpush1.msra.mxu0 0.0
        %1210 = vmatprep.subr.mxu0 0.0
        %1211 = vmatpush1.msra.mxu0 0.0
        %1212 = vmatprep.subr.mxu0 0.0
        %1213 = vmatpush1.msra.mxu0 0.0
        %1214 = vmatprep.subr.mxu0 0.0
        %1215 = vmatpush1.msra.mxu0 0.0
        %1216 = vmatprep.subr.mxu0 0.0
        %1217 = vmatpush1.msra.mxu0 0.0
        %1218 = vmatprep.subr.mxu0 0.0
        %1219 = vmatpush1.msra.mxu0 0.0
        %1220 = vmatprep.subr.mxu0 0.0
        %1221 = vmatpush1.msra.mxu0 0.0
        %1222 = vmatprep.subr.mxu0 0.0
        %1223 = vmatpush1.msra.mxu0 0.0
        %1224 = vmatprep.subr.mxu0 0.0
        %1225 = vmatpush1.msra.mxu0 0.0
        %1226 = vmatprep.subr.mxu0 0.0
        %1227 = vmatpush1.msra.mxu0 0.0
        %1228 = vmatprep.subr.mxu0 0.0
        %1229 = vmatpush1.msra.mxu0 0.0
        %1230 = vmatprep.subr.mxu0 0.0
        %1231 = vmatpush1.msra.mxu0 0.0
        %1232 = vmatprep.subr.mxu0 0.0
        %1233 = vmatpush1.msra.mxu0 0.0
        %1234 = vmatprep.subr.mxu0 0.0
        %1235 = vmatpush1.msra.mxu0 0.0
        %1236 = vmatprep.subr.mxu0 0.0
        %1237 = vmatpush1.msra.mxu0 0.0
        %1238 = vmatprep.mubr.f32.mxu0 0.0
        %v1239 = vand.u32 %v1168, 4294901760
        %v1240 = vsub.f32 %v1168, %v1239
        %v1241 = vand.u32 %v1240, 4294901760
        %v1242 = vsub.f32 %v1240, %v1241
        %v1243 = vand.u32 %v1242, 4294901760
        %1244 = vmatmul.mubr.f32.gmra.mrb[0].mxu0 %v1243
        %v1245 = vpop.f32.mrb[0].mxu0
        %v1246 = vadd.f32 0.0, %v1245
        %v1247 = vpop.f32.mrb[0].mxu0
        %1248 = vdwg.mxu0
        %1249 = vmatprep.subr.mxu0 0.0
        %v1250 = vand.u32 %v169, 4294901760
        %v1251 = vsub.f32 %v169, %v1250
        %v1252 = vand.u32 %v1251, 4294901760
        %v1253 = vsub.f32 %v1251, %v1252
        %v1254 = vand.u32 %v1253, 4294901760
        %1255 = vmatpush1.msra.mxu0 %v1254
        %1256 = vmatprep.subr.mxu0 0.0
        %v1257 = vand.u32 %v170, 4294901760
        %v1258 = vsub.f32 %v170, %v1257
        %v1259 = vand.u32 %v1258, 4294901760
        %v1260 = vsub.f32 %v1258, %v1259
        %v1261 = vand.u32 %v1260, 4294901760
        %1262 = vmatpush1.msra.mxu0 %v1261
        %1263 = vmatprep.subr.mxu0 0.0
        %v1264 = vand.u32 %v171, 4294901760
        %v1265 = vsub.f32 %v171, %v1264
        %v1266 = vand.u32 %v1265, 4294901760
        %v1267 = vsub.f32 %v1265, %v1266
        %v1268 = vand.u32 %v1267, 4294901760
        %1269 = vmatpush1.msra.mxu0 %v1268
        %1270 = vmatprep.subr.mxu0 0.0
        %v1271 = vand.u32 %v172, 4294901760
        %v1272 = vsub.f32 %v172, %v1271
        %v1273 = vand.u32 %v1272, 4294901760
        %v1274 = vsub.f32 %v1272, %v1273
        %v1275 = vand.u32 %v1274, 4294901760
        %1276 = vmatpush1.msra.mxu0 %v1275
        %1277 = vmatprep.subr.mxu0 0.0
        %1278 = vmatpush1.msra.mxu0 0.0
        %1279 = vmatprep.subr.mxu0 0.0
        %1280 = vmatpush1.msra.mxu0 0.0
        %1281 = vmatprep.subr.mxu0 0.0
        %1282 = vmatpush1.msra.mxu0 0.0
        %1283 = vmatprep.subr.mxu0 0.0
        %1284 = vmatpush1.msra.mxu0 0.0
        %1285 = vmatprep.subr.mxu0 0.0
        %1286 = vmatpush1.msra.mxu0 0.0
        %1287 = vmatprep.subr.mxu0 0.0
        %1288 = vmatpush1.msra.mxu0 0.0
        %1289 = vmatprep.subr.mxu0 0.0
        %1290 = vmatpush1.msra.mxu0 0.0
        %1291 = vmatprep.subr.mxu0 0.0
        %1292 = vmatpush1.msra.mxu0 0.0
        %1293 = vmatprep.subr.mxu0 0.0
        %1294 = vmatpush1.msra.mxu0 0.0
        %1295 = vmatprep.subr.mxu0 0.0
        %1296 = vmatpush1.msra.mxu0 0.0
        %1297 = vmatprep.subr.mxu0 0.0
        %1298 = vmatpush1.msra.mxu0 0.0
        %1299 = vmatprep.subr.mxu0 0.0
        %1300 = vmatpush1.msra.mxu0 0.0
        %1301 = vmatprep.subr.mxu0 0.0
        %1302 = vmatpush1.msra.mxu0 0.0
        %1303 = vmatprep.subr.mxu0 0.0
        %1304 = vmatpush1.msra.mxu0 0.0
        %1305 = vmatprep.subr.mxu0 0.0
        %1306 = vmatpush1.msra.mxu0 0.0
        %1307 = vmatprep.subr.mxu0 0.0
        %1308 = vmatpush1.msra.mxu0 0.0
        %1309 = vmatprep.subr.mxu0 0.0
        %1310 = vmatpush1.msra.mxu0 0.0
        %1311 = vmatprep.subr.mxu0 0.0
        %1312 = vmatpush1.msra.mxu0 0.0
        %1313 = vmatprep.subr.mxu0 0.0
        %1314 = vmatpush1.msra.mxu0 0.0
        %1315 = vmatprep.subr.mxu0 0.0
        %1316 = vmatpush1.msra.mxu0 0.0
        %1317 = vmatprep.subr.mxu0 0.0
        %1318 = vmatpush1.msra.mxu0 0.0
        %1319 = vmatprep.subr.mxu0 0.0
        %1320 = vmatpush1.msra.mxu0 0.0
        %1321 = vmatprep.subr.mxu0 0.0
        %1322 = vmatpush1.msra.mxu0 0.0
        %1323 = vmatprep.subr.mxu0 0.0
        %1324 = vmatpush1.msra.mxu0 0.0
        %1325 = vmatprep.subr.mxu0 0.0
        %1326 = vmatpush1.msra.mxu0 0.0
        %1327 = vmatprep.subr.mxu0 0.0
        %1328 = vmatpush1.msra.mxu0 0.0
        %1329 = vmatprep.subr.mxu0 0.0
        %1330 = vmatpush1.msra.mxu0 0.0
        %1331 = vmatprep.subr.mxu0 0.0
        %1332 = vmatpush1.msra.mxu0 0.0
        %1333 = vmatprep.mubr.f32.mxu0 0.0
        %v1334 = vand.u32 %v1168, 4294901760
        %1335 = vmatmul.mubr.f32.gmra.mrb[0].mxu0 %v1334
        %v1336 = vpop.f32.mrb[0].mxu0
        %v1337 = vadd.f32 %v1246, %v1336
        %v1338 = vpop.f32.mrb[0].mxu0
        %1339 = vdwg.mxu0
        %1340 = vmatprep.subr.mxu0 0.0
        %v1341 = vand.u32 %v169, 4294901760
        %v1342 = vsub.f32 %v169, %v1341
        %1343 = vmatpush1.msra.mxu0 %v1342
        %1344 = vmatprep.subr.mxu0 0.0
        %v1345 = vand.u32 %v170, 4294901760
        %v1346 = vsub.f32 %v170, %v1345
        %1347 = vmatpush1.msra.mxu0 %v1346
        %1348 = vmatprep.subr.mxu0 0.0
        %v1349 = vand.u32 %v171, 4294901760
        %v1350 = vsub.f32 %v171, %v1349
        %1351 = vmatpush1.msra.mxu0 %v1350
        %1352 = vmatprep.subr.mxu0 0.0
        %v1353 = vand.u32 %v172, 4294901760
        %v1354 = vsub.f32 %v172, %v1353
        %1355 = vmatpush1.msra.mxu0 %v1354
        %1356 = vmatprep.subr.mxu0 0.0
        %1357 = vmatpush1.msra.mxu0 0.0
        %1358 = vmatprep.subr.mxu0 0.0
        %1359 = vmatpush1.msra.mxu0 0.0
        %1360 = vmatprep.subr.mxu0 0.0
        %1361 = vmatpush1.msra.mxu0 0.0
        %1362 = vmatprep.subr.mxu0 0.0
        %1363 = vmatpush1.msra.mxu0 0.0
        %1364 = vmatprep.subr.mxu0 0.0
        %1365 = vmatpush1.msra.mxu0 0.0
        %1366 = vmatprep.subr.mxu0 0.0
        %1367 = vmatpush1.msra.mxu0 0.0
        %1368 = vmatprep.subr.mxu0 0.0
        %1369 = vmatpush1.msra.mxu0 0.0
        %1370 = vmatprep.subr.mxu0 0.0
        %1371 = vmatpush1.msra.mxu0 0.0
        %1372 = vmatprep.subr.mxu0 0.0
        %1373 = vmatpush1.msra.mxu0 0.0
        %1374 = vmatprep.subr.mxu0 0.0
        %1375 = vmatpush1.msra.mxu0 0.0
        %1376 = vmatprep.subr.mxu0 0.0
        %1377 = vmatpush1.msra.mxu0 0.0
        %1378 = vmatprep.subr.mxu0 0.0
        %1379 = vmatpush1.msra.mxu0 0.0
        %1380 = vmatprep.subr.mxu0 0.0
        %1381 = vmatpush1.msra.mxu0 0.0
        %1382 = vmatprep.subr.mxu0 0.0
        %1383 = vmatpush1.msra.mxu0 0.0
        %1384 = vmatprep.subr.mxu0 0.0
        %1385 = vmatpush1.msra.mxu0 0.0
        %1386 = vmatprep.subr.mxu0 0.0
        %1387 = vmatpush1.msra.mxu0 0.0
        %1388 = vmatprep.subr.mxu0 0.0
        %1389 = vmatpush1.msra.mxu0 0.0
        %1390 = vmatprep.subr.mxu0 0.0
        %1391 = vmatpush1.msra.mxu0 0.0
        %1392 = vmatprep.subr.mxu0 0.0
        %1393 = vmatpush1.msra.mxu0 0.0
        %1394 = vmatprep.subr.mxu0 0.0
        %1395 = vmatpush1.msra.mxu0 0.0
        %1396 = vmatprep.subr.mxu0 0.0
        %1397 = vmatpush1.msra.mxu0 0.0
        %1398 = vmatprep.subr.mxu0 0.0
        %1399 = vmatpush1.msra.mxu0 0.0
        %1400 = vmatprep.subr.mxu0 0.0
        %1401 = vmatpush1.msra.mxu0 0.0
        %1402 = vmatprep.subr.mxu0 0.0
        %1403 = vmatpush1.msra.mxu0 0.0
        %1404 = vmatprep.subr.mxu0 0.0
        %1405 = vmatpush1.msra.mxu0 0.0
        %1406 = vmatprep.subr.mxu0 0.0
        %1407 = vmatpush1.msra.mxu0 0.0
        %1408 = vmatprep.subr.mxu0 0.0
        %1409 = vmatpush1.msra.mxu0 0.0
        %1410 = vmatprep.subr.mxu0 0.0
        %1411 = vmatpush1.msra.mxu0 0.0
        %1412 = vmatprep.mubr.f32.mxu0 0.0
        %v1413 = vand.u32 %v1168, 4294901760
        %v1414 = vsub.f32 %v1168, %v1413
        %1415 = vmatmul.mubr.f32.gmra.mrb[0].mxu0 %v1414
        %v1416 = vpop.f32.mrb[0].mxu0
        %v1417 = vadd.f32 %v1337, %v1416
        %v1418 = vpop.f32.mrb[0].mxu0
        %1419 = vdwg.mxu0
        %1420 = vmatprep.subr.mxu0 0.0
        %v1421 = vand.u32 %v169, 4294901760
        %1422 = vmatpush1.msra.mxu0 %v1421
        %1423 = vmatprep.subr.mxu0 0.0
        %v1424 = vand.u32 %v170, 4294901760
        %1425 = vmatpush1.msra.mxu0 %v1424
        %1426 = vmatprep.subr.mxu0 0.0
        %v1427 = vand.u32 %v171, 4294901760
        %1428 = vmatpush1.msra.mxu0 %v1427
        %1429 = vmatprep.subr.mxu0 0.0
        %v1430 = vand.u32 %v172, 4294901760
        %1431 = vmatpush1.msra.mxu0 %v1430
        %1432 = vmatprep.subr.mxu0 0.0
        %1433 = vmatpush1.msra.mxu0 0.0
        %1434 = vmatprep.subr.mxu0 0.0
        %1435 = vmatpush1.msra.mxu0 0.0
        %1436 = vmatprep.subr.mxu0 0.0
        %1437 = vmatpush1.msra.mxu0 0.0
        %1438 = vmatprep.subr.mxu0 0.0
        %1439 = vmatpush1.msra.mxu0 0.0
        %1440 = vmatprep.subr.mxu0 0.0
        %1441 = vmatpush1.msra.mxu0 0.0
        %1442 = vmatprep.subr.mxu0 0.0
        %1443 = vmatpush1.msra.mxu0 0.0
        %1444 = vmatprep.subr.mxu0 0.0
        %1445 = vmatpush1.msra.mxu0 0.0
        %1446 = vmatprep.subr.mxu0 0.0
        %1447 = vmatpush1.msra.mxu0 0.0
        %1448 = vmatprep.subr.mxu0 0.0
        %1449 = vmatpush1.msra.mxu0 0.0
        %1450 = vmatprep.subr.mxu0 0.0
        %1451 = vmatpush1.msra.mxu0 0.0
        %1452 = vmatprep.subr.mxu0 0.0
        %1453 = vmatpush1.msra.mxu0 0.0
        %1454 = vmatprep.subr.mxu0 0.0
        %1455 = vmatpush1.msra.mxu0 0.0
        %1456 = vmatprep.subr.mxu0 0.0
        %1457 = vmatpush1.msra.mxu0 0.0
        %1458 = vmatprep.subr.mxu0 0.0
        %1459 = vmatpush1.msra.mxu0 0.0
        %1460 = vmatprep.subr.mxu0 0.0
        %1461 = vmatpush1.msra.mxu0 0.0
        %1462 = vmatprep.subr.mxu0 0.0
        %1463 = vmatpush1.msra.mxu0 0.0
        %1464 = vmatprep.subr.mxu0 0.0
        %1465 = vmatpush1.msra.mxu0 0.0
        %1466 = vmatprep.subr.mxu0 0.0
        %1467 = vmatpush1.msra.mxu0 0.0
        %1468 = vmatprep.subr.mxu0 0.0
        %1469 = vmatpush1.msra.mxu0 0.0
        %1470 = vmatprep.subr.mxu0 0.0
        %1471 = vmatpush1.msra.mxu0 0.0
        %1472 = vmatprep.subr.mxu0 0.0
        %1473 = vmatpush1.msra.mxu0 0.0
        %1474 = vmatprep.subr.mxu0 0.0
        %1475 = vmatpush1.msra.mxu0 0.0
        %1476 = vmatprep.subr.mxu0 0.0
        %1477 = vmatpush1.msra.mxu0 0.0
        %1478 = vmatprep.subr.mxu0 0.0
        %1479 = vmatpush1.msra.mxu0 0.0
        %1480 = vmatprep.subr.mxu0 0.0
        %1481 = vmatpush1.msra.mxu0 0.0
        %1482 = vmatprep.subr.mxu0 0.0
        %1483 = vmatpush1.msra.mxu0 0.0
        %1484 = vmatprep.subr.mxu0 0.0
        %1485 = vmatpush1.msra.mxu0 0.0
        %1486 = vmatprep.subr.mxu0 0.0
        %1487 = vmatpush1.msra.mxu0 0.0
        %1488 = vmatprep.mubr.f32.mxu0 0.0
        %v1489 = vand.u32 %v1168, 4294901760
        %v1490 = vsub.f32 %v1168, %v1489
        %v1491 = vand.u32 %v1490, 4294901760
        %1492 = vmatmul.mubr.f32.gmra.mrb[0].mxu0 %v1491
        %v1493 = vpop.f32.mrb[0].mxu0
        %v1494 = vadd.f32 %v1417, %v1493
        %v1495 = vpop.f32.mrb[0].mxu0
        %1496 = vdwg.mxu0
        %1497 = vmatprep.subr.mxu0 0.0
        %v1498 = vand.u32 %v169, 4294901760
        %v1499 = vsub.f32 %v169, %v1498
        %v1500 = vand.u32 %v1499, 4294901760
        %1501 = vmatpush1.msra.mxu0 %v1500
        %1502 = vmatprep.subr.mxu0 0.0
        %v1503 = vand.u32 %v170, 4294901760
        %v1504 = vsub.f32 %v170, %v1503
        %v1505 = vand.u32 %v1504, 4294901760
        %1506 = vmatpush1.msra.mxu0 %v1505
        %1507 = vmatprep.subr.mxu0 0.0
        %v1508 = vand.u32 %v171, 4294901760
        %v1509 = vsub.f32 %v171, %v1508
        %v1510 = vand.u32 %v1509, 4294901760
        %1511 = vmatpush1.msra.mxu0 %v1510
        %1512 = vmatprep.subr.mxu0 0.0
        %v1513 = vand.u32 %v172, 4294901760
        %v1514 = vsub.f32 %v172, %v1513
        %v1515 = vand.u32 %v1514, 4294901760
        %1516 = vmatpush1.msra.mxu0 %v1515
        %1517 = vmatprep.subr.mxu0 0.0
        %1518 = vmatpush1.msra.mxu0 0.0
        %1519 = vmatprep.subr.mxu0 0.0
        %1520 = vmatpush1.msra.mxu0 0.0
        %1521 = vmatprep.subr.mxu0 0.0
        %1522 = vmatpush1.msra.mxu0 0.0
        %1523 = vmatprep.subr.mxu0 0.0
        %1524 = vmatpush1.msra.mxu0 0.0
        %1525 = vmatprep.subr.mxu0 0.0
        %1526 = vmatpush1.msra.mxu0 0.0
        %1527 = vmatprep.subr.mxu0 0.0
        %1528 = vmatpush1.msra.mxu0 0.0
        %1529 = vmatprep.subr.mxu0 0.0
        %1530 = vmatpush1.msra.mxu0 0.0
        %1531 = vmatprep.subr.mxu0 0.0
        %1532 = vmatpush1.msra.mxu0 0.0
        %1533 = vmatprep.subr.mxu0 0.0
        %1534 = vmatpush1.msra.mxu0 0.0
        %1535 = vmatprep.subr.mxu0 0.0
        %1536 = vmatpush1.msra.mxu0 0.0
        %1537 = vmatprep.subr.mxu0 0.0
        %1538 = vmatpush1.msra.mxu0 0.0
        %1539 = vmatprep.subr.mxu0 0.0
        %1540 = vmatpush1.msra.mxu0 0.0
        %1541 = vmatprep.subr.mxu0 0.0
        %1542 = vmatpush1.msra.mxu0 0.0
        %1543 = vmatprep.subr.mxu0 0.0
        %1544 = vmatpush1.msra.mxu0 0.0
        %1545 = vmatprep.subr.mxu0 0.0
        %1546 = vmatpush1.msra.mxu0 0.0
        %1547 = vmatprep.subr.mxu0 0.0
        %1548 = vmatpush1.msra.mxu0 0.0
        %1549 = vmatprep.subr.mxu0 0.0
        %1550 = vmatpush1.msra.mxu0 0.0
        %1551 = vmatprep.subr.mxu0 0.0
        %1552 = vmatpush1.msra.mxu0 0.0
        %1553 = vmatprep.subr.mxu0 0.0
        %1554 = vmatpush1.msra.mxu0 0.0
        %1555 = vmatprep.subr.mxu0 0.0
        %1556 = vmatpush1.msra.mxu0 0.0
        %1557 = vmatprep.subr.mxu0 0.0
        %1558 = vmatpush1.msra.mxu0 0.0
        %1559 = vmatprep.subr.mxu0 0.0
        %1560 = vmatpush1.msra.mxu0 0.0
        %1561 = vmatprep.subr.mxu0 0.0
        %1562 = vmatpush1.msra.mxu0 0.0
        %1563 = vmatprep.subr.mxu0 0.0
        %1564 = vmatpush1.msra.mxu0 0.0
        %1565 = vmatprep.subr.mxu0 0.0
        %1566 = vmatpush1.msra.mxu0 0.0
        %1567 = vmatprep.subr.mxu0 0.0
        %1568 = vmatpush1.msra.mxu0 0.0
        %1569 = vmatprep.subr.mxu0 0.0
        %1570 = vmatpush1.msra.mxu0 0.0
        %1571 = vmatprep.subr.mxu0 0.0
        %1572 = vmatpush1.msra.mxu0 0.0
        %1573 = vmatprep.mubr.f32.mxu0 0.0
        %v1574 = vand.u32 %v1168, 4294901760
        %1575 = vmatmul.mubr.f32.gmra.mrb[0].mxu0 %v1574
        %v1576 = vpop.f32.mrb[0].mxu0
        %v1577 = vadd.f32 %v1494, %v1576
        %v1578 = vpop.f32.mrb[0].mxu0
        %1579 = vdwg.mxu0
        %1580 = vmatprep.subr.mxu0 0.0
        %v1581 = vand.u32 %v169, 4294901760
        %1582 = vmatpush1.msra.mxu0 %v1581
        %1583 = vmatprep.subr.mxu0 0.0
        %v1584 = vand.u32 %v170, 4294901760
        %1585 = vmatpush1.msra.mxu0 %v1584
        %1586 = vmatprep.subr.mxu0 0.0
        %v1587 = vand.u32 %v171, 4294901760
        %1588 = vmatpush1.msra.mxu0 %v1587
        %1589 = vmatprep.subr.mxu0 0.0
        %v1590 = vand.u32 %v172, 4294901760
        %1591 = vmatpush1.msra.mxu0 %v1590
        %1592 = vmatprep.subr.mxu0 0.0
        %1593 = vmatpush1.msra.mxu0 0.0
        %1594 = vmatprep.subr.mxu0 0.0
        %1595 = vmatpush1.msra.mxu0 0.0
        %1596 = vmatprep.subr.mxu0 0.0
        %1597 = vmatpush1.msra.mxu0 0.0
        %1598 = vmatprep.subr.mxu0 0.0
        %1599 = vmatpush1.msra.mxu0 0.0
        %1600 = vmatprep.subr.mxu0 0.0
        %1601 = vmatpush1.msra.mxu0 0.0
        %1602 = vmatprep.subr.mxu0 0.0
        %1603 = vmatpush1.msra.mxu0 0.0
        %1604 = vmatprep.subr.mxu0 0.0
        %1605 = vmatpush1.msra.mxu0 0.0
        %1606 = vmatprep.subr.mxu0 0.0
        %1607 = vmatpush1.msra.mxu0 0.0
        %1608 = vmatprep.subr.mxu0 0.0
        %1609 = vmatpush1.msra.mxu0 0.0
        %1610 = vmatprep.subr.mxu0 0.0
        %1611 = vmatpush1.msra.mxu0 0.0
        %1612 = vmatprep.subr.mxu0 0.0
        %1613 = vmatpush1.msra.mxu0 0.0
        %1614 = vmatprep.subr.mxu0 0.0
        %1615 = vmatpush1.msra.mxu0 0.0
        %1616 = vmatprep.subr.mxu0 0.0
        %1617 = vmatpush1.msra.mxu0 0.0
        %1618 = vmatprep.subr.mxu0 0.0
        %1619 = vmatpush1.msra.mxu0 0.0
        %1620 = vmatprep.subr.mxu0 0.0
        %1621 = vmatpush1.msra.mxu0 0.0
        %1622 = vmatprep.subr.mxu0 0.0
        %1623 = vmatpush1.msra.mxu0 0.0
        %1624 = vmatprep.subr.mxu0 0.0
        %1625 = vmatpush1.msra.mxu0 0.0
        %1626 = vmatprep.subr.mxu0 0.0
        %1627 = vmatpush1.msra.mxu0 0.0
        %1628 = vmatprep.subr.mxu0 0.0
        %1629 = vmatpush1.msra.mxu0 0.0
        %1630 = vmatprep.subr.mxu0 0.0
        %1631 = vmatpush1.msra.mxu0 0.0
        %1632 = vmatprep.subr.mxu0 0.0
        %1633 = vmatpush1.msra.mxu0 0.0
        %1634 = vmatprep.subr.mxu0 0.0
        %1635 = vmatpush1.msra.mxu0 0.0
        %1636 = vmatprep.subr.mxu0 0.0
        %1637 = vmatpush1.msra.mxu0 0.0
        %1638 = vmatprep.subr.mxu0 0.0
        %1639 = vmatpush1.msra.mxu0 0.0
        %1640 = vmatprep.subr.mxu0 0.0
        %1641 = vmatpush1.msra.mxu0 0.0
        %1642 = vmatprep.subr.mxu0 0.0
        %1643 = vmatpush1.msra.mxu0 0.0
        %1644 = vmatprep.subr.mxu0 0.0
        %1645 = vmatpush1.msra.mxu0 0.0
        %1646 = vmatprep.subr.mxu0 0.0
        %1647 = vmatpush1.msra.mxu0 0.0
        %1648 = vmatprep.mubr.f32.mxu0 0.0
        %v1649 = vand.u32 %v1168, 4294901760
        %1650 = vmatmul.mubr.f32.gmra.mrb[0].mxu0 %v1649
        %v1651 = vpop.f32.mrb[0].mxu0
        %v1652 = vadd.f32 %v1577, %v1651
        %v1653 = vpop.f32.mrb[0].mxu0
        %1654 = vdwg.mxu0
        %1656 = vrot.lane.b32.xlu0 %v1150, 120
        %v1657 = vpop.permute.xlu0 %1656
        %v1659 = vadd.f32 %v1150, %v1657
        %v1660 = vmul.f32 %v1659, 0.59375
        %1662 = vrot.lane.b32.xlu0 %v1652, 8
        %v1663 = vpop.permute.xlu0 %1662
        %v1665 = vadd.f32 %v661, %v1663
        %v1666 = vmul.f32 %v1665, -0.09375
        %1668 = vrot.lane.b32.xlu0 %v1666, 120
        %v1669 = vpop.permute.xlu0 %1668
        %v1671 = vadd.f32 %v1660, %v1669
        %1673 = vrot.lane.b32.xlu0 %v1671, 8
        %v1674 = vpop.permute.xlu0 %1673
        %vm1676 = vcmask 126016
        %1677 = vst.msk [vmem:[#allocation2] sm:$0xf] %vm1676, %v1674
        %v1678 = vld [vmem:[%s168] sm:$0xf]
        %1680 = vrot.lane.b32.xlu0 %v1678, 32
        %v1681 = vpop.permute.xlu0 %1680
        %v1682 = vsel %vm175, %v1681, 0
        %1684 = vmatprep.subr.mxu0 0.0
        %v1685 = vand.u32 %v169, 4294901760
        %1686 = vmatpush1.msra.mxu0 %v1685
        %1687 = vmatprep.subr.mxu0 0.0
        %v1688 = vand.u32 %v170, 4294901760
        %1689 = vmatpush1.msra.mxu0 %v1688
        %1690 = vmatprep.subr.mxu0 0.0
        %v1691 = vand.u32 %v171, 4294901760
        %1692 = vmatpush1.msra.mxu0 %v1691
        %1693 = vmatprep.subr.mxu0 0.0
        %v1694 = vand.u32 %v172, 4294901760
        %1695 = vmatpush1.msra.mxu0 %v1694
        %1696 = vmatprep.subr.mxu0 0.0
        %1697 = vmatpush1.msra.mxu0 0.0
        %1698 = vmatprep.subr.mxu0 0.0
        %1699 = vmatpush1.msra.mxu0 0.0
        %1700 = vmatprep.subr.mxu0 0.0
        %1701 = vmatpush1.msra.mxu0 0.0
        %1702 = vmatprep.subr.mxu0 0.0
        %1703 = vmatpush1.msra.mxu0 0.0
        %1704 = vmatprep.subr.mxu0 0.0
        %1705 = vmatpush1.msra.mxu0 0.0
        %1706 = vmatprep.subr.mxu0 0.0
        %1707 = vmatpush1.msra.mxu0 0.0
        %1708 = vmatprep.subr.mxu0 0.0
        %1709 = vmatpush1.msra.mxu0 0.0
        %1710 = vmatprep.subr.mxu0 0.0
        %1711 = vmatpush1.msra.mxu0 0.0
        %1712 = vmatprep.subr.mxu0 0.0
        %1713 = vmatpush1.msra.mxu0 0.0
        %1714 = vmatprep.subr.mxu0 0.0
        %1715 = vmatpush1.msra.mxu0 0.0
        %1716 = vmatprep.subr.mxu0 0.0
        %1717 = vmatpush1.msra.mxu0 0.0
        %1718 = vmatprep.subr.mxu0 0.0
        %1719 = vmatpush1.msra.mxu0 0.0
        %1720 = vmatprep.subr.mxu0 0.0
        %1721 = vmatpush1.msra.mxu0 0.0
        %1722 = vmatprep.subr.mxu0 0.0
        %1723 = vmatpush1.msra.mxu0 0.0
        %1724 = vmatprep.subr.mxu0 0.0
        %1725 = vmatpush1.msra.mxu0 0.0
        %1726 = vmatprep.subr.mxu0 0.0
        %1727 = vmatpush1.msra.mxu0 0.0
        %1728 = vmatprep.subr.mxu0 0.0
        %1729 = vmatpush1.msra.mxu0 0.0
        %1730 = vmatprep.subr.mxu0 0.0
        %1731 = vmatpush1.msra.mxu0 0.0
        %1732 = vmatprep.subr.mxu0 0.0
        %1733 = vmatpush1.msra.mxu0 0.0
        %1734 = vmatprep.subr.mxu0 0.0
        %1735 = vmatpush1.msra.mxu0 0.0
        %1736 = vmatprep.subr.mxu0 0.0
        %1737 = vmatpush1.msra.mxu0 0.0
        %1738 = vmatprep.subr.mxu0 0.0
        %1739 = vmatpush1.msra.mxu0 0.0
        %1740 = vmatprep.subr.mxu0 0.0
        %1741 = vmatpush1.msra.mxu0 0.0
        %1742 = vmatprep.subr.mxu0 0.0
        %1743 = vmatpush1.msra.mxu0 0.0
        %1744 = vmatprep.subr.mxu0 0.0
        %1745 = vmatpush1.msra.mxu0 0.0
        %1746 = vmatprep.subr.mxu0 0.0
        %1747 = vmatpush1.msra.mxu0 0.0
        %1748 = vmatprep.subr.mxu0 0.0
        %1749 = vmatpush1.msra.mxu0 0.0
        %1750 = vmatprep.subr.mxu0 0.0
        %1751 = vmatpush1.msra.mxu0 0.0
        %1752 = vmatprep.mubr.f32.mxu0 0.0
        %v1753 = vand.u32 %v1682, 4294901760
        %v1754 = vsub.f32 %v1682, %v1753
        %v1755 = vand.u32 %v1754, 4294901760
        %v1756 = vsub.f32 %v1754, %v1755
        %v1757 = vand.u32 %v1756, 4294901760
        %1758 = vmatmul.mubr.f32.gmra.mrb[0].mxu0 %v1757
        %v1759 = vpop.f32.mrb[0].mxu0
        %v1760 = vadd.f32 0.0, %v1759
        %v1761 = vpop.f32.mrb[0].mxu0
        %1762 = vdwg.mxu0
        %1763 = vmatprep.subr.mxu0 0.0
        %v1764 = vand.u32 %v169, 4294901760
        %v1765 = vsub.f32 %v169, %v1764
        %v1766 = vand.u32 %v1765, 4294901760
        %v1767 = vsub.f32 %v1765, %v1766
        %v1768 = vand.u32 %v1767, 4294901760
        %1769 = vmatpush1.msra.mxu0 %v1768
        %1770 = vmatprep.subr.mxu0 0.0
        %v1771 = vand.u32 %v170, 4294901760
        %v1772 = vsub.f32 %v170, %v1771
        %v1773 = vand.u32 %v1772, 4294901760
        %v1774 = vsub.f32 %v1772, %v1773
        %v1775 = vand.u32 %v1774, 4294901760
        %1776 = vmatpush1.msra.mxu0 %v1775
        %1777 = vmatprep.subr.mxu0 0.0
        %v1778 = vand.u32 %v171, 4294901760
        %v1779 = vsub.f32 %v171, %v1778
        %v1780 = vand.u32 %v1779, 4294901760
        %v1781 = vsub.f32 %v1779, %v1780
        %v1782 = vand.u32 %v1781, 4294901760
        %1783 = vmatpush1.msra.mxu0 %v1782
        %1784 = vmatprep.subr.mxu0 0.0
        %v1785 = vand.u32 %v172, 4294901760
        %v1786 = vsub.f32 %v172, %v1785
        %v1787 = vand.u32 %v1786, 4294901760
        %v1788 = vsub.f32 %v1786, %v1787
        %v1789 = vand.u32 %v1788, 4294901760
        %1790 = vmatpush1.msra.mxu0 %v1789
        %1791 = vmatprep.subr.mxu0 0.0
        %1792 = vmatpush1.msra.mxu0 0.0
        %1793 = vmatprep.subr.mxu0 0.0
        %1794 = vmatpush1.msra.mxu0 0.0
        %1795 = vmatprep.subr.mxu0 0.0
        %1796 = vmatpush1.msra.mxu0 0.0
        %1797 = vmatprep.subr.mxu0 0.0
        %1798 = vmatpush1.msra.mxu0 0.0
        %1799 = vmatprep.subr.mxu0 0.0
        %1800 = vmatpush1.msra.mxu0 0.0
        %1801 = vmatprep.subr.mxu0 0.0
        %1802 = vmatpush1.msra.mxu0 0.0
        %1803 = vmatprep.subr.mxu0 0.0
        %1804 = vmatpush1.msra.mxu0 0.0
        %1805 = vmatprep.subr.mxu0 0.0
        %1806 = vmatpush1.msra.mxu0 0.0
        %1807 = vmatprep.subr.mxu0 0.0
        %1808 = vmatpush1.msra.mxu0 0.0
        %1809 = vmatprep.subr.mxu0 0.0
        %1810 = vmatpush1.msra.mxu0 0.0
        %1811 = vmatprep.subr.mxu0 0.0
        %1812 = vmatpush1.msra.mxu0 0.0
        %1813 = vmatprep.subr.mxu0 0.0
        %1814 = vmatpush1.msra.mxu0 0.0
        %1815 = vmatprep.subr.mxu0 0.0
        %1816 = vmatpush1.msra.mxu0 0.0
        %1817 = vmatprep.subr.mxu0 0.0
        %1818 = vmatpush1.msra.mxu0 0.0
        %1819 = vmatprep.subr.mxu0 0.0
        %1820 = vmatpush1.msra.mxu0 0.0
        %1821 = vmatprep.subr.mxu0 0.0
        %1822 = vmatpush1.msra.mxu0 0.0
        %1823 = vmatprep.subr.mxu0 0.0
        %1824 = vmatpush1.msra.mxu0 0.0
        %1825 = vmatprep.subr.mxu0 0.0
        %1826 = vmatpush1.msra.mxu0 0.0
        %1827 = vmatprep.subr.mxu0 0.0
        %1828 = vmatpush1.msra.mxu0 0.0
        %1829 = vmatprep.subr.mxu0 0.0
        %1830 = vmatpush1.msra.mxu0 0.0
        %1831 = vmatprep.subr.mxu0 0.0
        %1832 = vmatpush1.msra.mxu0 0.0
        %1833 = vmatprep.subr.mxu0 0.0
        %1834 = vmatpush1.msra.mxu0 0.0
        %1835 = vmatprep.subr.mxu0 0.0
        %1836 = vmatpush1.msra.mxu0 0.0
        %1837 = vmatprep.subr.mxu0 0.0
        %1838 = vmatpush1.msra.mxu0 0.0
        %1839 = vmatprep.subr.mxu0 0.0
        %1840 = vmatpush1.msra.mxu0 0.0
        %1841 = vmatprep.subr.mxu0 0.0
        %1842 = vmatpush1.msra.mxu0 0.0
        %1843 = vmatprep.subr.mxu0 0.0
        %1844 = vmatpush1.msra.mxu0 0.0
        %1845 = vmatprep.subr.mxu0 0.0
        %1846 = vmatpush1.msra.mxu0 0.0
        %1847 = vmatprep.mubr.f32.mxu0 0.0
        %v1848 = vand.u32 %v1682, 4294901760
        %1849 = vmatmul.mubr.f32.gmra.mrb[0].mxu0 %v1848
        %v1850 = vpop.f32.mrb[0].mxu0
        %v1851 = vadd.f32 %v1760, %v1850
        %v1852 = vpop.f32.mrb[0].mxu0
        %1853 = vdwg.mxu0
        %1854 = vmatprep.subr.mxu0 0.0
        %v1855 = vand.u32 %v169, 4294901760
        %v1856 = vsub.f32 %v169, %v1855
        %1857 = vmatpush1.msra.mxu0 %v1856
        %1858 = vmatprep.subr.mxu0 0.0
        %v1859 = vand.u32 %v170, 4294901760
        %v1860 = vsub.f32 %v170, %v1859
        %1861 = vmatpush1.msra.mxu0 %v1860
        %1862 = vmatprep.subr.mxu0 0.0
        %v1863 = vand.u32 %v171, 4294901760
        %v1864 = vsub.f32 %v171, %v1863
        %1865 = vmatpush1.msra.mxu0 %v1864
        %1866 = vmatprep.subr.mxu0 0.0
        %v1867 = vand.u32 %v172, 4294901760
        %v1868 = vsub.f32 %v172, %v1867
        %1869 = vmatpush1.msra.mxu0 %v1868
        %1870 = vmatprep.subr.mxu0 0.0
        %1871 = vmatpush1.msra.mxu0 0.0
        %1872 = vmatprep.subr.mxu0 0.0
        %1873 = vmatpush1.msra.mxu0 0.0
        %1874 = vmatprep.subr.mxu0 0.0
        %1875 = vmatpush1.msra.mxu0 0.0
        %1876 = vmatprep.subr.mxu0 0.0
        %1877 = vmatpush1.msra.mxu0 0.0
        %1878 = vmatprep.subr.mxu0 0.0
        %1879 = vmatpush1.msra.mxu0 0.0
        %1880 = vmatprep.subr.mxu0 0.0
        %1881 = vmatpush1.msra.mxu0 0.0
        %1882 = vmatprep.subr.mxu0 0.0
        %1883 = vmatpush1.msra.mxu0 0.0
        %1884 = vmatprep.subr.mxu0 0.0
        %1885 = vmatpush1.msra.mxu0 0.0
        %1886 = vmatprep.subr.mxu0 0.0
        %1887 = vmatpush1.msra.mxu0 0.0
        %1888 = vmatprep.subr.mxu0 0.0
        %1889 = vmatpush1.msra.mxu0 0.0
        %1890 = vmatprep.subr.mxu0 0.0
        %1891 = vmatpush1.msra.mxu0 0.0
        %1892 = vmatprep.subr.mxu0 0.0
        %1893 = vmatpush1.msra.mxu0 0.0
        %1894 = vmatprep.subr.mxu0 0.0
        %1895 = vmatpush1.msra.mxu0 0.0
        %1896 = vmatprep.subr.mxu0 0.0
        %1897 = vmatpush1.msra.mxu0 0.0
        %1898 = vmatprep.subr.mxu0 0.0
        %1899 = vmatpush1.msra.mxu0 0.0
        %1900 = vmatprep.subr.mxu0 0.0
        %1901 = vmatpush1.msra.mxu0 0.0
        %1902 = vmatprep.subr.mxu0 0.0
        %1903 = vmatpush1.msra.mxu0 0.0
        %1904 = vmatprep.subr.mxu0 0.0
        %1905 = vmatpush1.msra.mxu0 0.0
        %1906 = vmatprep.subr.mxu0 0.0
        %1907 = vmatpush1.msra.mxu0 0.0
        %1908 = vmatprep.subr.mxu0 0.0
        %1909 = vmatpush1.msra.mxu0 0.0
        %1910 = vmatprep.subr.mxu0 0.0
        %1911 = vmatpush1.msra.mxu0 0.0
        %1912 = vmatprep.subr.mxu0 0.0
        %1913 = vmatpush1.msra.mxu0 0.0
        %1914 = vmatprep.subr.mxu0 0.0
        %1915 = vmatpush1.msra.mxu0 0.0
        %1916 = vmatprep.subr.mxu0 0.0
        %1917 = vmatpush1.msra.mxu0 0.0
        %1918 = vmatprep.subr.mxu0 0.0
        %1919 = vmatpush1.msra.mxu0 0.0
        %1920 = vmatprep.subr.mxu0 0.0
        %1921 = vmatpush1.msra.mxu0 0.0
        %1922 = vmatprep.subr.mxu0 0.0
        %1923 = vmatpush1.msra.mxu0 0.0
        %1924 = vmatprep.subr.mxu0 0.0
        %1925 = vmatpush1.msra.mxu0 0.0
        %1926 = vmatprep.mubr.f32.mxu0 0.0
        %v1927 = vand.u32 %v1682, 4294901760
        %v1928 = vsub.f32 %v1682, %v1927
        %1929 = vmatmul.mubr.f32.gmra.mrb[0].mxu0 %v1928
        %v1930 = vpop.f32.mrb[0].mxu0
        %v1931 = vadd.f32 %v1851, %v1930
        %v1932 = vpop.f32.mrb[0].mxu0
        %1933 = vdwg.mxu0
        %1934 = vmatprep.subr.mxu0 0.0
        %v1935 = vand.u32 %v169, 4294901760
        %1936 = vmatpush1.msra.mxu0 %v1935
        %1937 = vmatprep.subr.mxu0 0.0
        %v1938 = vand.u32 %v170, 4294901760
        %1939 = vmatpush1.msra.mxu0 %v1938
        %1940 = vmatprep.subr.mxu0 0.0
        %v1941 = vand.u32 %v171, 4294901760
        %1942 = vmatpush1.msra.mxu0 %v1941
        %1943 = vmatprep.subr.mxu0 0.0
        %v1944 = vand.u32 %v172, 4294901760
        %1945 = vmatpush1.msra.mxu0 %v1944
        %1946 = vmatprep.subr.mxu0 0.0
        %1947 = vmatpush1.msra.mxu0 0.0
        %1948 = vmatprep.subr.mxu0 0.0
        %1949 = vmatpush1.msra.mxu0 0.0
        %1950 = vmatprep.subr.mxu0 0.0
        %1951 = vmatpush1.msra.mxu0 0.0
        %1952 = vmatprep.subr.mxu0 0.0
        %1953 = vmatpush1.msra.mxu0 0.0
        %1954 = vmatprep.subr.mxu0 0.0
        %1955 = vmatpush1.msra.mxu0 0.0
        %1956 = vmatprep.subr.mxu0 0.0
        %1957 = vmatpush1.msra.mxu0 0.0
        %1958 = vmatprep.subr.mxu0 0.0
        %1959 = vmatpush1.msra.mxu0 0.0
        %1960 = vmatprep.subr.mxu0 0.0
        %1961 = vmatpush1.msra.mxu0 0.0
        %1962 = vmatprep.subr.mxu0 0.0
        %1963 = vmatpush1.msra.mxu0 0.0
        %1964 = vmatprep.subr.mxu0 0.0
        %1965 = vmatpush1.msra.mxu0 0.0
        %1966 = vmatprep.subr.mxu0 0.0
        %1967 = vmatpush1.msra.mxu0 0.0
        %1968 = vmatprep.subr.mxu0 0.0
        %1969 = vmatpush1.msra.mxu0 0.0
        %1970 = vmatprep.subr.mxu0 0.0
        %1971 = vmatpush1.msra.mxu0 0.0
        %1972 = vmatprep.subr.mxu0 0.0
        %1973 = vmatpush1.msra.mxu0 0.0
        %1974 = vmatprep.subr.mxu0 0.0
        %1975 = vmatpush1.msra.mxu0 0.0
        %1976 = vmatprep.subr.mxu0 0.0
        %1977 = vmatpush1.msra.mxu0 0.0
        %1978 = vmatprep.subr.mxu0 0.0
        %1979 = vmatpush1.msra.mxu0 0.0
        %1980 = vmatprep.subr.mxu0 0.0
        %1981 = vmatpush1.msra.mxu0 0.0
        %1982 = vmatprep.subr.mxu0 0.0
        %1983 = vmatpush1.msra.mxu0 0.0
        %1984 = vmatprep.subr.mxu0 0.0
        %1985 = vmatpush1.msra.mxu0 0.0
        %1986 = vmatprep.subr.mxu0 0.0
        %1987 = vmatpush1.msra.mxu0 0.0
        %1988 = vmatprep.subr.mxu0 0.0
        %1989 = vmatpush1.msra.mxu0 0.0
        %1990 = vmatprep.subr.mxu0 0.0
        %1991 = vmatpush1.msra.mxu0 0.0
        %1992 = vmatprep.subr.mxu0 0.0
        %1993 = vmatpush1.msra.mxu0 0.0
        %1994 = vmatprep.subr.mxu0 0.0
        %1995 = vmatpush1.msra.mxu0 0.0
        %1996 = vmatprep.subr.mxu0 0.0
        %1997 = vmatpush1.msra.mxu0 0.0
        %1998 = vmatprep.subr.mxu0 0.0
        %1999 = vmatpush1.msra.mxu0 0.0
        %2000 = vmatprep.subr.mxu0 0.0
        %2001 = vmatpush1.msra.mxu0 0.0
        %2002 = vmatprep.mubr.f32.mxu0 0.0
        %v2003 = vand.u32 %v1682, 4294901760
        %v2004 = vsub.f32 %v1682, %v2003
        %v2005 = vand.u32 %v2004, 4294901760
        %2006 = vmatmul.mubr.f32.gmra.mrb[0].mxu0 %v2005
        %v2007 = vpop.f32.mrb[0].mxu0
        %v2008 = vadd.f32 %v1931, %v2007
        %v2009 = vpop.f32.mrb[0].mxu0
        %2010 = vdwg.mxu0
        %2011 = vmatprep.subr.mxu0 0.0
        %v2012 = vand.u32 %v169, 4294901760
        %v2013 = vsub.f32 %v169, %v2012
        %v2014 = vand.u32 %v2013, 4294901760
        %2015 = vmatpush1.msra.mxu0 %v2014
        %2016 = vmatprep.subr.mxu0 0.0
        %v2017 = vand.u32 %v170, 4294901760
        %v2018 = vsub.f32 %v170, %v2017
        %v2019 = vand.u32 %v2018, 4294901760
        %2020 = vmatpush1.msra.mxu0 %v2019
        %2021 = vmatprep.subr.mxu0 0.0
        %v2022 = vand.u32 %v171, 4294901760
        %v2023 = vsub.f32 %v171, %v2022
        %v2024 = vand.u32 %v2023, 4294901760
        %2025 = vmatpush1.msra.mxu0 %v2024
        %2026 = vmatprep.subr.mxu0 0.0
        %v2027 = vand.u32 %v172, 4294901760
        %v2028 = vsub.f32 %v172, %v2027
        %v2029 = vand.u32 %v2028, 4294901760
        %2030 = vmatpush1.msra.mxu0 %v2029
        %2031 = vmatprep.subr.mxu0 0.0
        %2032 = vmatpush1.msra.mxu0 0.0
        %2033 = vmatprep.subr.mxu0 0.0
        %2034 = vmatpush1.msra.mxu0 0.0
        %2035 = vmatprep.subr.mxu0 0.0
        %2036 = vmatpush1.msra.mxu0 0.0
        %2037 = vmatprep.subr.mxu0 0.0
        %2038 = vmatpush1.msra.mxu0 0.0
        %2039 = vmatprep.subr.mxu0 0.0
        %2040 = vmatpush1.msra.mxu0 0.0
        %2041 = vmatprep.subr.mxu0 0.0
        %2042 = vmatpush1.msra.mxu0 0.0
        %2043 = vmatprep.subr.mxu0 0.0
        %2044 = vmatpush1.msra.mxu0 0.0
        %2045 = vmatprep.subr.mxu0 0.0
        %2046 = vmatpush1.msra.mxu0 0.0
        %2047 = vmatprep.subr.mxu0 0.0
        %2048 = vmatpush1.msra.mxu0 0.0
        %2049 = vmatprep.subr.mxu0 0.0
        %2050 = vmatpush1.msra.mxu0 0.0
        %2051 = vmatprep.subr.mxu0 0.0
        %2052 = vmatpush1.msra.mxu0 0.0
        %2053 = vmatprep.subr.mxu0 0.0
        %2054 = vmatpush1.msra.mxu0 0.0
        %2055 = vmatprep.subr.mxu0 0.0
        %2056 = vmatpush1.msra.mxu0 0.0
        %2057 = vmatprep.subr.mxu0 0.0
        %2058 = vmatpush1.msra.mxu0 0.0
        %2059 = vmatprep.subr.mxu0 0.0
        %2060 = vmatpush1.msra.mxu0 0.0
        %2061 = vmatprep.subr.mxu0 0.0
        %2062 = vmatpush1.msra.mxu0 0.0
        %2063 = vmatprep.subr.mxu0 0.0
        %2064 = vmatpush1.msra.mxu0 0.0
        %2065 = vmatprep.subr.mxu0 0.0
        %2066 = vmatpush1.msra.mxu0 0.0
        %2067 = vmatprep.subr.mxu0 0.0
        %2068 = vmatpush1.msra.mxu0 0.0
        %2069 = vmatprep.subr.mxu0 0.0
        %2070 = vmatpush1.msra.mxu0 0.0
        %2071 = vmatprep.subr.mxu0 0.0
        %2072 = vmatpush1.msra.mxu0 0.0
        %2073 = vmatprep.subr.mxu0 0.0
        %2074 = vmatpush1.msra.mxu0 0.0
        %2075 = vmatprep.subr.mxu0 0.0
        %2076 = vmatpush1.msra.mxu0 0.0
        %2077 = vmatprep.subr.mxu0 0.0
        %2078 = vmatpush1.msra.mxu0 0.0
        %2079 = vmatprep.subr.mxu0 0.0
        %2080 = vmatpush1.msra.mxu0 0.0
        %2081 = vmatprep.subr.mxu0 0.0
        %2082 = vmatpush1.msra.mxu0 0.0
        %2083 = vmatprep.subr.mxu0 0.0
        %2084 = vmatpush1.msra.mxu0 0.0
        %2085 = vmatprep.subr.mxu0 0.0
        %2086 = vmatpush1.msra.mxu0 0.0
        %2087 = vmatprep.mubr.f32.mxu0 0.0
        %v2088 = vand.u32 %v1682, 4294901760
        %2089 = vmatmul.mubr.f32.gmra.mrb[0].mxu0 %v2088
        %v2090 = vpop.f32.mrb[0].mxu0
        %v2091 = vadd.f32 %v2008, %v2090
        %v2092 = vpop.f32.mrb[0].mxu0
        %2093 = vdwg.mxu0
        %2094 = vmatprep.subr.mxu0 0.0
        %v2095 = vand.u32 %v169, 4294901760
        %2096 = vmatpush1.msra.mxu0 %v2095
        %2097 = vmatprep.subr.mxu0 0.0
        %v2098 = vand.u32 %v170, 4294901760
        %2099 = vmatpush1.msra.mxu0 %v2098
        %2100 = vmatprep.subr.mxu0 0.0
        %v2101 = vand.u32 %v171, 4294901760
        %2102 = vmatpush1.msra.mxu0 %v2101
        %2103 = vmatprep.subr.mxu0 0.0
        %v2104 = vand.u32 %v172, 4294901760
        %2105 = vmatpush1.msra.mxu0 %v2104
        %2106 = vmatprep.subr.mxu0 0.0
        %2107 = vmatpush1.msra.mxu0 0.0
        %2108 = vmatprep.subr.mxu0 0.0
        %2109 = vmatpush1.msra.mxu0 0.0
        %2110 = vmatprep.subr.mxu0 0.0
        %2111 = vmatpush1.msra.mxu0 0.0
        %2112 = vmatprep.subr.mxu0 0.0
        %2113 = vmatpush1.msra.mxu0 0.0
        %2114 = vmatprep.subr.mxu0 0.0
        %2115 = vmatpush1.msra.mxu0 0.0
        %2116 = vmatprep.subr.mxu0 0.0
        %2117 = vmatpush1.msra.mxu0 0.0
        %2118 = vmatprep.subr.mxu0 0.0
        %2119 = vmatpush1.msra.mxu0 0.0
        %2120 = vmatprep.subr.mxu0 0.0
        %2121 = vmatpush1.msra.mxu0 0.0
        %2122 = vmatprep.subr.mxu0 0.0
        %2123 = vmatpush1.msra.mxu0 0.0
        %2124 = vmatprep.subr.mxu0 0.0
        %2125 = vmatpush1.msra.mxu0 0.0
        %2126 = vmatprep.subr.mxu0 0.0
        %2127 = vmatpush1.msra.mxu0 0.0
        %2128 = vmatprep.subr.mxu0 0.0
        %2129 = vmatpush1.msra.mxu0 0.0
        %2130 = vmatprep.subr.mxu0 0.0
        %2131 = vmatpush1.msra.mxu0 0.0
        %2132 = vmatprep.subr.mxu0 0.0
        %2133 = vmatpush1.msra.mxu0 0.0
        %2134 = vmatprep.subr.mxu0 0.0
        %2135 = vmatpush1.msra.mxu0 0.0
        %2136 = vmatprep.subr.mxu0 0.0
        %2137 = vmatpush1.msra.mxu0 0.0
        %2138 = vmatprep.subr.mxu0 0.0
        %2139 = vmatpush1.msra.mxu0 0.0
        %2140 = vmatprep.subr.mxu0 0.0
        %2141 = vmatpush1.msra.mxu0 0.0
        %2142 = vmatprep.subr.mxu0 0.0
        %2143 = vmatpush1.msra.mxu0 0.0
        %2144 = vmatprep.subr.mxu0 0.0
        %2145 = vmatpush1.msra.mxu0 0.0
        %2146 = vmatprep.subr.mxu0 0.0
        %2147 = vmatpush1.msra.mxu0 0.0
        %2148 = vmatprep.subr.mxu0 0.0
        %2149 = vmatpush1.msra.mxu0 0.0
        %2150 = vmatprep.subr.mxu0 0.0
        %2151 = vmatpush1.msra.mxu0 0.0
        %2152 = vmatprep.subr.mxu0 0.0
        %2153 = vmatpush1.msra.mxu0 0.0
        %2154 = vmatprep.subr.mxu0 0.0
        %2155 = vmatpush1.msra.mxu0 0.0
        %2156 = vmatprep.subr.mxu0 0.0
        %2157 = vmatpush1.msra.mxu0 0.0
        %2158 = vmatprep.subr.mxu0 0.0
        %2159 = vmatpush1.msra.mxu0 0.0
        %2160 = vmatprep.subr.mxu0 0.0
        %2161 = vmatpush1.msra.mxu0 0.0
        %2162 = vmatprep.mubr.f32.mxu0 0.0
        %v2163 = vand.u32 %v1682, 4294901760
        %2164 = vmatmul.mubr.f32.gmra.mrb[0].mxu0 %v2163
        %v2165 = vpop.f32.mrb[0].mxu0
        %v2166 = vadd.f32 %v2091, %v2165
        %v2167 = vpop.f32.mrb[0].mxu0
        %2168 = vdwg.mxu0
        %2169 = vrot.lane.b32.xlu0 %v1652, 120
        %v2170 = vpop.permute.xlu0 %2169
        %v2172 = vadd.f32 %v1652, %v2170
        %v2173 = vmul.f32 %v2172, 0.59375
        %2175 = vrot.lane.b32.xlu0 %v2166, 8
        %v2176 = vpop.permute.xlu0 %2175
        %v2178 = vadd.f32 %v1150, %v2176
        %v2179 = vmul.f32 %v2178, -0.09375
        %2181 = vrot.lane.b32.xlu0 %v2179, 120
        %v2182 = vpop.permute.xlu0 %2181
        %v2184 = vadd.f32 %v2173, %v2182
        %2186 = vrot.lane.b32.xlu0 %v2184, 16
        %v2187 = vpop.permute.xlu0 %2186
        %vm2189 = vcmask 191616
        %2190 = vst.msk [vmem:[#allocation2] sm:$0xf] %vm2189, %v2187
        %v2191 = vld [vmem:[%s168 + $0x4] sm:$0xf]
        %v2193 = vsel %vm175, %v2191, 0
        %2195 = vmatprep.subr.mxu0 0.0
        %v2196 = vand.u32 %v169, 4294901760
        %2197 = vmatpush1.msra.mxu0 %v2196
        %2198 = vmatprep.subr.mxu0 0.0
        %v2199 = vand.u32 %v170, 4294901760
        %2200 = vmatpush1.msra.mxu0 %v2199
        %2201 = vmatprep.subr.mxu0 0.0
        %v2202 = vand.u32 %v171, 4294901760
        %2203 = vmatpush1.msra.mxu0 %v2202
        %2204 = vmatprep.subr.mxu0 0.0
        %v2205 = vand.u32 %v172, 4294901760
        %2206 = vmatpush1.msra.mxu0 %v2205
        %2207 = vmatprep.subr.mxu0 0.0
        %2208 = vmatpush1.msra.mxu0 0.0
        %2209 = vmatprep.subr.mxu0 0.0
        %2210 = vmatpush1.msra.mxu0 0.0
        %2211 = vmatprep.subr.mxu0 0.0
        %2212 = vmatpush1.msra.mxu0 0.0
        %2213 = vmatprep.subr.mxu0 0.0
        %2214 = vmatpush1.msra.mxu0 0.0
        %2215 = vmatprep.subr.mxu0 0.0
        %2216 = vmatpush1.msra.mxu0 0.0
        %2217 = vmatprep.subr.mxu0 0.0
        %2218 = vmatpush1.msra.mxu0 0.0
        %2219 = vmatprep.subr.mxu0 0.0
        %2220 = vmatpush1.msra.mxu0 0.0
        %2221 = vmatprep.subr.mxu0 0.0
        %2222 = vmatpush1.msra.mxu0 0.0
        %2223 = vmatprep.subr.mxu0 0.0
        %2224 = vmatpush1.msra.mxu0 0.0
        %2225 = vmatprep.subr.mxu0 0.0
        %2226 = vmatpush1.msra.mxu0 0.0
        %2227 = vmatprep.subr.mxu0 0.0
        %2228 = vmatpush1.msra.mxu0 0.0
        %2229 = vmatprep.subr.mxu0 0.0
        %2230 = vmatpush1.msra.mxu0 0.0
        %2231 = vmatprep.subr.mxu0 0.0
        %2232 = vmatpush1.msra.mxu0 0.0
        %2233 = vmatprep.subr.mxu0 0.0
        %2234 = vmatpush1.msra.mxu0 0.0
        %2235 = vmatprep.subr.mxu0 0.0
        %2236 = vmatpush1.msra.mxu0 0.0
        %2237 = vmatprep.subr.mxu0 0.0
        %2238 = vmatpush1.msra.mxu0 0.0
        %2239 = vmatprep.subr.mxu0 0.0
        %2240 = vmatpush1.msra.mxu0 0.0
        %2241 = vmatprep.subr.mxu0 0.0
        %2242 = vmatpush1.msra.mxu0 0.0
        %2243 = vmatprep.subr.mxu0 0.0
        %2244 = vmatpush1.msra.mxu0 0.0
        %2245 = vmatprep.subr.mxu0 0.0
        %2246 = vmatpush1.msra.mxu0 0.0
        %2247 = vmatprep.subr.mxu0 0.0
        %2248 = vmatpush1.msra.mxu0 0.0
        %2249 = vmatprep.subr.mxu0 0.0
        %2250 = vmatpush1.msra.mxu0 0.0
        %2251 = vmatprep.subr.mxu0 0.0
        %2252 = vmatpush1.msra.mxu0 0.0
        %2253 = vmatprep.subr.mxu0 0.0
        %2254 = vmatpush1.msra.mxu0 0.0
        %2255 = vmatprep.subr.mxu0 0.0
        %2256 = vmatpush1.msra.mxu0 0.0
        %2257 = vmatprep.subr.mxu0 0.0
        %2258 = vmatpush1.msra.mxu0 0.0
        %2259 = vmatprep.subr.mxu0 0.0
        %2260 = vmatpush1.msra.mxu0 0.0
        %2261 = vmatprep.subr.mxu0 0.0
        %2262 = vmatpush1.msra.mxu0 0.0
        %2263 = vmatprep.mubr.f32.mxu0 0.0
        %v2264 = vand.u32 %v2193, 4294901760
        %v2265 = vsub.f32 %v2193, %v2264
        %v2266 = vand.u32 %v2265, 4294901760
        %v2267 = vsub.f32 %v2265, %v2266
        %v2268 = vand.u32 %v2267, 4294901760
        %2269 = vmatmul.mubr.f32.gmra.mrb[0].mxu0 %v2268
        %v2270 = vpop.f32.mrb[0].mxu0
        %v2271 = vadd.f32 0.0, %v2270
        %v2272 = vpop.f32.mrb[0].mxu0
        %2273 = vdwg.mxu0
        %2274 = vmatprep.subr.mxu0 0.0
        %v2275 = vand.u32 %v169, 4294901760
        %v2276 = vsub.f32 %v169, %v2275
        %v2277 = vand.u32 %v2276, 4294901760
        %v2278 = vsub.f32 %v2276, %v2277
        %v2279 = vand.u32 %v2278, 4294901760
        %2280 = vmatpush1.msra.mxu0 %v2279
        %2281 = vmatprep.subr.mxu0 0.0
        %v2282 = vand.u32 %v170, 4294901760
        %v2283 = vsub.f32 %v170, %v2282
        %v2284 = vand.u32 %v2283, 4294901760
        %v2285 = vsub.f32 %v2283, %v2284
        %v2286 = vand.u32 %v2285, 4294901760
        %2287 = vmatpush1.msra.mxu0 %v2286
        %2288 = vmatprep.subr.mxu0 0.0
        %v2289 = vand.u32 %v171, 4294901760
        %v2290 = vsub.f32 %v171, %v2289
        %v2291 = vand.u32 %v2290, 4294901760
        %v2292 = vsub.f32 %v2290, %v2291
        %v2293 = vand.u32 %v2292, 4294901760
        %2294 = vmatpush1.msra.mxu0 %v2293
        %2295 = vmatprep.subr.mxu0 0.0
        %v2296 = vand.u32 %v172, 4294901760
        %v2297 = vsub.f32 %v172, %v2296
        %v2298 = vand.u32 %v2297, 4294901760
        %v2299 = vsub.f32 %v2297, %v2298
        %v2300 = vand.u32 %v2299, 4294901760
        %2301 = vmatpush1.msra.mxu0 %v2300
        %2302 = vmatprep.subr.mxu0 0.0
        %2303 = vmatpush1.msra.mxu0 0.0
        %2304 = vmatprep.subr.mxu0 0.0
        %2305 = vmatpush1.msra.mxu0 0.0
        %2306 = vmatprep.subr.mxu0 0.0
        %2307 = vmatpush1.msra.mxu0 0.0
        %2308 = vmatprep.subr.mxu0 0.0
        %2309 = vmatpush1.msra.mxu0 0.0
        %2310 = vmatprep.subr.mxu0 0.0
        %2311 = vmatpush1.msra.mxu0 0.0
        %2312 = vmatprep.subr.mxu0 0.0
        %2313 = vmatpush1.msra.mxu0 0.0
        %2314 = vmatprep.subr.mxu0 0.0
        %2315 = vmatpush1.msra.mxu0 0.0
        %2316 = vmatprep.subr.mxu0 0.0
        %2317 = vmatpush1.msra.mxu0 0.0
        %2318 = vmatprep.subr.mxu0 0.0
        %2319 = vmatpush1.msra.mxu0 0.0
        %2320 = vmatprep.subr.mxu0 0.0
        %2321 = vmatpush1.msra.mxu0 0.0
        %2322 = vmatprep.subr.mxu0 0.0
        %2323 = vmatpush1.msra.mxu0 0.0
        %2324 = vmatprep.subr.mxu0 0.0
        %2325 = vmatpush1.msra.mxu0 0.0
        %2326 = vmatprep.subr.mxu0 0.0
        %2327 = vmatpush1.msra.mxu0 0.0
        %2328 = vmatprep.subr.mxu0 0.0
        %2329 = vmatpush1.msra.mxu0 0.0
        %2330 = vmatprep.subr.mxu0 0.0
        %2331 = vmatpush1.msra.mxu0 0.0
        %2332 = vmatprep.subr.mxu0 0.0
        %2333 = vmatpush1.msra.mxu0 0.0
        %2334 = vmatprep.subr.mxu0 0.0
        %2335 = vmatpush1.msra.mxu0 0.0
        %2336 = vmatprep.subr.mxu0 0.0
        %2337 = vmatpush1.msra.mxu0 0.0
        %2338 = vmatprep.subr.mxu0 0.0
        %2339 = vmatpush1.msra.mxu0 0.0
        %2340 = vmatprep.subr.mxu0 0.0
        %2341 = vmatpush1.msra.mxu0 0.0
        %2342 = vmatprep.subr.mxu0 0.0
        %2343 = vmatpush1.msra.mxu0 0.0
        %2344 = vmatprep.subr.mxu0 0.0
        %2345 = vmatpush1.msra.mxu0 0.0
        %2346 = vmatprep.subr.mxu0 0.0
        %2347 = vmatpush1.msra.mxu0 0.0
        %2348 = vmatprep.subr.mxu0 0.0
        %2349 = vmatpush1.msra.mxu0 0.0
        %2350 = vmatprep.subr.mxu0 0.0
        %2351 = vmatpush1.msra.mxu0 0.0
        %2352 = vmatprep.subr.mxu0 0.0
        %2353 = vmatpush1.msra.mxu0 0.0
        %2354 = vmatprep.subr.mxu0 0.0
        %2355 = vmatpush1.msra.mxu0 0.0
        %2356 = vmatprep.subr.mxu0 0.0
        %2357 = vmatpush1.msra.mxu0 0.0
        %2358 = vmatprep.mubr.f32.mxu0 0.0
        %v2359 = vand.u32 %v2193, 4294901760
        %2360 = vmatmul.mubr.f32.gmra.mrb[0].mxu0 %v2359
        %v2361 = vpop.f32.mrb[0].mxu0
        %v2362 = vadd.f32 %v2271, %v2361
        %v2363 = vpop.f32.mrb[0].mxu0
        %2364 = vdwg.mxu0
        %2365 = vmatprep.subr.mxu0 0.0
        %v2366 = vand.u32 %v169, 4294901760
        %v2367 = vsub.f32 %v169, %v2366
        %2368 = vmatpush1.msra.mxu0 %v2367
        %2369 = vmatprep.subr.mxu0 0.0
        %v2370 = vand.u32 %v170, 4294901760
        %v2371 = vsub.f32 %v170, %v2370
        %2372 = vmatpush1.msra.mxu0 %v2371
        %2373 = vmatprep.subr.mxu0 0.0
        %v2374 = vand.u32 %v171, 4294901760
        %v2375 = vsub.f32 %v171, %v2374
        %2376 = vmatpush1.msra.mxu0 %v2375
        %2377 = vmatprep.subr.mxu0 0.0
        %v2378 = vand.u32 %v172, 4294901760
        %v2379 = vsub.f32 %v172, %v2378
        %2380 = vmatpush1.msra.mxu0 %v2379
        %2381 = vmatprep.subr.mxu0 0.0
        %2382 = vmatpush1.msra.mxu0 0.0
        %2383 = vmatprep.subr.mxu0 0.0
        %2384 = vmatpush1.msra.mxu0 0.0
        %2385 = vmatprep.subr.mxu0 0.0
        %2386 = vmatpush1.msra.mxu0 0.0
        %2387 = vmatprep.subr.mxu0 0.0
        %2388 = vmatpush1.msra.mxu0 0.0
        %2389 = vmatprep.subr.mxu0 0.0
        %2390 = vmatpush1.msra.mxu0 0.0
        %2391 = vmatprep.subr.mxu0 0.0
        %2392 = vmatpush1.msra.mxu0 0.0
        %2393 = vmatprep.subr.mxu0 0.0
        %2394 = vmatpush1.msra.mxu0 0.0
        %2395 = vmatprep.subr.mxu0 0.0
        %2396 = vmatpush1.msra.mxu0 0.0
        %2397 = vmatprep.subr.mxu0 0.0
        %2398 = vmatpush1.msra.mxu0 0.0
        %2399 = vmatprep.subr.mxu0 0.0
        %2400 = vmatpush1.msra.mxu0 0.0
        %2401 = vmatprep.subr.mxu0 0.0
        %2402 = vmatpush1.msra.mxu0 0.0
        %2403 = vmatprep.subr.mxu0 0.0
        %2404 = vmatpush1.msra.mxu0 0.0
        %2405 = vmatprep.subr.mxu0 0.0
        %2406 = vmatpush1.msra.mxu0 0.0
        %2407 = vmatprep.subr.mxu0 0.0
        %2408 = vmatpush1.msra.mxu0 0.0
        %2409 = vmatprep.subr.mxu0 0.0
        %2410 = vmatpush1.msra.mxu0 0.0
        %2411 = vmatprep.subr.mxu0 0.0
        %2412 = vmatpush1.msra.mxu0 0.0
        %2413 = vmatprep.subr.mxu0 0.0
        %2414 = vmatpush1.msra.mxu0 0.0
        %2415 = vmatprep.subr.mxu0 0.0
        %2416 = vmatpush1.msra.mxu0 0.0
        %2417 = vmatprep.subr.mxu0 0.0
        %2418 = vmatpush1.msra.mxu0 0.0
        %2419 = vmatprep.subr.mxu0 0.0
        %2420 = vmatpush1.msra.mxu0 0.0
        %2421 = vmatprep.subr.mxu0 0.0
        %2422 = vmatpush1.msra.mxu0 0.0
        %2423 = vmatprep.subr.mxu0 0.0
        %2424 = vmatpush1.msra.mxu0 0.0
        %2425 = vmatprep.subr.mxu0 0.0
        %2426 = vmatpush1.msra.mxu0 0.0
        %2427 = vmatprep.subr.mxu0 0.0
        %2428 = vmatpush1.msra.mxu0 0.0
        %2429 = vmatprep.subr.mxu0 0.0
        %2430 = vmatpush1.msra.mxu0 0.0
        %2431 = vmatprep.subr.mxu0 0.0
        %2432 = vmatpush1.msra.mxu0 0.0
        %2433 = vmatprep.subr.mxu0 0.0
        %2434 = vmatpush1.msra.mxu0 0.0
        %2435 = vmatprep.subr.mxu0 0.0
        %2436 = vmatpush1.msra.mxu0 0.0
        %2437 = vmatprep.mubr.f32.mxu0 0.0
        %v2438 = vand.u32 %v2193, 4294901760
        %v2439 = vsub.f32 %v2193, %v2438
        %2440 = vmatmul.mubr.f32.gmra.mrb[0].mxu0 %v2439
        %v2441 = vpop.f32.mrb[0].mxu0
        %v2442 = vadd.f32 %v2362, %v2441
        %v2443 = vpop.f32.mrb[0].mxu0
        %2444 = vdwg.mxu0
        %2445 = vmatprep.subr.mxu0 0.0
        %v2446 = vand.u32 %v169, 4294901760
        %2447 = vmatpush1.msra.mxu0 %v2446
        %2448 = vmatprep.subr.mxu0 0.0
        %v2449 = vand.u32 %v170, 4294901760
        %2450 = vmatpush1.msra.mxu0 %v2449
        %2451 = vmatprep.subr.mxu0 0.0
        %v2452 = vand.u32 %v171, 4294901760
        %2453 = vmatpush1.msra.mxu0 %v2452
        %2454 = vmatprep.subr.mxu0 0.0
        %v2455 = vand.u32 %v172, 4294901760
        %2456 = vmatpush1.msra.mxu0 %v2455
        %2457 = vmatprep.subr.mxu0 0.0
        %2458 = vmatpush1.msra.mxu0 0.0
        %2459 = vmatprep.subr.mxu0 0.0
        %2460 = vmatpush1.msra.mxu0 0.0
        %2461 = vmatprep.subr.mxu0 0.0
        %2462 = vmatpush1.msra.mxu0 0.0
        %2463 = vmatprep.subr.mxu0 0.0
        %2464 = vmatpush1.msra.mxu0 0.0
        %2465 = vmatprep.subr.mxu0 0.0
        %2466 = vmatpush1.msra.mxu0 0.0
        %2467 = vmatprep.subr.mxu0 0.0
        %2468 = vmatpush1.msra.mxu0 0.0
        %2469 = vmatprep.subr.mxu0 0.0
        %2470 = vmatpush1.msra.mxu0 0.0
        %2471 = vmatprep.subr.mxu0 0.0
        %2472 = vmatpush1.msra.mxu0 0.0
        %2473 = vmatprep.subr.mxu0 0.0
        %2474 = vmatpush1.msra.mxu0 0.0
        %2475 = vmatprep.subr.mxu0 0.0
        %2476 = vmatpush1.msra.mxu0 0.0
        %2477 = vmatprep.subr.mxu0 0.0
        %2478 = vmatpush1.msra.mxu0 0.0
        %2479 = vmatprep.subr.mxu0 0.0
        %2480 = vmatpush1.msra.mxu0 0.0
        %2481 = vmatprep.subr.mxu0 0.0
        %2482 = vmatpush1.msra.mxu0 0.0
        %2483 = vmatprep.subr.mxu0 0.0
        %2484 = vmatpush1.msra.mxu0 0.0
        %2485 = vmatprep.subr.mxu0 0.0
        %2486 = vmatpush1.msra.mxu0 0.0
        %2487 = vmatprep.subr.mxu0 0.0
        %2488 = vmatpush1.msra.mxu0 0.0
        %2489 = vmatprep.subr.mxu0 0.0
        %2490 = vmatpush1.msra.mxu0 0.0
        %2491 = vmatprep.subr.mxu0 0.0
        %2492 = vmatpush1.msra.mxu0 0.0
        %2493 = vmatprep.subr.mxu0 0.0
        %2494 = vmatpush1.msra.mxu0 0.0
        %2495 = vmatprep.subr.mxu0 0.0
        %2496 = vmatpush1.msra.mxu0 0.0
        %2497 = vmatprep.subr.mxu0 0.0
        %2498 = vmatpush1.msra.mxu0 0.0
        %2499 = vmatprep.subr.mxu0 0.0
        %2500 = vmatpush1.msra.mxu0 0.0
        %2501 = vmatprep.subr.mxu0 0.0
        %2502 = vmatpush1.msra.mxu0 0.0
        %2503 = vmatprep.subr.mxu0 0.0
        %2504 = vmatpush1.msra.mxu0 0.0
        %2505 = vmatprep.subr.mxu0 0.0
        %2506 = vmatpush1.msra.mxu0 0.0
        %2507 = vmatprep.subr.mxu0 0.0
        %2508 = vmatpush1.msra.mxu0 0.0
        %2509 = vmatprep.subr.mxu0 0.0
        %2510 = vmatpush1.msra.mxu0 0.0
        %2511 = vmatprep.subr.mxu0 0.0
        %2512 = vmatpush1.msra.mxu0 0.0
        %2513 = vmatprep.mubr.f32.mxu0 0.0
        %v2514 = vand.u32 %v2193, 4294901760
        %v2515 = vsub.f32 %v2193, %v2514
        %v2516 = vand.u32 %v2515, 4294901760
        %2517 = vmatmul.mubr.f32.gmra.mrb[0].mxu0 %v2516
        %v2518 = vpop.f32.mrb[0].mxu0
        %v2519 = vadd.f32 %v2442, %v2518
        %v2520 = vpop.f32.mrb[0].mxu0
        %2521 = vdwg.mxu0
        %2522 = vmatprep.subr.mxu0 0.0
        %v2523 = vand.u32 %v169, 4294901760
        %v2524 = vsub.f32 %v169, %v2523
        %v2525 = vand.u32 %v2524, 4294901760
        %2526 = vmatpush1.msra.mxu0 %v2525
        %2527 = vmatprep.subr.mxu0 0.0
        %v2528 = vand.u32 %v170, 4294901760
        %v2529 = vsub.f32 %v170, %v2528
        %v2530 = vand.u32 %v2529, 4294901760
        %2531 = vmatpush1.msra.mxu0 %v2530
        %2532 = vmatprep.subr.mxu0 0.0
        %v2533 = vand.u32 %v171, 4294901760
        %v2534 = vsub.f32 %v171, %v2533
        %v2535 = vand.u32 %v2534, 4294901760
        %2536 = vmatpush1.msra.mxu0 %v2535
        %2537 = vmatprep.subr.mxu0 0.0
        %v2538 = vand.u32 %v172, 4294901760
        %v2539 = vsub.f32 %v172, %v2538
        %v2540 = vand.u32 %v2539, 4294901760
        %2541 = vmatpush1.msra.mxu0 %v2540
        %2542 = vmatprep.subr.mxu0 0.0
        %2543 = vmatpush1.msra.mxu0 0.0
        %2544 = vmatprep.subr.mxu0 0.0
        %2545 = vmatpush1.msra.mxu0 0.0
        %2546 = vmatprep.subr.mxu0 0.0
        %2547 = vmatpush1.msra.mxu0 0.0
        %2548 = vmatprep.subr.mxu0 0.0
        %2549 = vmatpush1.msra.mxu0 0.0
        %2550 = vmatprep.subr.mxu0 0.0
        %2551 = vmatpush1.msra.mxu0 0.0
        %2552 = vmatprep.subr.mxu0 0.0
        %2553 = vmatpush1.msra.mxu0 0.0
        %2554 = vmatprep.subr.mxu0 0.0
        %2555 = vmatpush1.msra.mxu0 0.0
        %2556 = vmatprep.subr.mxu0 0.0
        %2557 = vmatpush1.msra.mxu0 0.0
        %2558 = vmatprep.subr.mxu0 0.0
        %2559 = vmatpush1.msra.mxu0 0.0
        %2560 = vmatprep.subr.mxu0 0.0
        %2561 = vmatpush1.msra.mxu0 0.0
        %2562 = vmatprep.subr.mxu0 0.0
        %2563 = vmatpush1.msra.mxu0 0.0
        %2564 = vmatprep.subr.mxu0 0.0
        %2565 = vmatpush1.msra.mxu0 0.0
        %2566 = vmatprep.subr.mxu0 0.0
        %2567 = vmatpush1.msra.mxu0 0.0
        %2568 = vmatprep.subr.mxu0 0.0
        %2569 = vmatpush1.msra.mxu0 0.0
        %2570 = vmatprep.subr.mxu0 0.0
        %2571 = vmatpush1.msra.mxu0 0.0
        %2572 = vmatprep.subr.mxu0 0.0
        %2573 = vmatpush1.msra.mxu0 0.0
        %2574 = vmatprep.subr.mxu0 0.0
        %2575 = vmatpush1.msra.mxu0 0.0
        %2576 = vmatprep.subr.mxu0 0.0
        %2577 = vmatpush1.msra.mxu0 0.0
        %2578 = vmatprep.subr.mxu0 0.0
        %2579 = vmatpush1.msra.mxu0 0.0
        %2580 = vmatprep.subr.mxu0 0.0
        %2581 = vmatpush1.msra.mxu0 0.0
        %2582 = vmatprep.subr.mxu0 0.0
        %2583 = vmatpush1.msra.mxu0 0.0
        %2584 = vmatprep.subr.mxu0 0.0
        %2585 = vmatpush1.msra.mxu0 0.0
        %2586 = vmatprep.subr.mxu0 0.0
        %2587 = vmatpush1.msra.mxu0 0.0
        %2588 = vmatprep.subr.mxu0 0.0
        %2589 = vmatpush1.msra.mxu0 0.0
        %2590 = vmatprep.subr.mxu0 0.0
        %2591 = vmatpush1.msra.mxu0 0.0
        %2592 = vmatprep.subr.mxu0 0.0
        %2593 = vmatpush1.msra.mxu0 0.0
        %2594 = vmatprep.subr.mxu0 0.0
        %2595 = vmatpush1.msra.mxu0 0.0
        %2596 = vmatprep.subr.mxu0 0.0
        %2597 = vmatpush1.msra.mxu0 0.0
        %2598 = vmatprep.mubr.f32.mxu0 0.0
        %v2599 = vand.u32 %v2193, 4294901760
        %2600 = vmatmul.mubr.f32.gmra.mrb[0].mxu0 %v2599
        %v2601 = vpop.f32.mrb[0].mxu0
        %v2602 = vadd.f32 %v2519, %v2601
        %v2603 = vpop.f32.mrb[0].mxu0
        %2604 = vdwg.mxu0
        %2605 = vmatprep.subr.mxu0 0.0
        %v2606 = vand.u32 %v169, 4294901760
        %2607 = vmatpush1.msra.mxu0 %v2606
        %2608 = vmatprep.subr.mxu0 0.0
        %v2609 = vand.u32 %v170, 4294901760
        %2610 = vmatpush1.msra.mxu0 %v2609
        %2611 = vmatprep.subr.mxu0 0.0
        %v2612 = vand.u32 %v171, 4294901760
        %2613 = vmatpush1.msra.mxu0 %v2612
        %2614 = vmatprep.subr.mxu0 0.0
        %v2615 = vand.u32 %v172, 4294901760
        %2616 = vmatpush1.msra.mxu0 %v2615
        %2617 = vmatprep.subr.mxu0 0.0
        %2618 = vmatpush1.msra.mxu0 0.0
        %2619 = vmatprep.subr.mxu0 0.0
        %2620 = vmatpush1.msra.mxu0 0.0
        %2621 = vmatprep.subr.mxu0 0.0
        %2622 = vmatpush1.msra.mxu0 0.0
        %2623 = vmatprep.subr.mxu0 0.0
        %2624 = vmatpush1.msra.mxu0 0.0
        %2625 = vmatprep.subr.mxu0 0.0
        %2626 = vmatpush1.msra.mxu0 0.0
        %2627 = vmatprep.subr.mxu0 0.0
        %2628 = vmatpush1.msra.mxu0 0.0
        %2629 = vmatprep.subr.mxu0 0.0
        %2630 = vmatpush1.msra.mxu0 0.0
        %2631 = vmatprep.subr.mxu0 0.0
        %2632 = vmatpush1.msra.mxu0 0.0
        %2633 = vmatprep.subr.mxu0 0.0
        %2634 = vmatpush1.msra.mxu0 0.0
        %2635 = vmatprep.subr.mxu0 0.0
        %2636 = vmatpush1.msra.mxu0 0.0
        %2637 = vmatprep.subr.mxu0 0.0
        %2638 = vmatpush1.msra.mxu0 0.0
        %2639 = vmatprep.subr.mxu0 0.0
        %2640 = vmatpush1.msra.mxu0 0.0
        %2641 = vmatprep.subr.mxu0 0.0
        %2642 = vmatpush1.msra.mxu0 0.0
        %2643 = vmatprep.subr.mxu0 0.0
        %2644 = vmatpush1.msra.mxu0 0.0
        %2645 = vmatprep.subr.mxu0 0.0
        %2646 = vmatpush1.msra.mxu0 0.0
        %2647 = vmatprep.subr.mxu0 0.0
        %2648 = vmatpush1.msra.mxu0 0.0
        %2649 = vmatprep.subr.mxu0 0.0
        %2650 = vmatpush1.msra.mxu0 0.0
        %2651 = vmatprep.subr.mxu0 0.0
        %2652 = vmatpush1.msra.mxu0 0.0
        %2653 = vmatprep.subr.mxu0 0.0
        %2654 = vmatpush1.msra.mxu0 0.0
        %2655 = vmatprep.subr.mxu0 0.0
        %2656 = vmatpush1.msra.mxu0 0.0
        %2657 = vmatprep.subr.mxu0 0.0
        %2658 = vmatpush1.msra.mxu0 0.0
        %2659 = vmatprep.subr.mxu0 0.0
        %2660 = vmatpush1.msra.mxu0 0.0
        %2661 = vmatprep.subr.mxu0 0.0
        %2662 = vmatpush1.msra.mxu0 0.0
        %2663 = vmatprep.subr.mxu0 0.0
        %2664 = vmatpush1.msra.mxu0 0.0
        %2665 = vmatprep.subr.mxu0 0.0
        %2666 = vmatpush1.msra.mxu0 0.0
        %2667 = vmatprep.subr.mxu0 0.0
        %2668 = vmatpush1.msra.mxu0 0.0
        %2669 = vmatprep.subr.mxu0 0.0
        %2670 = vmatpush1.msra.mxu0 0.0
        %2671 = vmatprep.subr.mxu0 0.0
        %2672 = vmatpush1.msra.mxu0 0.0
        %2673 = vmatprep.mubr.f32.mxu0 0.0
        %v2674 = vand.u32 %v2193, 4294901760
        %2675 = vmatmul.mubr.f32.gmra.mrb[0].mxu0 %v2674
        %v2676 = vpop.f32.mrb[0].mxu0
        %v2677 = vadd.f32 %v2602, %v2676
        %v2678 = vpop.f32.mrb[0].mxu0
        %2679 = vdwg.mxu0
        %2680 = vrot.lane.b32.xlu0 %v2166, 120
        %v2681 = vpop.permute.xlu0 %2680
        %v2683 = vadd.f32 %v2166, %v2681
        %v2684 = vmul.f32 %v2683, 0.59375
        %2686 = vrot.lane.b32.xlu0 %v2677, 8
        %v2687 = vpop.permute.xlu0 %2686
        %v2689 = vadd.f32 %v1652, %v2687
        %v2690 = vmul.f32 %v2689, -0.09375
        %2692 = vrot.lane.b32.xlu0 %v2690, 120
        %v2693 = vpop.permute.xlu0 %2692
        %v2695 = vadd.f32 %v2684, %v2693
        %2697 = vrot.lane.b32.xlu0 %v2695, 24
        %v2698 = vpop.permute.xlu0 %2697
        %vm2700 = vcmask 257216
        %2701 = vst.msk [vmem:[#allocation2] sm:$0xf] %vm2700, %v2698
        %v2702 = vld [vmem:[%s168 + $0x4] sm:$0xf]
        %2704 = vrot.lane.b32.xlu0 %v2702, 96
        %v2705 = vpop.permute.xlu0 %2704
        %v2706 = vsel %vm175, %v2705, 0
        %2708 = vmatprep.subr.mxu0 0.0
        %v2709 = vand.u32 %v169, 4294901760
        %2710 = vmatpush1.msra.mxu0 %v2709
        %2711 = vmatprep.subr.mxu0 0.0
        %v2712 = vand.u32 %v170, 4294901760
        %2713 = vmatpush1.msra.mxu0 %v2712
        %2714 = vmatprep.subr.mxu0 0.0
        %v2715 = vand.u32 %v171, 4294901760
        %2716 = vmatpush1.msra.mxu0 %v2715
        %2717 = vmatprep.subr.mxu0 0.0
        %v2718 = vand.u32 %v172, 4294901760
        %2719 = vmatpush1.msra.mxu0 %v2718
        %2720 = vmatprep.subr.mxu0 0.0
        %2721 = vmatpush1.msra.mxu0 0.0
        %2722 = vmatprep.subr.mxu0 0.0
        %2723 = vmatpush1.msra.mxu0 0.0
        %2724 = vmatprep.subr.mxu0 0.0
        %2725 = vmatpush1.msra.mxu0 0.0
        %2726 = vmatprep.subr.mxu0 0.0
        %2727 = vmatpush1.msra.mxu0 0.0
        %2728 = vmatprep.subr.mxu0 0.0
        %2729 = vmatpush1.msra.mxu0 0.0
        %2730 = vmatprep.subr.mxu0 0.0
        %2731 = vmatpush1.msra.mxu0 0.0
        %2732 = vmatprep.subr.mxu0 0.0
        %2733 = vmatpush1.msra.mxu0 0.0
        %2734 = vmatprep.subr.mxu0 0.0
        %2735 = vmatpush1.msra.mxu0 0.0
        %2736 = vmatprep.subr.mxu0 0.0
        %2737 = vmatpush1.msra.mxu0 0.0
        %2738 = vmatprep.subr.mxu0 0.0
        %2739 = vmatpush1.msra.mxu0 0.0
        %2740 = vmatprep.subr.mxu0 0.0
        %2741 = vmatpush1.msra.mxu0 0.0
        %2742 = vmatprep.subr.mxu0 0.0
        %2743 = vmatpush1.msra.mxu0 0.0
        %2744 = vmatprep.subr.mxu0 0.0
        %2745 = vmatpush1.msra.mxu0 0.0
        %2746 = vmatprep.subr.mxu0 0.0
        %2747 = vmatpush1.msra.mxu0 0.0
        %2748 = vmatprep.subr.mxu0 0.0
        %2749 = vmatpush1.msra.mxu0 0.0
        %2750 = vmatprep.subr.mxu0 0.0
        %2751 = vmatpush1.msra.mxu0 0.0
        %2752 = vmatprep.subr.mxu0 0.0
        %2753 = vmatpush1.msra.mxu0 0.0
        %2754 = vmatprep.subr.mxu0 0.0
        %2755 = vmatpush1.msra.mxu0 0.0
        %2756 = vmatprep.subr.mxu0 0.0
        %2757 = vmatpush1.msra.mxu0 0.0
        %2758 = vmatprep.subr.mxu0 0.0
        %2759 = vmatpush1.msra.mxu0 0.0
        %2760 = vmatprep.subr.mxu0 0.0
        %2761 = vmatpush1.msra.mxu0 0.0
        %2762 = vmatprep.subr.mxu0 0.0
        %2763 = vmatpush1.msra.mxu0 0.0
        %2764 = vmatprep.subr.mxu0 0.0
        %2765 = vmatpush1.msra.mxu0 0.0
        %2766 = vmatprep.subr.mxu0 0.0
        %2767 = vmatpush1.msra.mxu0 0.0
        %2768 = vmatprep.subr.mxu0 0.0
        %2769 = vmatpush1.msra.mxu0 0.0
        %2770 = vmatprep.subr.mxu0 0.0
        %2771 = vmatpush1.msra.mxu0 0.0
        %2772 = vmatprep.subr.mxu0 0.0
        %2773 = vmatpush1.msra.mxu0 0.0
        %2774 = vmatprep.subr.mxu0 0.0
        %2775 = vmatpush1.msra.mxu0 0.0
        %2776 = vmatprep.mubr.f32.mxu0 0.0
        %v2777 = vand.u32 %v2706, 4294901760
        %v2778 = vsub.f32 %v2706, %v2777
        %v2779 = vand.u32 %v2778, 4294901760
        %v2780 = vsub.f32 %v2778, %v2779
        %v2781 = vand.u32 %v2780, 4294901760
        %2782 = vmatmul.mubr.f32.gmra.mrb[0].mxu0 %v2781
        %v2783 = vpop.f32.mrb[0].mxu0
        %v2784 = vadd.f32 0.0, %v2783
        %v2785 = vpop.f32.mrb[0].mxu0
        %2786 = vdwg.mxu0
        %2787 = vmatprep.subr.mxu0 0.0
        %v2788 = vand.u32 %v169, 4294901760
        %v2789 = vsub.f32 %v169, %v2788
        %v2790 = vand.u32 %v2789, 4294901760
        %v2791 = vsub.f32 %v2789, %v2790
        %v2792 = vand.u32 %v2791, 4294901760
        %2793 = vmatpush1.msra.mxu0 %v2792
        %2794 = vmatprep.subr.mxu0 0.0
        %v2795 = vand.u32 %v170, 4294901760
        %v2796 = vsub.f32 %v170, %v2795
        %v2797 = vand.u32 %v2796, 4294901760
        %v2798 = vsub.f32 %v2796, %v2797
        %v2799 = vand.u32 %v2798, 4294901760
        %2800 = vmatpush1.msra.mxu0 %v2799
        %2801 = vmatprep.subr.mxu0 0.0
        %v2802 = vand.u32 %v171, 4294901760
        %v2803 = vsub.f32 %v171, %v2802
        %v2804 = vand.u32 %v2803, 4294901760
        %v2805 = vsub.f32 %v2803, %v2804
        %v2806 = vand.u32 %v2805, 4294901760
        %2807 = vmatpush1.msra.mxu0 %v2806
        %2808 = vmatprep.subr.mxu0 0.0
        %v2809 = vand.u32 %v172, 4294901760
        %v2810 = vsub.f32 %v172, %v2809
        %v2811 = vand.u32 %v2810, 4294901760
        %v2812 = vsub.f32 %v2810, %v2811
        %v2813 = vand.u32 %v2812, 4294901760
        %2814 = vmatpush1.msra.mxu0 %v2813
        %2815 = vmatprep.subr.mxu0 0.0
        %2816 = vmatpush1.msra.mxu0 0.0
        %2817 = vmatprep.subr.mxu0 0.0
        %2818 = vmatpush1.msra.mxu0 0.0
        %2819 = vmatprep.subr.mxu0 0.0
        %2820 = vmatpush1.msra.mxu0 0.0
        %2821 = vmatprep.subr.mxu0 0.0
        %2822 = vmatpush1.msra.mxu0 0.0
        %2823 = vmatprep.subr.mxu0 0.0
        %2824 = vmatpush1.msra.mxu0 0.0
        %2825 = vmatprep.subr.mxu0 0.0
        %2826 = vmatpush1.msra.mxu0 0.0
        %2827 = vmatprep.subr.mxu0 0.0
        %2828 = vmatpush1.msra.mxu0 0.0
        %2829 = vmatprep.subr.mxu0 0.0
        %2830 = vmatpush1.msra.mxu0 0.0
        %2831 = vmatprep.subr.mxu0 0.0
        %2832 = vmatpush1.msra.mxu0 0.0
        %2833 = vmatprep.subr.mxu0 0.0
        %2834 = vmatpush1.msra.mxu0 0.0
        %2835 = vmatprep.subr.mxu0 0.0
        %2836 = vmatpush1.msra.mxu0 0.0
        %2837 = vmatprep.subr.mxu0 0.0
        %2838 = vmatpush1.msra.mxu0 0.0
        %2839 = vmatprep.subr.mxu0 0.0
        %2840 = vmatpush1.msra.mxu0 0.0
        %2841 = vmatprep.subr.mxu0 0.0
        %2842 = vmatpush1.msra.mxu0 0.0
        %2843 = vmatprep.subr.mxu0 0.0
        %2844 = vmatpush1.msra.mxu0 0.0
        %2845 = vmatprep.subr.mxu0 0.0
        %2846 = vmatpush1.msra.mxu0 0.0
        %2847 = vmatprep.subr.mxu0 0.0
        %2848 = vmatpush1.msra.mxu0 0.0
        %2849 = vmatprep.subr.mxu0 0.0
        %2850 = vmatpush1.msra.mxu0 0.0
        %2851 = vmatprep.subr.mxu0 0.0
        %2852 = vmatpush1.msra.mxu0 0.0
        %2853 = vmatprep.subr.mxu0 0.0
        %2854 = vmatpush1.msra.mxu0 0.0
        %2855 = vmatprep.subr.mxu0 0.0
        %2856 = vmatpush1.msra.mxu0 0.0
        %2857 = vmatprep.subr.mxu0 0.0
        %2858 = vmatpush1.msra.mxu0 0.0
        %2859 = vmatprep.subr.mxu0 0.0
        %2860 = vmatpush1.msra.mxu0 0.0
        %2861 = vmatprep.subr.mxu0 0.0
        %2862 = vmatpush1.msra.mxu0 0.0
        %2863 = vmatprep.subr.mxu0 0.0
        %2864 = vmatpush1.msra.mxu0 0.0
        %2865 = vmatprep.subr.mxu0 0.0
        %2866 = vmatpush1.msra.mxu0 0.0
        %2867 = vmatprep.subr.mxu0 0.0
        %2868 = vmatpush1.msra.mxu0 0.0
        %2869 = vmatprep.subr.mxu0 0.0
        %2870 = vmatpush1.msra.mxu0 0.0
        %2871 = vmatprep.mubr.f32.mxu0 0.0
        %v2872 = vand.u32 %v2706, 4294901760
        %2873 = vmatmul.mubr.f32.gmra.mrb[0].mxu0 %v2872
        %v2874 = vpop.f32.mrb[0].mxu0
        %v2875 = vadd.f32 %v2784, %v2874
        %v2876 = vpop.f32.mrb[0].mxu0
        %2877 = vdwg.mxu0
        %2878 = vmatprep.subr.mxu0 0.0
        %v2879 = vand.u32 %v169, 4294901760
        %v2880 = vsub.f32 %v169, %v2879
        %2881 = vmatpush1.msra.mxu0 %v2880
        %2882 = vmatprep.subr.mxu0 0.0
        %v2883 = vand.u32 %v170, 4294901760
        %v2884 = vsub.f32 %v170, %v2883
        %2885 = vmatpush1.msra.mxu0 %v2884
        %2886 = vmatprep.subr.mxu0 0.0
        %v2887 = vand.u32 %v171, 4294901760
        %v2888 = vsub.f32 %v171, %v2887
        %2889 = vmatpush1.msra.mxu0 %v2888
        %2890 = vmatprep.subr.mxu0 0.0
        %v2891 = vand.u32 %v172, 4294901760
        %v2892 = vsub.f32 %v172, %v2891
        %2893 = vmatpush1.msra.mxu0 %v2892
        %2894 = vmatprep.subr.mxu0 0.0
        %2895 = vmatpush1.msra.mxu0 0.0
        %2896 = vmatprep.subr.mxu0 0.0
        %2897 = vmatpush1.msra.mxu0 0.0
        %2898 = vmatprep.subr.mxu0 0.0
        %2899 = vmatpush1.msra.mxu0 0.0
        %2900 = vmatprep.subr.mxu0 0.0
        %2901 = vmatpush1.msra.mxu0 0.0
        %2902 = vmatprep.subr.mxu0 0.0
        %2903 = vmatpush1.msra.mxu0 0.0
        %2904 = vmatprep.subr.mxu0 0.0
        %2905 = vmatpush1.msra.mxu0 0.0
        %2906 = vmatprep.subr.mxu0 0.0
        %2907 = vmatpush1.msra.mxu0 0.0
        %2908 = vmatprep.subr.mxu0 0.0
        %2909 = vmatpush1.msra.mxu0 0.0
        %2910 = vmatprep.subr.mxu0 0.0
        %2911 = vmatpush1.msra.mxu0 0.0
        %2912 = vmatprep.subr.mxu0 0.0
        %2913 = vmatpush1.msra.mxu0 0.0
        %2914 = vmatprep.subr.mxu0 0.0
        %2915 = vmatpush1.msra.mxu0 0.0
        %2916 = vmatprep.subr.mxu0 0.0
        %2917 = vmatpush1.msra.mxu0 0.0
        %2918 = vmatprep.subr.mxu0 0.0
        %2919 = vmatpush1.msra.mxu0 0.0
        %2920 = vmatprep.subr.mxu0 0.0
        %2921 = vmatpush1.msra.mxu0 0.0
        %2922 = vmatprep.subr.mxu0 0.0
        %2923 = vmatpush1.msra.mxu0 0.0
        %2924 = vmatprep.subr.mxu0 0.0
        %2925 = vmatpush1.msra.mxu0 0.0
        %2926 = vmatprep.subr.mxu0 0.0
        %2927 = vmatpush1.msra.mxu0 0.0
        %2928 = vmatprep.subr.mxu0 0.0
        %2929 = vmatpush1.msra.mxu0 0.0
        %2930 = vmatprep.subr.mxu0 0.0
        %2931 = vmatpush1.msra.mxu0 0.0
        %2932 = vmatprep.subr.mxu0 0.0
        %2933 = vmatpush1.msra.mxu0 0.0
        %2934 = vmatprep.subr.mxu0 0.0
        %2935 = vmatpush1.msra.mxu0 0.0
        %2936 = vmatprep.subr.mxu0 0.0
        %2937 = vmatpush1.msra.mxu0 0.0
        %2938 = vmatprep.subr.mxu0 0.0
        %2939 = vmatpush1.msra.mxu0 0.0
        %2940 = vmatprep.subr.mxu0 0.0
        %2941 = vmatpush1.msra.mxu0 0.0
        %2942 = vmatprep.subr.mxu0 0.0
        %2943 = vmatpush1.msra.mxu0 0.0
        %2944 = vmatprep.subr.mxu0 0.0
        %2945 = vmatpush1.msra.mxu0 0.0
        %2946 = vmatprep.subr.mxu0 0.0
        %2947 = vmatpush1.msra.mxu0 0.0
        %2948 = vmatprep.subr.mxu0 0.0
        %2949 = vmatpush1.msra.mxu0 0.0
        %2950 = vmatprep.mubr.f32.mxu0 0.0
        %v2951 = vand.u32 %v2706, 4294901760
        %v2952 = vsub.f32 %v2706, %v2951
        %2953 = vmatmul.mubr.f32.gmra.mrb[0].mxu0 %v2952
        %v2954 = vpop.f32.mrb[0].mxu0
        %v2955 = vadd.f32 %v2875, %v2954
        %v2956 = vpop.f32.mrb[0].mxu0
        %2957 = vdwg.mxu0
        %2958 = vmatprep.subr.mxu0 0.0
        %v2959 = vand.u32 %v169, 4294901760
        %2960 = vmatpush1.msra.mxu0 %v2959
        %2961 = vmatprep.subr.mxu0 0.0
        %v2962 = vand.u32 %v170, 4294901760
        %2963 = vmatpush1.msra.mxu0 %v2962
        %2964 = vmatprep.subr.mxu0 0.0
        %v2965 = vand.u32 %v171, 4294901760
        %2966 = vmatpush1.msra.mxu0 %v2965
        %2967 = vmatprep.subr.mxu0 0.0
        %v2968 = vand.u32 %v172, 4294901760
        %2969 = vmatpush1.msra.mxu0 %v2968
        %2970 = vmatprep.subr.mxu0 0.0
        %2971 = vmatpush1.msra.mxu0 0.0
        %2972 = vmatprep.subr.mxu0 0.0
        %2973 = vmatpush1.msra.mxu0 0.0
        %2974 = vmatprep.subr.mxu0 0.0
        %2975 = vmatpush1.msra.mxu0 0.0
        %2976 = vmatprep.subr.mxu0 0.0
        %2977 = vmatpush1.msra.mxu0 0.0
        %2978 = vmatprep.subr.mxu0 0.0
        %2979 = vmatpush1.msra.mxu0 0.0
        %2980 = vmatprep.subr.mxu0 0.0
        %2981 = vmatpush1.msra.mxu0 0.0
        %2982 = vmatprep.subr.mxu0 0.0
        %2983 = vmatpush1.msra.mxu0 0.0
        %2984 = vmatprep.subr.mxu0 0.0
        %2985 = vmatpush1.msra.mxu0 0.0
        %2986 = vmatprep.subr.mxu0 0.0
        %2987 = vmatpush1.msra.mxu0 0.0
        %2988 = vmatprep.subr.mxu0 0.0
        %2989 = vmatpush1.msra.mxu0 0.0
        %2990 = vmatprep.subr.mxu0 0.0
        %2991 = vmatpush1.msra.mxu0 0.0
        %2992 = vmatprep.subr.mxu0 0.0
        %2993 = vmatpush1.msra.mxu0 0.0
        %2994 = vmatprep.subr.mxu0 0.0
        %2995 = vmatpush1.msra.mxu0 0.0
        %2996 = vmatprep.subr.mxu0 0.0
        %2997 = vmatpush1.msra.mxu0 0.0
        %2998 = vmatprep.subr.mxu0 0.0
        %2999 = vmatpush1.msra.mxu0 0.0
        %3000 = vmatprep.subr.mxu0 0.0
        %3001 = vmatpush1.msra.mxu0 0.0
        %3002 = vmatprep.subr.mxu0 0.0
        %3003 = vmatpush1.msra.mxu0 0.0
        %3004 = vmatprep.subr.mxu0 0.0
        %3005 = vmatpush1.msra.mxu0 0.0
        %3006 = vmatprep.subr.mxu0 0.0
        %3007 = vmatpush1.msra.mxu0 0.0
        %3008 = vmatprep.subr.mxu0 0.0
        %3009 = vmatpush1.msra.mxu0 0.0
        %3010 = vmatprep.subr.mxu0 0.0
        %3011 = vmatpush1.msra.mxu0 0.0
        %3012 = vmatprep.subr.mxu0 0.0
        %3013 = vmatpush1.msra.mxu0 0.0
        %3014 = vmatprep.subr.mxu0 0.0
        %3015 = vmatpush1.msra.mxu0 0.0
        %3016 = vmatprep.subr.mxu0 0.0
        %3017 = vmatpush1.msra.mxu0 0.0
        %3018 = vmatprep.subr.mxu0 0.0
        %3019 = vmatpush1.msra.mxu0 0.0
        %3020 = vmatprep.subr.mxu0 0.0
        %3021 = vmatpush1.msra.mxu0 0.0
        %3022 = vmatprep.subr.mxu0 0.0
        %3023 = vmatpush1.msra.mxu0 0.0
        %3024 = vmatprep.subr.mxu0 0.0
        %3025 = vmatpush1.msra.mxu0 0.0
        %3026 = vmatprep.mubr.f32.mxu0 0.0
        %v3027 = vand.u32 %v2706, 4294901760
        %v3028 = vsub.f32 %v2706, %v3027
        %v3029 = vand.u32 %v3028, 4294901760
        %3030 = vmatmul.mubr.f32.gmra.mrb[0].mxu0 %v3029
        %v3031 = vpop.f32.mrb[0].mxu0
        %v3032 = vadd.f32 %v2955, %v3031
        %v3033 = vpop.f32.mrb[0].mxu0
        %3034 = vdwg.mxu0
        %3035 = vmatprep.subr.mxu0 0.0
        %v3036 = vand.u32 %v169, 4294901760
        %v3037 = vsub.f32 %v169, %v3036
        %v3038 = vand.u32 %v3037, 4294901760
        %3039 = vmatpush1.msra.mxu0 %v3038
        %3040 = vmatprep.subr.mxu0 0.0
        %v3041 = vand.u32 %v170, 4294901760
        %v3042 = vsub.f32 %v170, %v3041
        %v3043 = vand.u32 %v3042, 4294901760
        %3044 = vmatpush1.msra.mxu0 %v3043
        %3045 = vmatprep.subr.mxu0 0.0
        %v3046 = vand.u32 %v171, 4294901760
        %v3047 = vsub.f32 %v171, %v3046
        %v3048 = vand.u32 %v3047, 4294901760
        %3049 = vmatpush1.msra.mxu0 %v3048
        %3050 = vmatprep.subr.mxu0 0.0
        %v3051 = vand.u32 %v172, 4294901760
        %v3052 = vsub.f32 %v172, %v3051
        %v3053 = vand.u32 %v3052, 4294901760
        %3054 = vmatpush1.msra.mxu0 %v3053
        %3055 = vmatprep.subr.mxu0 0.0
        %3056 = vmatpush1.msra.mxu0 0.0
        %3057 = vmatprep.subr.mxu0 0.0
        %3058 = vmatpush1.msra.mxu0 0.0
        %3059 = vmatprep.subr.mxu0 0.0
        %3060 = vmatpush1.msra.mxu0 0.0
        %3061 = vmatprep.subr.mxu0 0.0
        %3062 = vmatpush1.msra.mxu0 0.0
        %3063 = vmatprep.subr.mxu0 0.0
        %3064 = vmatpush1.msra.mxu0 0.0
        %3065 = vmatprep.subr.mxu0 0.0
        %3066 = vmatpush1.msra.mxu0 0.0
        %3067 = vmatprep.subr.mxu0 0.0
        %3068 = vmatpush1.msra.mxu0 0.0
        %3069 = vmatprep.subr.mxu0 0.0
        %3070 = vmatpush1.msra.mxu0 0.0
        %3071 = vmatprep.subr.mxu0 0.0
        %3072 = vmatpush1.msra.mxu0 0.0
        %3073 = vmatprep.subr.mxu0 0.0
        %3074 = vmatpush1.msra.mxu0 0.0
        %3075 = vmatprep.subr.mxu0 0.0
        %3076 = vmatpush1.msra.mxu0 0.0
        %3077 = vmatprep.subr.mxu0 0.0
        %3078 = vmatpush1.msra.mxu0 0.0
        %3079 = vmatprep.subr.mxu0 0.0
        %3080 = vmatpush1.msra.mxu0 0.0
        %3081 = vmatprep.subr.mxu0 0.0
        %3082 = vmatpush1.msra.mxu0 0.0
        %3083 = vmatprep.subr.mxu0 0.0
        %3084 = vmatpush1.msra.mxu0 0.0
        %3085 = vmatprep.subr.mxu0 0.0
        %3086 = vmatpush1.msra.mxu0 0.0
        %3087 = vmatprep.subr.mxu0 0.0
        %3088 = vmatpush1.msra.mxu0 0.0
        %3089 = vmatprep.subr.mxu0 0.0
        %3090 = vmatpush1.msra.mxu0 0.0
        %3091 = vmatprep.subr.mxu0 0.0
        %3092 = vmatpush1.msra.mxu0 0.0
        %3093 = vmatprep.subr.mxu0 0.0
        %3094 = vmatpush1.msra.mxu0 0.0
        %3095 = vmatprep.subr.mxu0 0.0
        %3096 = vmatpush1.msra.mxu0 0.0
        %3097 = vmatprep.subr.mxu0 0.0
        %3098 = vmatpush1.msra.mxu0 0.0
        %3099 = vmatprep.subr.mxu0 0.0
        %3100 = vmatpush1.msra.mxu0 0.0
        %3101 = vmatprep.subr.mxu0 0.0
        %3102 = vmatpush1.msra.mxu0 0.0
        %3103 = vmatprep.subr.mxu0 0.0
        %3104 = vmatpush1.msra.mxu0 0.0
        %3105 = vmatprep.subr.mxu0 0.0
        %3106 = vmatpush1.msra.mxu0 0.0
        %3107 = vmatprep.subr.mxu0 0.0
        %3108 = vmatpush1.msra.mxu0 0.0
        %3109 = vmatprep.subr.mxu0 0.0
        %3110 = vmatpush1.msra.mxu0 0.0
        %3111 = vmatprep.mubr.f32.mxu0 0.0
        %v3112 = vand.u32 %v2706, 4294901760
        %3113 = vmatmul.mubr.f32.gmra.mrb[0].mxu0 %v3112
        %v3114 = vpop.f32.mrb[0].mxu0
        %v3115 = vadd.f32 %v3032, %v3114
        %v3116 = vpop.f32.mrb[0].mxu0
        %3117 = vdwg.mxu0
        %3118 = vmatprep.subr.mxu0 0.0
        %v3119 = vand.u32 %v169, 4294901760
        %3120 = vmatpush1.msra.mxu0 %v3119
        %3121 = vmatprep.subr.mxu0 0.0
        %v3122 = vand.u32 %v170, 4294901760
        %3123 = vmatpush1.msra.mxu0 %v3122
        %3124 = vmatprep.subr.mxu0 0.0
        %v3125 = vand.u32 %v171, 4294901760
        %3126 = vmatpush1.msra.mxu0 %v3125
        %3127 = vmatprep.subr.mxu0 0.0
        %v3128 = vand.u32 %v172, 4294901760
        %3129 = vmatpush1.msra.mxu0 %v3128
        %3130 = vmatprep.subr.mxu0 0.0
        %3131 = vmatpush1.msra.mxu0 0.0
        %3132 = vmatprep.subr.mxu0 0.0
        %3133 = vmatpush1.msra.mxu0 0.0
        %3134 = vmatprep.subr.mxu0 0.0
        %3135 = vmatpush1.msra.mxu0 0.0
        %3136 = vmatprep.subr.mxu0 0.0
        %3137 = vmatpush1.msra.mxu0 0.0
        %3138 = vmatprep.subr.mxu0 0.0
        %3139 = vmatpush1.msra.mxu0 0.0
        %3140 = vmatprep.subr.mxu0 0.0
        %3141 = vmatpush1.msra.mxu0 0.0
        %3142 = vmatprep.subr.mxu0 0.0
        %3143 = vmatpush1.msra.mxu0 0.0
        %3144 = vmatprep.subr.mxu0 0.0
        %3145 = vmatpush1.msra.mxu0 0.0
        %3146 = vmatprep.subr.mxu0 0.0
        %3147 = vmatpush1.msra.mxu0 0.0
        %3148 = vmatprep.subr.mxu0 0.0
        %3149 = vmatpush1.msra.mxu0 0.0
        %3150 = vmatprep.subr.mxu0 0.0
        %3151 = vmatpush1.msra.mxu0 0.0
        %3152 = vmatprep.subr.mxu0 0.0
        %3153 = vmatpush1.msra.mxu0 0.0
        %3154 = vmatprep.subr.mxu0 0.0
        %3155 = vmatpush1.msra.mxu0 0.0
        %3156 = vmatprep.subr.mxu0 0.0
        %3157 = vmatpush1.msra.mxu0 0.0
        %3158 = vmatprep.subr.mxu0 0.0
        %3159 = vmatpush1.msra.mxu0 0.0
        %3160 = vmatprep.subr.mxu0 0.0
        %3161 = vmatpush1.msra.mxu0 0.0
        %3162 = vmatprep.subr.mxu0 0.0
        %3163 = vmatpush1.msra.mxu0 0.0
        %3164 = vmatprep.subr.mxu0 0.0
        %3165 = vmatpush1.msra.mxu0 0.0
        %3166 = vmatprep.subr.mxu0 0.0
        %3167 = vmatpush1.msra.mxu0 0.0
        %3168 = vmatprep.subr.mxu0 0.0
        %3169 = vmatpush1.msra.mxu0 0.0
        %3170 = vmatprep.subr.mxu0 0.0
        %3171 = vmatpush1.msra.mxu0 0.0
        %3172 = vmatprep.subr.mxu0 0.0
        %3173 = vmatpush1.msra.mxu0 0.0
        %3174 = vmatprep.subr.mxu0 0.0
        %3175 = vmatpush1.msra.mxu0 0.0
        %3176 = vmatprep.subr.mxu0 0.0
        %3177 = vmatpush1.msra.mxu0 0.0
        %3178 = vmatprep.subr.mxu0 0.0
        %3179 = vmatpush1.msra.mxu0 0.0
        %3180 = vmatprep.subr.mxu0 0.0
        %3181 = vmatpush1.msra.mxu0 0.0
        %3182 = vmatprep.subr.mxu0 0.0
        %3183 = vmatpush1.msra.mxu0 0.0
        %3184 = vmatprep.subr.mxu0 0.0
        %3185 = vmatpush1.msra.mxu0 0.0
        %3186 = vmatprep.mubr.f32.mxu0 0.0
        %v3187 = vand.u32 %v2706, 4294901760
        %3188 = vmatmul.mubr.f32.gmra.mrb[0].mxu0 %v3187
        %v3189 = vpop.f32.mrb[0].mxu0
        %v3190 = vadd.f32 %v3115, %v3189
        %v3191 = vpop.f32.mrb[0].mxu0
        %3192 = vdwg.mxu0
        %3193 = vrot.lane.b32.xlu0 %v2677, 120
        %v3194 = vpop.permute.xlu0 %3193
        %v3196 = vadd.f32 %v2677, %v3194
        %v3197 = vmul.f32 %v3196, 0.59375
        %3199 = vrot.lane.b32.xlu0 %v3190, 8
        %v3200 = vpop.permute.xlu0 %3199
        %v3202 = vadd.f32 %v2166, %v3200
        %v3203 = vmul.f32 %v3202, -0.09375
        %3205 = vrot.lane.b32.xlu0 %v3203, 120
        %v3206 = vpop.permute.xlu0 %3205
        %v3208 = vadd.f32 %v3197, %v3206
        %3210 = vrot.lane.b32.xlu0 %v3208, 32
        %v3211 = vpop.permute.xlu0 %3210
        %vm3213 = vcmask 322816
        %3214 = vst.msk [vmem:[#allocation2] sm:$0xf] %vm3213, %v3211
        %v3215 = vld [vmem:[%s168 + $0x4] sm:$0xf]
        %3217 = vrot.lane.b32.xlu0 %v3215, 64
        %v3218 = vpop.permute.xlu0 %3217
        %v3219 = vsel %vm175, %v3218, 0
        %3221 = vmatprep.subr.mxu0 0.0
        %v3222 = vand.u32 %v169, 4294901760
        %3223 = vmatpush1.msra.mxu0 %v3222
        %3224 = vmatprep.subr.mxu0 0.0
        %v3225 = vand.u32 %v170, 4294901760
        %3226 = vmatpush1.msra.mxu0 %v3225
        %3227 = vmatprep.subr.mxu0 0.0
        %v3228 = vand.u32 %v171, 4294901760
        %3229 = vmatpush1.msra.mxu0 %v3228
        %3230 = vmatprep.subr.mxu0 0.0
        %v3231 = vand.u32 %v172, 4294901760
        %3232 = vmatpush1.msra.mxu0 %v3231
        %3233 = vmatprep.subr.mxu0 0.0
        %3234 = vmatpush1.msra.mxu0 0.0
        %3235 = vmatprep.subr.mxu0 0.0
        %3236 = vmatpush1.msra.mxu0 0.0
        %3237 = vmatprep.subr.mxu0 0.0
        %3238 = vmatpush1.msra.mxu0 0.0
        %3239 = vmatprep.subr.mxu0 0.0
        %3240 = vmatpush1.msra.mxu0 0.0
        %3241 = vmatprep.subr.mxu0 0.0
        %3242 = vmatpush1.msra.mxu0 0.0
        %3243 = vmatprep.subr.mxu0 0.0
        %3244 = vmatpush1.msra.mxu0 0.0
        %3245 = vmatprep.subr.mxu0 0.0
        %3246 = vmatpush1.msra.mxu0 0.0
        %3247 = vmatprep.subr.mxu0 0.0
        %3248 = vmatpush1.msra.mxu0 0.0
        %3249 = vmatprep.subr.mxu0 0.0
        %3250 = vmatpush1.msra.mxu0 0.0
        %3251 = vmatprep.subr.mxu0 0.0
        %3252 = vmatpush1.msra.mxu0 0.0
        %3253 = vmatprep.subr.mxu0 0.0
        %3254 = vmatpush1.msra.mxu0 0.0
        %3255 = vmatprep.subr.mxu0 0.0
        %3256 = vmatpush1.msra.mxu0 0.0
        %3257 = vmatprep.subr.mxu0 0.0
        %3258 = vmatpush1.msra.mxu0 0.0
        %3259 = vmatprep.subr.mxu0 0.0
        %3260 = vmatpush1.msra.mxu0 0.0
        %3261 = vmatprep.subr.mxu0 0.0
        %3262 = vmatpush1.msra.mxu0 0.0
        %3263 = vmatprep.subr.mxu0 0.0
        %3264 = vmatpush1.msra.mxu0 0.0
        %3265 = vmatprep.subr.mxu0 0.0
        %3266 = vmatpush1.msra.mxu0 0.0
        %3267 = vmatprep.subr.mxu0 0.0
        %3268 = vmatpush1.msra.mxu0 0.0
        %3269 = vmatprep.subr.mxu0 0.0
        %3270 = vmatpush1.msra.mxu0 0.0
        %3271 = vmatprep.subr.mxu0 0.0
        %3272 = vmatpush1.msra.mxu0 0.0
        %3273 = vmatprep.subr.mxu0 0.0
        %3274 = vmatpush1.msra.mxu0 0.0
        %3275 = vmatprep.subr.mxu0 0.0
        %3276 = vmatpush1.msra.mxu0 0.0
        %3277 = vmatprep.subr.mxu0 0.0
        %3278 = vmatpush1.msra.mxu0 0.0
        %3279 = vmatprep.subr.mxu0 0.0
        %3280 = vmatpush1.msra.mxu0 0.0
        %3281 = vmatprep.subr.mxu0 0.0
        %3282 = vmatpush1.msra.mxu0 0.0
        %3283 = vmatprep.subr.mxu0 0.0
        %3284 = vmatpush1.msra.mxu0 0.0
        %3285 = vmatprep.subr.mxu0 0.0
        %3286 = vmatpush1.msra.mxu0 0.0
        %3287 = vmatprep.subr.mxu0 0.0
        %3288 = vmatpush1.msra.mxu0 0.0
        %3289 = vmatprep.mubr.f32.mxu0 0.0
        %v3290 = vand.u32 %v3219, 4294901760
        %v3291 = vsub.f32 %v3219, %v3290
        %v3292 = vand.u32 %v3291, 4294901760
        %v3293 = vsub.f32 %v3291, %v3292
        %v3294 = vand.u32 %v3293, 4294901760
        %3295 = vmatmul.mubr.f32.gmra.mrb[0].mxu0 %v3294
        %v3296 = vpop.f32.mrb[0].mxu0
        %v3297 = vadd.f32 0.0, %v3296
        %v3298 = vpop.f32.mrb[0].mxu0
        %3299 = vdwg.mxu0
        %3300 = vmatprep.subr.mxu0 0.0
        %v3301 = vand.u32 %v169, 4294901760
        %v3302 = vsub.f32 %v169, %v3301
        %v3303 = vand.u32 %v3302, 4294901760
        %v3304 = vsub.f32 %v3302, %v3303
        %v3305 = vand.u32 %v3304, 4294901760
        %3306 = vmatpush1.msra.mxu0 %v3305
        %3307 = vmatprep.subr.mxu0 0.0
        %v3308 = vand.u32 %v170, 4294901760
        %v3309 = vsub.f32 %v170, %v3308
        %v3310 = vand.u32 %v3309, 4294901760
        %v3311 = vsub.f32 %v3309, %v3310
        %v3312 = vand.u32 %v3311, 4294901760
        %3313 = vmatpush1.msra.mxu0 %v3312
        %3314 = vmatprep.subr.mxu0 0.0
        %v3315 = vand.u32 %v171, 4294901760
        %v3316 = vsub.f32 %v171, %v3315
        %v3317 = vand.u32 %v3316, 4294901760
        %v3318 = vsub.f32 %v3316, %v3317
        %v3319 = vand.u32 %v3318, 4294901760
        %3320 = vmatpush1.msra.mxu0 %v3319
        %3321 = vmatprep.subr.mxu0 0.0
        %v3322 = vand.u32 %v172, 4294901760
        %v3323 = vsub.f32 %v172, %v3322
        %v3324 = vand.u32 %v3323, 4294901760
        %v3325 = vsub.f32 %v3323, %v3324
        %v3326 = vand.u32 %v3325, 4294901760
        %3327 = vmatpush1.msra.mxu0 %v3326
        %3328 = vmatprep.subr.mxu0 0.0
        %3329 = vmatpush1.msra.mxu0 0.0
        %3330 = vmatprep.subr.mxu0 0.0
        %3331 = vmatpush1.msra.mxu0 0.0
        %3332 = vmatprep.subr.mxu0 0.0
        %3333 = vmatpush1.msra.mxu0 0.0
        %3334 = vmatprep.subr.mxu0 0.0
        %3335 = vmatpush1.msra.mxu0 0.0
        %3336 = vmatprep.subr.mxu0 0.0
        %3337 = vmatpush1.msra.mxu0 0.0
        %3338 = vmatprep.subr.mxu0 0.0
        %3339 = vmatpush1.msra.mxu0 0.0
        %3340 = vmatprep.subr.mxu0 0.0
        %3341 = vmatpush1.msra.mxu0 0.0
        %3342 = vmatprep.subr.mxu0 0.0
        %3343 = vmatpush1.msra.mxu0 0.0
        %3344 = vmatprep.subr.mxu0 0.0
        %3345 = vmatpush1.msra.mxu0 0.0
        %3346 = vmatprep.subr.mxu0 0.0
        %3347 = vmatpush1.msra.mxu0 0.0
        %3348 = vmatprep.subr.mxu0 0.0
        %3349 = vmatpush1.msra.mxu0 0.0
        %3350 = vmatprep.subr.mxu0 0.0
        %3351 = vmatpush1.msra.mxu0 0.0
        %3352 = vmatprep.subr.mxu0 0.0
        %3353 = vmatpush1.msra.mxu0 0.0
        %3354 = vmatprep.subr.mxu0 0.0
        %3355 = vmatpush1.msra.mxu0 0.0
        %3356 = vmatprep.subr.mxu0 0.0
        %3357 = vmatpush1.msra.mxu0 0.0
        %3358 = vmatprep.subr.mxu0 0.0
        %3359 = vmatpush1.msra.mxu0 0.0
        %3360 = vmatprep.subr.mxu0 0.0
        %3361 = vmatpush1.msra.mxu0 0.0
        %3362 = vmatprep.subr.mxu0 0.0
        %3363 = vmatpush1.msra.mxu0 0.0
        %3364 = vmatprep.subr.mxu0 0.0
        %3365 = vmatpush1.msra.mxu0 0.0
        %3366 = vmatprep.subr.mxu0 0.0
        %3367 = vmatpush1.msra.mxu0 0.0
        %3368 = vmatprep.subr.mxu0 0.0
        %3369 = vmatpush1.msra.mxu0 0.0
        %3370 = vmatprep.subr.mxu0 0.0
        %3371 = vmatpush1.msra.mxu0 0.0
        %3372 = vmatprep.subr.mxu0 0.0
        %3373 = vmatpush1.msra.mxu0 0.0
        %3374 = vmatprep.subr.mxu0 0.0
        %3375 = vmatpush1.msra.mxu0 0.0
        %3376 = vmatprep.subr.mxu0 0.0
        %3377 = vmatpush1.msra.mxu0 0.0
        %3378 = vmatprep.subr.mxu0 0.0
        %3379 = vmatpush1.msra.mxu0 0.0
        %3380 = vmatprep.subr.mxu0 0.0
        %3381 = vmatpush1.msra.mxu0 0.0
        %3382 = vmatprep.subr.mxu0 0.0
        %3383 = vmatpush1.msra.mxu0 0.0
        %3384 = vmatprep.mubr.f32.mxu0 0.0
        %v3385 = vand.u32 %v3219, 4294901760
        %3386 = vmatmul.mubr.f32.gmra.mrb[0].mxu0 %v3385
        %v3387 = vpop.f32.mrb[0].mxu0
        %v3388 = vadd.f32 %v3297, %v3387
        %v3389 = vpop.f32.mrb[0].mxu0
        %3390 = vdwg.mxu0
        %3391 = vmatprep.subr.mxu0 0.0
        %v3392 = vand.u32 %v169, 4294901760
        %v3393 = vsub.f32 %v169, %v3392
        %3394 = vmatpush1.msra.mxu0 %v3393
        %3395 = vmatprep.subr.mxu0 0.0
        %v3396 = vand.u32 %v170, 4294901760
        %v3397 = vsub.f32 %v170, %v3396
        %3398 = vmatpush1.msra.mxu0 %v3397
        %3399 = vmatprep.subr.mxu0 0.0
        %v3400 = vand.u32 %v171, 4294901760
        %v3401 = vsub.f32 %v171, %v3400
        %3402 = vmatpush1.msra.mxu0 %v3401
        %3403 = vmatprep.subr.mxu0 0.0
        %v3404 = vand.u32 %v172, 4294901760
        %v3405 = vsub.f32 %v172, %v3404
        %3406 = vmatpush1.msra.mxu0 %v3405
        %3407 = vmatprep.subr.mxu0 0.0
        %3408 = vmatpush1.msra.mxu0 0.0
        %3409 = vmatprep.subr.mxu0 0.0
        %3410 = vmatpush1.msra.mxu0 0.0
        %3411 = vmatprep.subr.mxu0 0.0
        %3412 = vmatpush1.msra.mxu0 0.0
        %3413 = vmatprep.subr.mxu0 0.0
        %3414 = vmatpush1.msra.mxu0 0.0
        %3415 = vmatprep.subr.mxu0 0.0
        %3416 = vmatpush1.msra.mxu0 0.0
        %3417 = vmatprep.subr.mxu0 0.0
        %3418 = vmatpush1.msra.mxu0 0.0
        %3419 = vmatprep.subr.mxu0 0.0
        %3420 = vmatpush1.msra.mxu0 0.0
        %3421 = vmatprep.subr.mxu0 0.0
        %3422 = vmatpush1.msra.mxu0 0.0
        %3423 = vmatprep.subr.mxu0 0.0
        %3424 = vmatpush1.msra.mxu0 0.0
        %3425 = vmatprep.subr.mxu0 0.0
        %3426 = vmatpush1.msra.mxu0 0.0
        %3427 = vmatprep.subr.mxu0 0.0
        %3428 = vmatpush1.msra.mxu0 0.0
        %3429 = vmatprep.subr.mxu0 0.0
        %3430 = vmatpush1.msra.mxu0 0.0
        %3431 = vmatprep.subr.mxu0 0.0
        %3432 = vmatpush1.msra.mxu0 0.0
        %3433 = vmatprep.subr.mxu0 0.0
        %3434 = vmatpush1.msra.mxu0 0.0
        %3435 = vmatprep.subr.mxu0 0.0
        %3436 = vmatpush1.msra.mxu0 0.0
        %3437 = vmatprep.subr.mxu0 0.0
        %3438 = vmatpush1.msra.mxu0 0.0
        %3439 = vmatprep.subr.mxu0 0.0
        %3440 = vmatpush1.msra.mxu0 0.0
        %3441 = vmatprep.subr.mxu0 0.0
        %3442 = vmatpush1.msra.mxu0 0.0
        %3443 = vmatprep.subr.mxu0 0.0
        %3444 = vmatpush1.msra.mxu0 0.0
        %3445 = vmatprep.subr.mxu0 0.0
        %3446 = vmatpush1.msra.mxu0 0.0
        %3447 = vmatprep.subr.mxu0 0.0
        %3448 = vmatpush1.msra.mxu0 0.0
        %3449 = vmatprep.subr.mxu0 0.0
        %3450 = vmatpush1.msra.mxu0 0.0
        %3451 = vmatprep.subr.mxu0 0.0
        %3452 = vmatpush1.msra.mxu0 0.0
        %3453 = vmatprep.subr.mxu0 0.0
        %3454 = vmatpush1.msra.mxu0 0.0
        %3455 = vmatprep.subr.mxu0 0.0
        %3456 = vmatpush1.msra.mxu0 0.0
        %3457 = vmatprep.subr.mxu0 0.0
        %3458 = vmatpush1.msra.mxu0 0.0
        %3459 = vmatprep.subr.mxu0 0.0
        %3460 = vmatpush1.msra.mxu0 0.0
        %3461 = vmatprep.subr.mxu0 0.0
        %3462 = vmatpush1.msra.mxu0 0.0
        %3463 = vmatprep.mubr.f32.mxu0 0.0
        %v3464 = vand.u32 %v3219, 4294901760
        %v3465 = vsub.f32 %v3219, %v3464
        %3466 = vmatmul.mubr.f32.gmra.mrb[0].mxu0 %v3465
        %v3467 = vpop.f32.mrb[0].mxu0
        %v3468 = vadd.f32 %v3388, %v3467
        %v3469 = vpop.f32.mrb[0].mxu0
        %3470 = vdwg.mxu0
        %3471 = vmatprep.subr.mxu0 0.0
        %v3472 = vand.u32 %v169, 4294901760
        %3473 = vmatpush1.msra.mxu0 %v3472
        %3474 = vmatprep.subr.mxu0 0.0
        %v3475 = vand.u32 %v170, 4294901760
        %3476 = vmatpush1.msra.mxu0 %v3475
        %3477 = vmatprep.subr.mxu0 0.0
        %v3478 = vand.u32 %v171, 4294901760
        %3479 = vmatpush1.msra.mxu0 %v3478
        %3480 = vmatprep.subr.mxu0 0.0
        %v3481 = vand.u32 %v172, 4294901760
        %3482 = vmatpush1.msra.mxu0 %v3481
        %3483 = vmatprep.subr.mxu0 0.0
        %3484 = vmatpush1.msra.mxu0 0.0
        %3485 = vmatprep.subr.mxu0 0.0
        %3486 = vmatpush1.msra.mxu0 0.0
        %3487 = vmatprep.subr.mxu0 0.0
        %3488 = vmatpush1.msra.mxu0 0.0
        %3489 = vmatprep.subr.mxu0 0.0
        %3490 = vmatpush1.msra.mxu0 0.0
        %3491 = vmatprep.subr.mxu0 0.0
        %3492 = vmatpush1.msra.mxu0 0.0
        %3493 = vmatprep.subr.mxu0 0.0
        %3494 = vmatpush1.msra.mxu0 0.0
        %3495 = vmatprep.subr.mxu0 0.0
        %3496 = vmatpush1.msra.mxu0 0.0
        %3497 = vmatprep.subr.mxu0 0.0
        %3498 = vmatpush1.msra.mxu0 0.0
        %3499 = vmatprep.subr.mxu0 0.0
        %3500 = vmatpush1.msra.mxu0 0.0
        %3501 = vmatprep.subr.mxu0 0.0
        %3502 = vmatpush1.msra.mxu0 0.0
        %3503 = vmatprep.subr.mxu0 0.0
        %3504 = vmatpush1.msra.mxu0 0.0
        %3505 = vmatprep.subr.mxu0 0.0
        %3506 = vmatpush1.msra.mxu0 0.0
        %3507 = vmatprep.subr.mxu0 0.0
        %3508 = vmatpush1.msra.mxu0 0.0
        %3509 = vmatprep.subr.mxu0 0.0
        %3510 = vmatpush1.msra.mxu0 0.0
        %3511 = vmatprep.subr.mxu0 0.0
        %3512 = vmatpush1.msra.mxu0 0.0
        %3513 = vmatprep.subr.mxu0 0.0
        %3514 = vmatpush1.msra.mxu0 0.0
        %3515 = vmatprep.subr.mxu0 0.0
        %3516 = vmatpush1.msra.mxu0 0.0
        %3517 = vmatprep.subr.mxu0 0.0
        %3518 = vmatpush1.msra.mxu0 0.0
        %3519 = vmatprep.subr.mxu0 0.0
        %3520 = vmatpush1.msra.mxu0 0.0
        %3521 = vmatprep.subr.mxu0 0.0
        %3522 = vmatpush1.msra.mxu0 0.0
        %3523 = vmatprep.subr.mxu0 0.0
        %3524 = vmatpush1.msra.mxu0 0.0
        %3525 = vmatprep.subr.mxu0 0.0
        %3526 = vmatpush1.msra.mxu0 0.0
        %3527 = vmatprep.subr.mxu0 0.0
        %3528 = vmatpush1.msra.mxu0 0.0
        %3529 = vmatprep.subr.mxu0 0.0
        %3530 = vmatpush1.msra.mxu0 0.0
        %3531 = vmatprep.subr.mxu0 0.0
        %3532 = vmatpush1.msra.mxu0 0.0
        %3533 = vmatprep.subr.mxu0 0.0
        %3534 = vmatpush1.msra.mxu0 0.0
        %3535 = vmatprep.subr.mxu0 0.0
        %3536 = vmatpush1.msra.mxu0 0.0
        %3537 = vmatprep.subr.mxu0 0.0
        %3538 = vmatpush1.msra.mxu0 0.0
        %3539 = vmatprep.mubr.f32.mxu0 0.0
        %v3540 = vand.u32 %v3219, 4294901760
        %v3541 = vsub.f32 %v3219, %v3540
        %v3542 = vand.u32 %v3541, 4294901760
        %3543 = vmatmul.mubr.f32.gmra.mrb[0].mxu0 %v3542
        %v3544 = vpop.f32.mrb[0].mxu0
        %v3545 = vadd.f32 %v3468, %v3544
        %v3546 = vpop.f32.mrb[0].mxu0
        %3547 = vdwg.mxu0
        %3548 = vmatprep.subr.mxu0 0.0
        %v3549 = vand.u32 %v169, 4294901760
        %v3550 = vsub.f32 %v169, %v3549
        %v3551 = vand.u32 %v3550, 4294901760
        %3552 = vmatpush1.msra.mxu0 %v3551
        %3553 = vmatprep.subr.mxu0 0.0
        %v3554 = vand.u32 %v170, 4294901760
        %v3555 = vsub.f32 %v170, %v3554
        %v3556 = vand.u32 %v3555, 4294901760
        %3557 = vmatpush1.msra.mxu0 %v3556
        %3558 = vmatprep.subr.mxu0 0.0
        %v3559 = vand.u32 %v171, 4294901760
        %v3560 = vsub.f32 %v171, %v3559
        %v3561 = vand.u32 %v3560, 4294901760
        %3562 = vmatpush1.msra.mxu0 %v3561
        %3563 = vmatprep.subr.mxu0 0.0
        %v3564 = vand.u32 %v172, 4294901760
        %v3565 = vsub.f32 %v172, %v3564
        %v3566 = vand.u32 %v3565, 4294901760
        %3567 = vmatpush1.msra.mxu0 %v3566
        %3568 = vmatprep.subr.mxu0 0.0
        %3569 = vmatpush1.msra.mxu0 0.0
        %3570 = vmatprep.subr.mxu0 0.0
        %3571 = vmatpush1.msra.mxu0 0.0
        %3572 = vmatprep.subr.mxu0 0.0
        %3573 = vmatpush1.msra.mxu0 0.0
        %3574 = vmatprep.subr.mxu0 0.0
        %3575 = vmatpush1.msra.mxu0 0.0
        %3576 = vmatprep.subr.mxu0 0.0
        %3577 = vmatpush1.msra.mxu0 0.0
        %3578 = vmatprep.subr.mxu0 0.0
        %3579 = vmatpush1.msra.mxu0 0.0
        %3580 = vmatprep.subr.mxu0 0.0
        %3581 = vmatpush1.msra.mxu0 0.0
        %3582 = vmatprep.subr.mxu0 0.0
        %3583 = vmatpush1.msra.mxu0 0.0
        %3584 = vmatprep.subr.mxu0 0.0
        %3585 = vmatpush1.msra.mxu0 0.0
        %3586 = vmatprep.subr.mxu0 0.0
        %3587 = vmatpush1.msra.mxu0 0.0
        %3588 = vmatprep.subr.mxu0 0.0
        %3589 = vmatpush1.msra.mxu0 0.0
        %3590 = vmatprep.subr.mxu0 0.0
        %3591 = vmatpush1.msra.mxu0 0.0
        %3592 = vmatprep.subr.mxu0 0.0
        %3593 = vmatpush1.msra.mxu0 0.0
        %3594 = vmatprep.subr.mxu0 0.0
        %3595 = vmatpush1.msra.mxu0 0.0
        %3596 = vmatprep.subr.mxu0 0.0
        %3597 = vmatpush1.msra.mxu0 0.0
        %3598 = vmatprep.subr.mxu0 0.0
        %3599 = vmatpush1.msra.mxu0 0.0
        %3600 = vmatprep.subr.mxu0 0.0
        %3601 = vmatpush1.msra.mxu0 0.0
        %3602 = vmatprep.subr.mxu0 0.0
        %3603 = vmatpush1.msra.mxu0 0.0
        %3604 = vmatprep.subr.mxu0 0.0
        %3605 = vmatpush1.msra.mxu0 0.0
        %3606 = vmatprep.subr.mxu0 0.0
        %3607 = vmatpush1.msra.mxu0 0.0
        %3608 = vmatprep.subr.mxu0 0.0
        %3609 = vmatpush1.msra.mxu0 0.0
        %3610 = vmatprep.subr.mxu0 0.0
        %3611 = vmatpush1.msra.mxu0 0.0
        %3612 = vmatprep.subr.mxu0 0.0
        %3613 = vmatpush1.msra.mxu0 0.0
        %3614 = vmatprep.subr.mxu0 0.0
        %3615 = vmatpush1.msra.mxu0 0.0
        %3616 = vmatprep.subr.mxu0 0.0
        %3617 = vmatpush1.msra.mxu0 0.0
        %3618 = vmatprep.subr.mxu0 0.0
        %3619 = vmatpush1.msra.mxu0 0.0
        %3620 = vmatprep.subr.mxu0 0.0
        %3621 = vmatpush1.msra.mxu0 0.0
        %3622 = vmatprep.subr.mxu0 0.0
        %3623 = vmatpush1.msra.mxu0 0.0
        %3624 = vmatprep.mubr.f32.mxu0 0.0
        %v3625 = vand.u32 %v3219, 4294901760
        %3626 = vmatmul.mubr.f32.gmra.mrb[0].mxu0 %v3625
        %v3627 = vpop.f32.mrb[0].mxu0
        %v3628 = vadd.f32 %v3545, %v3627
        %v3629 = vpop.f32.mrb[0].mxu0
        %3630 = vdwg.mxu0
        %3631 = vmatprep.subr.mxu0 0.0
        %v3632 = vand.u32 %v169, 4294901760
        %3633 = vmatpush1.msra.mxu0 %v3632
        %3634 = vmatprep.subr.mxu0 0.0
        %v3635 = vand.u32 %v170, 4294901760
        %3636 = vmatpush1.msra.mxu0 %v3635
        %3637 = vmatprep.subr.mxu0 0.0
        %v3638 = vand.u32 %v171, 4294901760
        %3639 = vmatpush1.msra.mxu0 %v3638
        %3640 = vmatprep.subr.mxu0 0.0
        %v3641 = vand.u32 %v172, 4294901760
        %3642 = vmatpush1.msra.mxu0 %v3641
        %3643 = vmatprep.subr.mxu0 0.0
        %3644 = vmatpush1.msra.mxu0 0.0
        %3645 = vmatprep.subr.mxu0 0.0
        %3646 = vmatpush1.msra.mxu0 0.0
        %3647 = vmatprep.subr.mxu0 0.0
        %3648 = vmatpush1.msra.mxu0 0.0
        %3649 = vmatprep.subr.mxu0 0.0
        %3650 = vmatpush1.msra.mxu0 0.0
        %3651 = vmatprep.subr.mxu0 0.0
        %3652 = vmatpush1.msra.mxu0 0.0
        %3653 = vmatprep.subr.mxu0 0.0
        %3654 = vmatpush1.msra.mxu0 0.0
        %3655 = vmatprep.subr.mxu0 0.0
        %3656 = vmatpush1.msra.mxu0 0.0
        %3657 = vmatprep.subr.mxu0 0.0
        %3658 = vmatpush1.msra.mxu0 0.0
        %3659 = vmatprep.subr.mxu0 0.0
        %3660 = vmatpush1.msra.mxu0 0.0
        %3661 = vmatprep.subr.mxu0 0.0
        %3662 = vmatpush1.msra.mxu0 0.0
        %3663 = vmatprep.subr.mxu0 0.0
        %3664 = vmatpush1.msra.mxu0 0.0
        %3665 = vmatprep.subr.mxu0 0.0
        %3666 = vmatpush1.msra.mxu0 0.0
        %3667 = vmatprep.subr.mxu0 0.0
        %3668 = vmatpush1.msra.mxu0 0.0
        %3669 = vmatprep.subr.mxu0 0.0
        %3670 = vmatpush1.msra.mxu0 0.0
        %3671 = vmatprep.subr.mxu0 0.0
        %3672 = vmatpush1.msra.mxu0 0.0
        %3673 = vmatprep.subr.mxu0 0.0
        %3674 = vmatpush1.msra.mxu0 0.0
        %3675 = vmatprep.subr.mxu0 0.0
        %3676 = vmatpush1.msra.mxu0 0.0
        %3677 = vmatprep.subr.mxu0 0.0
        %3678 = vmatpush1.msra.mxu0 0.0
        %3679 = vmatprep.subr.mxu0 0.0
        %3680 = vmatpush1.msra.mxu0 0.0
        %3681 = vmatprep.subr.mxu0 0.0
        %3682 = vmatpush1.msra.mxu0 0.0
        %3683 = vmatprep.subr.mxu0 0.0
        %3684 = vmatpush1.msra.mxu0 0.0
        %3685 = vmatprep.subr.mxu0 0.0
        %3686 = vmatpush1.msra.mxu0 0.0
        %3687 = vmatprep.subr.mxu0 0.0
        %3688 = vmatpush1.msra.mxu0 0.0
        %3689 = vmatprep.subr.mxu0 0.0
        %3690 = vmatpush1.msra.mxu0 0.0
        %3691 = vmatprep.subr.mxu0 0.0
        %3692 = vmatpush1.msra.mxu0 0.0
        %3693 = vmatprep.subr.mxu0 0.0
        %3694 = vmatpush1.msra.mxu0 0.0
        %3695 = vmatprep.subr.mxu0 0.0
        %3696 = vmatpush1.msra.mxu0 0.0
        %3697 = vmatprep.subr.mxu0 0.0
        %3698 = vmatpush1.msra.mxu0 0.0
        %3699 = vmatprep.mubr.f32.mxu0 0.0
        %v3700 = vand.u32 %v3219, 4294901760
        %3701 = vmatmul.mubr.f32.gmra.mrb[0].mxu0 %v3700
        %v3702 = vpop.f32.mrb[0].mxu0
        %v3703 = vadd.f32 %v3628, %v3702
        %v3704 = vpop.f32.mrb[0].mxu0
        %3705 = vdwg.mxu0
        %3706 = vrot.lane.b32.xlu0 %v3190, 120
        %v3707 = vpop.permute.xlu0 %3706
        %v3709 = vadd.f32 %v3190, %v3707
        %v3710 = vmul.f32 %v3709, 0.59375
        %3712 = vrot.lane.b32.xlu0 %v3703, 8
        %v3713 = vpop.permute.xlu0 %3712
        %v3715 = vadd.f32 %v2677, %v3713
        %v3716 = vmul.f32 %v3715, -0.09375
        %3718 = vrot.lane.b32.xlu0 %v3716, 120
        %v3719 = vpop.permute.xlu0 %3718
        %v3721 = vadd.f32 %v3710, %v3719
        %3723 = vrot.lane.b32.xlu0 %v3721, 40
        %v3724 = vpop.permute.xlu0 %3723
        %vm3726 = vcmask 388416
        %3727 = vst.msk [vmem:[#allocation2] sm:$0xf] %vm3726, %v3724
        %v3728 = vld [vmem:[%s168 + $0x4] sm:$0xf]
        %3730 = vrot.lane.b32.xlu0 %v3728, 32
        %v3731 = vpop.permute.xlu0 %3730
        %v3732 = vsel %vm175, %v3731, 0
        %3734 = vmatprep.subr.mxu0 0.0
        %v3735 = vand.u32 %v169, 4294901760
        %3736 = vmatpush1.msra.mxu0 %v3735
        %3737 = vmatprep.subr.mxu0 0.0
        %v3738 = vand.u32 %v170, 4294901760
        %3739 = vmatpush1.msra.mxu0 %v3738
        %3740 = vmatprep.subr.mxu0 0.0
        %v3741 = vand.u32 %v171, 4294901760
        %3742 = vmatpush1.msra.mxu0 %v3741
        %3743 = vmatprep.subr.mxu0 0.0
        %v3744 = vand.u32 %v172, 4294901760
        %3745 = vmatpush1.msra.mxu0 %v3744
        %3746 = vmatprep.subr.mxu0 0.0
        %3747 = vmatpush1.msra.mxu0 0.0
        %3748 = vmatprep.subr.mxu0 0.0
        %3749 = vmatpush1.msra.mxu0 0.0
        %3750 = vmatprep.subr.mxu0 0.0
        %3751 = vmatpush1.msra.mxu0 0.0
        %3752 = vmatprep.subr.mxu0 0.0
        %3753 = vmatpush1.msra.mxu0 0.0
        %3754 = vmatprep.subr.mxu0 0.0
        %3755 = vmatpush1.msra.mxu0 0.0
        %3756 = vmatprep.subr.mxu0 0.0
        %3757 = vmatpush1.msra.mxu0 0.0
        %3758 = vmatprep.subr.mxu0 0.0
        %3759 = vmatpush1.msra.mxu0 0.0
        %3760 = vmatprep.subr.mxu0 0.0
        %3761 = vmatpush1.msra.mxu0 0.0
        %3762 = vmatprep.subr.mxu0 0.0
        %3763 = vmatpush1.msra.mxu0 0.0
        %3764 = vmatprep.subr.mxu0 0.0
        %3765 = vmatpush1.msra.mxu0 0.0
        %3766 = vmatprep.subr.mxu0 0.0
        %3767 = vmatpush1.msra.mxu0 0.0
        %3768 = vmatprep.subr.mxu0 0.0
        %3769 = vmatpush1.msra.mxu0 0.0
        %3770 = vmatprep.subr.mxu0 0.0
        %3771 = vmatpush1.msra.mxu0 0.0
        %3772 = vmatprep.subr.mxu0 0.0
        %3773 = vmatpush1.msra.mxu0 0.0
        %3774 = vmatprep.subr.mxu0 0.0
        %3775 = vmatpush1.msra.mxu0 0.0
        %3776 = vmatprep.subr.mxu0 0.0
        %3777 = vmatpush1.msra.mxu0 0.0
        %3778 = vmatprep.subr.mxu0 0.0
        %3779 = vmatpush1.msra.mxu0 0.0
        %3780 = vmatprep.subr.mxu0 0.0
        %3781 = vmatpush1.msra.mxu0 0.0
        %3782 = vmatprep.subr.mxu0 0.0
        %3783 = vmatpush1.msra.mxu0 0.0
        %3784 = vmatprep.subr.mxu0 0.0
        %3785 = vmatpush1.msra.mxu0 0.0
        %3786 = vmatprep.subr.mxu0 0.0
        %3787 = vmatpush1.msra.mxu0 0.0
        %3788 = vmatprep.subr.mxu0 0.0
        %3789 = vmatpush1.msra.mxu0 0.0
        %3790 = vmatprep.subr.mxu0 0.0
        %3791 = vmatpush1.msra.mxu0 0.0
        %3792 = vmatprep.subr.mxu0 0.0
        %3793 = vmatpush1.msra.mxu0 0.0
        %3794 = vmatprep.subr.mxu0 0.0
        %3795 = vmatpush1.msra.mxu0 0.0
        %3796 = vmatprep.subr.mxu0 0.0
        %3797 = vmatpush1.msra.mxu0 0.0
        %3798 = vmatprep.subr.mxu0 0.0
        %3799 = vmatpush1.msra.mxu0 0.0
        %3800 = vmatprep.subr.mxu0 0.0
        %3801 = vmatpush1.msra.mxu0 0.0
        %3802 = vmatprep.mubr.f32.mxu0 0.0
        %v3803 = vand.u32 %v3732, 4294901760
        %v3804 = vsub.f32 %v3732, %v3803
        %v3805 = vand.u32 %v3804, 4294901760
        %v3806 = vsub.f32 %v3804, %v3805
        %v3807 = vand.u32 %v3806, 4294901760
        %3808 = vmatmul.mubr.f32.gmra.mrb[0].mxu0 %v3807
        %v3809 = vpop.f32.mrb[0].mxu0
        %v3810 = vadd.f32 0.0, %v3809
        %v3811 = vpop.f32.mrb[0].mxu0
        %3812 = vdwg.mxu0
        %3813 = vmatprep.subr.mxu0 0.0
        %v3814 = vand.u32 %v169, 4294901760
        %v3815 = vsub.f32 %v169, %v3814
        %v3816 = vand.u32 %v3815, 4294901760
        %v3817 = vsub.f32 %v3815, %v3816
        %v3818 = vand.u32 %v3817, 4294901760
        %3819 = vmatpush1.msra.mxu0 %v3818
        %3820 = vmatprep.subr.mxu0 0.0
        %v3821 = vand.u32 %v170, 4294901760
        %v3822 = vsub.f32 %v170, %v3821
        %v3823 = vand.u32 %v3822, 4294901760
        %v3824 = vsub.f32 %v3822, %v3823
        %v3825 = vand.u32 %v3824, 4294901760
        %3826 = vmatpush1.msra.mxu0 %v3825
        %3827 = vmatprep.subr.mxu0 0.0
        %v3828 = vand.u32 %v171, 4294901760
        %v3829 = vsub.f32 %v171, %v3828
        %v3830 = vand.u32 %v3829, 4294901760
        %v3831 = vsub.f32 %v3829, %v3830
        %v3832 = vand.u32 %v3831, 4294901760
        %3833 = vmatpush1.msra.mxu0 %v3832
        %3834 = vmatprep.subr.mxu0 0.0
        %v3835 = vand.u32 %v172, 4294901760
        %v3836 = vsub.f32 %v172, %v3835
        %v3837 = vand.u32 %v3836, 4294901760
        %v3838 = vsub.f32 %v3836, %v3837
        %v3839 = vand.u32 %v3838, 4294901760
        %3840 = vmatpush1.msra.mxu0 %v3839
        %3841 = vmatprep.subr.mxu0 0.0
        %3842 = vmatpush1.msra.mxu0 0.0
        %3843 = vmatprep.subr.mxu0 0.0
        %3844 = vmatpush1.msra.mxu0 0.0
        %3845 = vmatprep.subr.mxu0 0.0
        %3846 = vmatpush1.msra.mxu0 0.0
        %3847 = vmatprep.subr.mxu0 0.0
        %3848 = vmatpush1.msra.mxu0 0.0
        %3849 = vmatprep.subr.mxu0 0.0
        %3850 = vmatpush1.msra.mxu0 0.0
        %3851 = vmatprep.subr.mxu0 0.0
        %3852 = vmatpush1.msra.mxu0 0.0
        %3853 = vmatprep.subr.mxu0 0.0
        %3854 = vmatpush1.msra.mxu0 0.0
        %3855 = vmatprep.subr.mxu0 0.0
        %3856 = vmatpush1.msra.mxu0 0.0
        %3857 = vmatprep.subr.mxu0 0.0
        %3858 = vmatpush1.msra.mxu0 0.0
        %3859 = vmatprep.subr.mxu0 0.0
        %3860 = vmatpush1.msra.mxu0 0.0
        %3861 = vmatprep.subr.mxu0 0.0
        %3862 = vmatpush1.msra.mxu0 0.0
        %3863 = vmatprep.subr.mxu0 0.0
        %3864 = vmatpush1.msra.mxu0 0.0
        %3865 = vmatprep.subr.mxu0 0.0
        %3866 = vmatpush1.msra.mxu0 0.0
        %3867 = vmatprep.subr.mxu0 0.0
        %3868 = vmatpush1.msra.mxu0 0.0
        %3869 = vmatprep.subr.mxu0 0.0
        %3870 = vmatpush1.msra.mxu0 0.0
        %3871 = vmatprep.subr.mxu0 0.0
        %3872 = vmatpush1.msra.mxu0 0.0
        %3873 = vmatprep.subr.mxu0 0.0
        %3874 = vmatpush1.msra.mxu0 0.0
        %3875 = vmatprep.subr.mxu0 0.0
        %3876 = vmatpush1.msra.mxu0 0.0
        %3877 = vmatprep.subr.mxu0 0.0
        %3878 = vmatpush1.msra.mxu0 0.0
        %3879 = vmatprep.subr.mxu0 0.0
        %3880 = vmatpush1.msra.mxu0 0.0
        %3881 = vmatprep.subr.mxu0 0.0
        %3882 = vmatpush1.msra.mxu0 0.0
        %3883 = vmatprep.subr.mxu0 0.0
        %3884 = vmatpush1.msra.mxu0 0.0
        %3885 = vmatprep.subr.mxu0 0.0
        %3886 = vmatpush1.msra.mxu0 0.0
        %3887 = vmatprep.subr.mxu0 0.0
        %3888 = vmatpush1.msra.mxu0 0.0
        %3889 = vmatprep.subr.mxu0 0.0
        %3890 = vmatpush1.msra.mxu0 0.0
        %3891 = vmatprep.subr.mxu0 0.0
        %3892 = vmatpush1.msra.mxu0 0.0
        %3893 = vmatprep.subr.mxu0 0.0
        %3894 = vmatpush1.msra.mxu0 0.0
        %3895 = vmatprep.subr.mxu0 0.0
        %3896 = vmatpush1.msra.mxu0 0.0
        %3897 = vmatprep.mubr.f32.mxu0 0.0
        %v3898 = vand.u32 %v3732, 4294901760
        %3899 = vmatmul.mubr.f32.gmra.mrb[0].mxu0 %v3898
        %v3900 = vpop.f32.mrb[0].mxu0
        %v3901 = vadd.f32 %v3810, %v3900
        %v3902 = vpop.f32.mrb[0].mxu0
        %3903 = vdwg.mxu0
        %3904 = vmatprep.subr.mxu0 0.0
        %v3905 = vand.u32 %v169, 4294901760
        %v3906 = vsub.f32 %v169, %v3905
        %3907 = vmatpush1.msra.mxu0 %v3906
        %3908 = vmatprep.subr.mxu0 0.0
        %v3909 = vand.u32 %v170, 4294901760
        %v3910 = vsub.f32 %v170, %v3909
        %3911 = vmatpush1.msra.mxu0 %v3910
        %3912 = vmatprep.subr.mxu0 0.0
        %v3913 = vand.u32 %v171, 4294901760
        %v3914 = vsub.f32 %v171, %v3913
        %3915 = vmatpush1.msra.mxu0 %v3914
        %3916 = vmatprep.subr.mxu0 0.0
        %v3917 = vand.u32 %v172, 4294901760
        %v3918 = vsub.f32 %v172, %v3917
        %3919 = vmatpush1.msra.mxu0 %v3918
        %3920 = vmatprep.subr.mxu0 0.0
        %3921 = vmatpush1.msra.mxu0 0.0
        %3922 = vmatprep.subr.mxu0 0.0
        %3923 = vmatpush1.msra.mxu0 0.0
        %3924 = vmatprep.subr.mxu0 0.0
        %3925 = vmatpush1.msra.mxu0 0.0
        %3926 = vmatprep.subr.mxu0 0.0
        %3927 = vmatpush1.msra.mxu0 0.0
        %3928 = vmatprep.subr.mxu0 0.0
        %3929 = vmatpush1.msra.mxu0 0.0
        %3930 = vmatprep.subr.mxu0 0.0
        %3931 = vmatpush1.msra.mxu0 0.0
        %3932 = vmatprep.subr.mxu0 0.0
        %3933 = vmatpush1.msra.mxu0 0.0
        %3934 = vmatprep.subr.mxu0 0.0
        %3935 = vmatpush1.msra.mxu0 0.0
        %3936 = vmatprep.subr.mxu0 0.0
        %3937 = vmatpush1.msra.mxu0 0.0
        %3938 = vmatprep.subr.mxu0 0.0
        %3939 = vmatpush1.msra.mxu0 0.0
        %3940 = vmatprep.subr.mxu0 0.0
        %3941 = vmatpush1.msra.mxu0 0.0
        %3942 = vmatprep.subr.mxu0 0.0
        %3943 = vmatpush1.msra.mxu0 0.0
        %3944 = vmatprep.subr.mxu0 0.0
        %3945 = vmatpush1.msra.mxu0 0.0
        %3946 = vmatprep.subr.mxu0 0.0
        %3947 = vmatpush1.msra.mxu0 0.0
        %3948 = vmatprep.subr.mxu0 0.0
        %3949 = vmatpush1.msra.mxu0 0.0
        %3950 = vmatprep.subr.mxu0 0.0
        %3951 = vmatpush1.msra.mxu0 0.0
        %3952 = vmatprep.subr.mxu0 0.0
        %3953 = vmatpush1.msra.mxu0 0.0
        %3954 = vmatprep.subr.mxu0 0.0
        %3955 = vmatpush1.msra.mxu0 0.0
        %3956 = vmatprep.subr.mxu0 0.0
        %3957 = vmatpush1.msra.mxu0 0.0
        %3958 = vmatprep.subr.mxu0 0.0
        %3959 = vmatpush1.msra.mxu0 0.0
        %3960 = vmatprep.subr.mxu0 0.0
        %3961 = vmatpush1.msra.mxu0 0.0
        %3962 = vmatprep.subr.mxu0 0.0
        %3963 = vmatpush1.msra.mxu0 0.0
        %3964 = vmatprep.subr.mxu0 0.0
        %3965 = vmatpush1.msra.mxu0 0.0
        %3966 = vmatprep.subr.mxu0 0.0
        %3967 = vmatpush1.msra.mxu0 0.0
        %3968 = vmatprep.subr.mxu0 0.0
        %3969 = vmatpush1.msra.mxu0 0.0
        %3970 = vmatprep.subr.mxu0 0.0
        %3971 = vmatpush1.msra.mxu0 0.0
        %3972 = vmatprep.subr.mxu0 0.0
        %3973 = vmatpush1.msra.mxu0 0.0
        %3974 = vmatprep.subr.mxu0 0.0
        %3975 = vmatpush1.msra.mxu0 0.0
        %3976 = vmatprep.mubr.f32.mxu0 0.0
        %v3977 = vand.u32 %v3732, 4294901760
        %v3978 = vsub.f32 %v3732, %v3977
        %3979 = vmatmul.mubr.f32.gmra.mrb[0].mxu0 %v3978
        %v3980 = vpop.f32.mrb[0].mxu0
        %v3981 = vadd.f32 %v3901, %v3980
        %v3982 = vpop.f32.mrb[0].mxu0
        %3983 = vdwg.mxu0
        %3984 = vmatprep.subr.mxu0 0.0
        %v3985 = vand.u32 %v169, 4294901760
        %3986 = vmatpush1.msra.mxu0 %v3985
        %3987 = vmatprep.subr.mxu0 0.0
        %v3988 = vand.u32 %v170, 4294901760
        %3989 = vmatpush1.msra.mxu0 %v3988
        %3990 = vmatprep.subr.mxu0 0.0
        %v3991 = vand.u32 %v171, 4294901760
        %3992 = vmatpush1.msra.mxu0 %v3991
        %3993 = vmatprep.subr.mxu0 0.0
        %v3994 = vand.u32 %v172, 4294901760
        %3995 = vmatpush1.msra.mxu0 %v3994
        %3996 = vmatprep.subr.mxu0 0.0
        %3997 = vmatpush1.msra.mxu0 0.0
        %3998 = vmatprep.subr.mxu0 0.0
        %3999 = vmatpush1.msra.mxu0 0.0
        %4000 = vmatprep.subr.mxu0 0.0
        %4001 = vmatpush1.msra.mxu0 0.0
        %4002 = vmatprep.subr.mxu0 0.0
        %4003 = vmatpush1.msra.mxu0 0.0
        %4004 = vmatprep.subr.mxu0 0.0
        %4005 = vmatpush1.msra.mxu0 0.0
        %4006 = vmatprep.subr.mxu0 0.0
        %4007 = vmatpush1.msra.mxu0 0.0
        %4008 = vmatprep.subr.mxu0 0.0
        %4009 = vmatpush1.msra.mxu0 0.0
        %4010 = vmatprep.subr.mxu0 0.0
        %4011 = vmatpush1.msra.mxu0 0.0
        %4012 = vmatprep.subr.mxu0 0.0
        %4013 = vmatpush1.msra.mxu0 0.0
        %4014 = vmatprep.subr.mxu0 0.0
        %4015 = vmatpush1.msra.mxu0 0.0
        %4016 = vmatprep.subr.mxu0 0.0
        %4017 = vmatpush1.msra.mxu0 0.0
        %4018 = vmatprep.subr.mxu0 0.0
        %4019 = vmatpush1.msra.mxu0 0.0
        %4020 = vmatprep.subr.mxu0 0.0
        %4021 = vmatpush1.msra.mxu0 0.0
        %4022 = vmatprep.subr.mxu0 0.0
        %4023 = vmatpush1.msra.mxu0 0.0
        %4024 = vmatprep.subr.mxu0 0.0
        %4025 = vmatpush1.msra.mxu0 0.0
        %4026 = vmatprep.subr.mxu0 0.0
        %4027 = vmatpush1.msra.mxu0 0.0
        %4028 = vmatprep.subr.mxu0 0.0
        %4029 = vmatpush1.msra.mxu0 0.0
        %4030 = vmatprep.subr.mxu0 0.0
        %4031 = vmatpush1.msra.mxu0 0.0
        %4032 = vmatprep.subr.mxu0 0.0
        %4033 = vmatpush1.msra.mxu0 0.0
        %4034 = vmatprep.subr.mxu0 0.0
        %4035 = vmatpush1.msra.mxu0 0.0
        %4036 = vmatprep.subr.mxu0 0.0
        %4037 = vmatpush1.msra.mxu0 0.0
        %4038 = vmatprep.subr.mxu0 0.0
        %4039 = vmatpush1.msra.mxu0 0.0
        %4040 = vmatprep.subr.mxu0 0.0
        %4041 = vmatpush1.msra.mxu0 0.0
        %4042 = vmatprep.subr.mxu0 0.0
        %4043 = vmatpush1.msra.mxu0 0.0
        %4044 = vmatprep.subr.mxu0 0.0
        %4045 = vmatpush1.msra.mxu0 0.0
        %4046 = vmatprep.subr.mxu0 0.0
        %4047 = vmatpush1.msra.mxu0 0.0
        %4048 = vmatprep.subr.mxu0 0.0
        %4049 = vmatpush1.msra.mxu0 0.0
        %4050 = vmatprep.subr.mxu0 0.0
        %4051 = vmatpush1.msra.mxu0 0.0
        %4052 = vmatprep.mubr.f32.mxu0 0.0
        %v4053 = vand.u32 %v3732, 4294901760
        %v4054 = vsub.f32 %v3732, %v4053
        %v4055 = vand.u32 %v4054, 4294901760
        %4056 = vmatmul.mubr.f32.gmra.mrb[0].mxu0 %v4055
        %v4057 = vpop.f32.mrb[0].mxu0
        %v4058 = vadd.f32 %v3981, %v4057
        %v4059 = vpop.f32.mrb[0].mxu0
        %4060 = vdwg.mxu0
        %4061 = vmatprep.subr.mxu0 0.0
        %v4062 = vand.u32 %v169, 4294901760
        %v4063 = vsub.f32 %v169, %v4062
        %v4064 = vand.u32 %v4063, 4294901760
        %4065 = vmatpush1.msra.mxu0 %v4064
        %4066 = vmatprep.subr.mxu0 0.0
        %v4067 = vand.u32 %v170, 4294901760
        %v4068 = vsub.f32 %v170, %v4067
        %v4069 = vand.u32 %v4068, 4294901760
        %4070 = vmatpush1.msra.mxu0 %v4069
        %4071 = vmatprep.subr.mxu0 0.0
        %v4072 = vand.u32 %v171, 4294901760
        %v4073 = vsub.f32 %v171, %v4072
        %v4074 = vand.u32 %v4073, 4294901760
        %4075 = vmatpush1.msra.mxu0 %v4074
        %4076 = vmatprep.subr.mxu0 0.0
        %v4077 = vand.u32 %v172, 4294901760
        %v4078 = vsub.f32 %v172, %v4077
        %v4079 = vand.u32 %v4078, 4294901760
        %4080 = vmatpush1.msra.mxu0 %v4079
        %4081 = vmatprep.subr.mxu0 0.0
        %4082 = vmatpush1.msra.mxu0 0.0
        %4083 = vmatprep.subr.mxu0 0.0
        %4084 = vmatpush1.msra.mxu0 0.0
        %4085 = vmatprep.subr.mxu0 0.0
        %4086 = vmatpush1.msra.mxu0 0.0
        %4087 = vmatprep.subr.mxu0 0.0
        %4088 = vmatpush1.msra.mxu0 0.0
        %4089 = vmatprep.subr.mxu0 0.0
        %4090 = vmatpush1.msra.mxu0 0.0
        %4091 = vmatprep.subr.mxu0 0.0
        %4092 = vmatpush1.msra.mxu0 0.0
        %4093 = vmatprep.subr.mxu0 0.0
        %4094 = vmatpush1.msra.mxu0 0.0
        %4095 = vmatprep.subr.mxu0 0.0
        %4096 = vmatpush1.msra.mxu0 0.0
        %4097 = vmatprep.subr.mxu0 0.0
        %4098 = vmatpush1.msra.mxu0 0.0
        %4099 = vmatprep.subr.mxu0 0.0
        %4100 = vmatpush1.msra.mxu0 0.0
        %4101 = vmatprep.subr.mxu0 0.0
        %4102 = vmatpush1.msra.mxu0 0.0
        %4103 = vmatprep.subr.mxu0 0.0
        %4104 = vmatpush1.msra.mxu0 0.0
        %4105 = vmatprep.subr.mxu0 0.0
        %4106 = vmatpush1.msra.mxu0 0.0
        %4107 = vmatprep.subr.mxu0 0.0
        %4108 = vmatpush1.msra.mxu0 0.0
        %4109 = vmatprep.subr.mxu0 0.0
        %4110 = vmatpush1.msra.mxu0 0.0
        %4111 = vmatprep.subr.mxu0 0.0
        %4112 = vmatpush1.msra.mxu0 0.0
        %4113 = vmatprep.subr.mxu0 0.0
        %4114 = vmatpush1.msra.mxu0 0.0
        %4115 = vmatprep.subr.mxu0 0.0
        %4116 = vmatpush1.msra.mxu0 0.0
        %4117 = vmatprep.subr.mxu0 0.0
        %4118 = vmatpush1.msra.mxu0 0.0
        %4119 = vmatprep.subr.mxu0 0.0
        %4120 = vmatpush1.msra.mxu0 0.0
        %4121 = vmatprep.subr.mxu0 0.0
        %4122 = vmatpush1.msra.mxu0 0.0
        %4123 = vmatprep.subr.mxu0 0.0
        %4124 = vmatpush1.msra.mxu0 0.0
        %4125 = vmatprep.subr.mxu0 0.0
        %4126 = vmatpush1.msra.mxu0 0.0
        %4127 = vmatprep.subr.mxu0 0.0
        %4128 = vmatpush1.msra.mxu0 0.0
        %4129 = vmatprep.subr.mxu0 0.0
        %4130 = vmatpush1.msra.mxu0 0.0
        %4131 = vmatprep.subr.mxu0 0.0
        %4132 = vmatpush1.msra.mxu0 0.0
        %4133 = vmatprep.subr.mxu0 0.0
        %4134 = vmatpush1.msra.mxu0 0.0
        %4135 = vmatprep.subr.mxu0 0.0
        %4136 = vmatpush1.msra.mxu0 0.0
        %4137 = vmatprep.mubr.f32.mxu0 0.0
        %v4138 = vand.u32 %v3732, 4294901760
        %4139 = vmatmul.mubr.f32.gmra.mrb[0].mxu0 %v4138
        %v4140 = vpop.f32.mrb[0].mxu0
        %v4141 = vadd.f32 %v4058, %v4140
        %v4142 = vpop.f32.mrb[0].mxu0
        %4143 = vdwg.mxu0
        %4144 = vmatprep.subr.mxu0 0.0
        %v4145 = vand.u32 %v169, 4294901760
        %4146 = vmatpush1.msra.mxu0 %v4145
        %4147 = vmatprep.subr.mxu0 0.0
        %v4148 = vand.u32 %v170, 4294901760
        %4149 = vmatpush1.msra.mxu0 %v4148
        %4150 = vmatprep.subr.mxu0 0.0
        %v4151 = vand.u32 %v171, 4294901760
        %4152 = vmatpush1.msra.mxu0 %v4151
        %4153 = vmatprep.subr.mxu0 0.0
        %v4154 = vand.u32 %v172, 4294901760
        %4155 = vmatpush1.msra.mxu0 %v4154
        %4156 = vmatprep.subr.mxu0 0.0
        %4157 = vmatpush1.msra.mxu0 0.0
        %4158 = vmatprep.subr.mxu0 0.0
        %4159 = vmatpush1.msra.mxu0 0.0
        %4160 = vmatprep.subr.mxu0 0.0
        %4161 = vmatpush1.msra.mxu0 0.0
        %4162 = vmatprep.subr.mxu0 0.0
        %4163 = vmatpush1.msra.mxu0 0.0
        %4164 = vmatprep.subr.mxu0 0.0
        %4165 = vmatpush1.msra.mxu0 0.0
        %4166 = vmatprep.subr.mxu0 0.0
        %4167 = vmatpush1.msra.mxu0 0.0
        %4168 = vmatprep.subr.mxu0 0.0
        %4169 = vmatpush1.msra.mxu0 0.0
        %4170 = vmatprep.subr.mxu0 0.0
        %4171 = vmatpush1.msra.mxu0 0.0
        %4172 = vmatprep.subr.mxu0 0.0
        %4173 = vmatpush1.msra.mxu0 0.0
        %4174 = vmatprep.subr.mxu0 0.0
        %4175 = vmatpush1.msra.mxu0 0.0
        %4176 = vmatprep.subr.mxu0 0.0
        %4177 = vmatpush1.msra.mxu0 0.0
        %4178 = vmatprep.subr.mxu0 0.0
        %4179 = vmatpush1.msra.mxu0 0.0
        %4180 = vmatprep.subr.mxu0 0.0
        %4181 = vmatpush1.msra.mxu0 0.0
        %4182 = vmatprep.subr.mxu0 0.0
        %4183 = vmatpush1.msra.mxu0 0.0
        %4184 = vmatprep.subr.mxu0 0.0
        %4185 = vmatpush1.msra.mxu0 0.0
        %4186 = vmatprep.subr.mxu0 0.0
        %4187 = vmatpush1.msra.mxu0 0.0
        %4188 = vmatprep.subr.mxu0 0.0
        %4189 = vmatpush1.msra.mxu0 0.0
        %4190 = vmatprep.subr.mxu0 0.0
        %4191 = vmatpush1.msra.mxu0 0.0
        %4192 = vmatprep.subr.mxu0 0.0
        %4193 = vmatpush1.msra.mxu0 0.0
        %4194 = vmatprep.subr.mxu0 0.0
        %4195 = vmatpush1.msra.mxu0 0.0
        %4196 = vmatprep.subr.mxu0 0.0
        %4197 = vmatpush1.msra.mxu0 0.0
        %4198 = vmatprep.subr.mxu0 0.0
        %4199 = vmatpush1.msra.mxu0 0.0
        %4200 = vmatprep.subr.mxu0 0.0
        %4201 = vmatpush1.msra.mxu0 0.0
        %4202 = vmatprep.subr.mxu0 0.0
        %4203 = vmatpush1.msra.mxu0 0.0
        %4204 = vmatprep.subr.mxu0 0.0
        %4205 = vmatpush1.msra.mxu0 0.0
        %4206 = vmatprep.subr.mxu0 0.0
        %4207 = vmatpush1.msra.mxu0 0.0
        %4208 = vmatprep.subr.mxu0 0.0
        %4209 = vmatpush1.msra.mxu0 0.0
        %4210 = vmatprep.subr.mxu0 0.0
        %4211 = vmatpush1.msra.mxu0 0.0
        %4212 = vmatprep.mubr.f32.mxu0 0.0
        %v4213 = vand.u32 %v3732, 4294901760
        %4214 = vmatmul.mubr.f32.gmra.mrb[0].mxu0 %v4213
        %v4215 = vpop.f32.mrb[0].mxu0
        %v4216 = vadd.f32 %v4141, %v4215
        %v4217 = vpop.f32.mrb[0].mxu0
        %4218 = vdwg.mxu0
        %4219 = vrot.lane.b32.xlu0 %v3703, 120
        %v4220 = vpop.permute.xlu0 %4219
        %v4222 = vadd.f32 %v3703, %v4220
        %v4223 = vmul.f32 %v4222, 0.59375
        %4225 = vrot.lane.b32.xlu0 %v4216, 8
        %v4226 = vpop.permute.xlu0 %4225
        %v4228 = vadd.f32 %v3190, %v4226
        %v4229 = vmul.f32 %v4228, -0.09375
        %4231 = vrot.lane.b32.xlu0 %v4229, 120
        %v4232 = vpop.permute.xlu0 %4231
        %v4234 = vadd.f32 %v4223, %v4232
        %4236 = vrot.lane.b32.xlu0 %v4234, 48
        %v4237 = vpop.permute.xlu0 %4236
        %vm4239 = vcmask 454016
        %4240 = vst.msk [vmem:[#allocation2] sm:$0xf] %vm4239, %v4237
        %4241 = vrot.lane.b32.xlu0 %v4216, 120
        %v4242 = vpop.permute.xlu0 %4241
        %v4244 = vadd.f32 %v4216, %v4242
        %v4245 = vmul.f32 %v4244, 0.59375
        %v4246 = vadd.f32 %v3703, %v4216
        %v4247 = vmul.f32 %v4246, -0.09375
        %4249 = vrot.lane.b32.xlu0 %v4247, 120
        %v4250 = vpop.permute.xlu0 %4249
        %v4252 = vadd.f32 %v4245, %v4250
        %4254 = vrot.lane.b32.xlu0 %v4252, 56
        %v4255 = vpop.permute.xlu0 %4254
        %vm4257 = vcmask 519616
        %4258 = vst.msk [vmem:[#allocation2] sm:$0xf] %vm4257, %v4255
        %v4259 = vld [vmem:[#allocation2] sm:$0xf]
        %vm4260 = vcmask 31744
        %v4262 = vsel %vm4260, %v173, 0
        %vm4264 = vcmask 1043456
        %v4266 = vsel %vm4264, %v4259, 0
        %4268 = vmatprep.subr.mxu0 0.0
        %v4269 = vand.u32 %v4266, 4294901760
        %4270 = vmatpush1.msra.mxu0 %v4269
        %4271 = vmatprep.subr.mxu0 0.0
        %4272 = vmatpush1.msra.mxu0 0.0
        %4273 = vmatprep.subr.mxu0 0.0
        %4274 = vmatpush1.msra.mxu0 0.0
        %4275 = vmatprep.subr.mxu0 0.0
        %4276 = vmatpush1.msra.mxu0 0.0
        %4277 = vmatprep.subr.mxu0 0.0
        %4278 = vmatpush1.msra.mxu0 0.0
        %4279 = vmatprep.subr.mxu0 0.0
        %4280 = vmatpush1.msra.mxu0 0.0
        %4281 = vmatprep.subr.mxu0 0.0
        %4282 = vmatpush1.msra.mxu0 0.0
        %4283 = vmatprep.subr.mxu0 0.0
        %4284 = vmatpush1.msra.mxu0 0.0
        %4285 = vmatprep.subr.mxu0 0.0
        %4286 = vmatpush1.msra.mxu0 0.0
        %4287 = vmatprep.subr.mxu0 0.0
        %4288 = vmatpush1.msra.mxu0 0.0
        %4289 = vmatprep.subr.mxu0 0.0
        %4290 = vmatpush1.msra.mxu0 0.0
        %4291 = vmatprep.subr.mxu0 0.0
        %4292 = vmatpush1.msra.mxu0 0.0
        %4293 = vmatprep.subr.mxu0 0.0
        %4294 = vmatpush1.msra.mxu0 0.0
        %4295 = vmatprep.subr.mxu0 0.0
        %4296 = vmatpush1.msra.mxu0 0.0
        %4297 = vmatprep.subr.mxu0 0.0
        %4298 = vmatpush1.msra.mxu0 0.0
        %4299 = vmatprep.subr.mxu0 0.0
        %4300 = vmatpush1.msra.mxu0 0.0
        %4301 = vmatprep.subr.mxu0 0.0
        %4302 = vmatpush1.msra.mxu0 0.0
        %4303 = vmatprep.subr.mxu0 0.0
        %4304 = vmatpush1.msra.mxu0 0.0
        %4305 = vmatprep.subr.mxu0 0.0
        %4306 = vmatpush1.msra.mxu0 0.0
        %4307 = vmatprep.subr.mxu0 0.0
        %4308 = vmatpush1.msra.mxu0 0.0
        %4309 = vmatprep.subr.mxu0 0.0
        %4310 = vmatpush1.msra.mxu0 0.0
        %4311 = vmatprep.subr.mxu0 0.0
        %4312 = vmatpush1.msra.mxu0 0.0
        %4313 = vmatprep.subr.mxu0 0.0
        %4314 = vmatpush1.msra.mxu0 0.0
        %4315 = vmatprep.subr.mxu0 0.0
        %4316 = vmatpush1.msra.mxu0 0.0
        %4317 = vmatprep.subr.mxu0 0.0
        %4318 = vmatpush1.msra.mxu0 0.0
        %4319 = vmatprep.subr.mxu0 0.0
        %4320 = vmatpush1.msra.mxu0 0.0
        %4321 = vmatprep.subr.mxu0 0.0
        %4322 = vmatpush1.msra.mxu0 0.0
        %4323 = vmatprep.subr.mxu0 0.0
        %4324 = vmatpush1.msra.mxu0 0.0
        %4325 = vmatprep.subr.mxu0 0.0
        %4326 = vmatpush1.msra.mxu0 0.0
        %4327 = vmatprep.subr.mxu0 0.0
        %4328 = vmatpush1.msra.mxu0 0.0
        %4329 = vmatprep.subr.mxu0 0.0
        %4330 = vmatpush1.msra.mxu0 0.0
        %4331 = vmatprep.subr.mxu0 0.0
        %4332 = vmatpush1.msra.mxu0 0.0
        %4333 = vmatprep.mubr.f32.mxu0 0.0
        %v4334 = vand.u32 %v4262, 4294901760
        %v4335 = vsub.f32 %v4262, %v4334
        %v4336 = vand.u32 %v4335, 4294901760
        %v4337 = vsub.f32 %v4335, %v4336
        %v4338 = vand.u32 %v4337, 4294901760
        %4339 = vmatmul.mubr.f32.gmra.mrb[0].mxu0 %v4338
        %v4340 = vpop.f32.mrb[0].mxu0
        %v4341 = vadd.f32 0.0, %v4340
        %v4342 = vpop.f32.mrb[0].mxu0
        %4343 = vdwg.mxu0
        %4344 = vmatprep.subr.mxu0 0.0
        %v4345 = vand.u32 %v4266, 4294901760
        %v4346 = vsub.f32 %v4266, %v4345
        %v4347 = vand.u32 %v4346, 4294901760
        %v4348 = vsub.f32 %v4346, %v4347
        %v4349 = vand.u32 %v4348, 4294901760
        %4350 = vmatpush1.msra.mxu0 %v4349
        %4351 = vmatprep.subr.mxu0 0.0
        %4352 = vmatpush1.msra.mxu0 0.0
        %4353 = vmatprep.subr.mxu0 0.0
        %4354 = vmatpush1.msra.mxu0 0.0
        %4355 = vmatprep.subr.mxu0 0.0
        %4356 = vmatpush1.msra.mxu0 0.0
        %4357 = vmatprep.subr.mxu0 0.0
        %4358 = vmatpush1.msra.mxu0 0.0
        %4359 = vmatprep.subr.mxu0 0.0
        %4360 = vmatpush1.msra.mxu0 0.0
        %4361 = vmatprep.subr.mxu0 0.0
        %4362 = vmatpush1.msra.mxu0 0.0
        %4363 = vmatprep.subr.mxu0 0.0
        %4364 = vmatpush1.msra.mxu0 0.0
        %4365 = vmatprep.subr.mxu0 0.0
        %4366 = vmatpush1.msra.mxu0 0.0
        %4367 = vmatprep.subr.mxu0 0.0
        %4368 = vmatpush1.msra.mxu0 0.0
        %4369 = vmatprep.subr.mxu0 0.0
        %4370 = vmatpush1.msra.mxu0 0.0
        %4371 = vmatprep.subr.mxu0 0.0
        %4372 = vmatpush1.msra.mxu0 0.0
        %4373 = vmatprep.subr.mxu0 0.0
        %4374 = vmatpush1.msra.mxu0 0.0
        %4375 = vmatprep.subr.mxu0 0.0
        %4376 = vmatpush1.msra.mxu0 0.0
        %4377 = vmatprep.subr.mxu0 0.0
        %4378 = vmatpush1.msra.mxu0 0.0
        %4379 = vmatprep.subr.mxu0 0.0
        %4380 = vmatpush1.msra.mxu0 0.0
        %4381 = vmatprep.subr.mxu0 0.0
        %4382 = vmatpush1.msra.mxu0 0.0
        %4383 = vmatprep.subr.mxu0 0.0
        %4384 = vmatpush1.msra.mxu0 0.0
        %4385 = vmatprep.subr.mxu0 0.0
        %4386 = vmatpush1.msra.mxu0 0.0
        %4387 = vmatprep.subr.mxu0 0.0
        %4388 = vmatpush1.msra.mxu0 0.0
        %4389 = vmatprep.subr.mxu0 0.0
        %4390 = vmatpush1.msra.mxu0 0.0
        %4391 = vmatprep.subr.mxu0 0.0
        %4392 = vmatpush1.msra.mxu0 0.0
        %4393 = vmatprep.subr.mxu0 0.0
        %4394 = vmatpush1.msra.mxu0 0.0
        %4395 = vmatprep.subr.mxu0 0.0
        %4396 = vmatpush1.msra.mxu0 0.0
        %4397 = vmatprep.subr.mxu0 0.0
        %4398 = vmatpush1.msra.mxu0 0.0
        %4399 = vmatprep.subr.mxu0 0.0
        %4400 = vmatpush1.msra.mxu0 0.0
        %4401 = vmatprep.subr.mxu0 0.0
        %4402 = vmatpush1.msra.mxu0 0.0
        %4403 = vmatprep.subr.mxu0 0.0
        %4404 = vmatpush1.msra.mxu0 0.0
        %4405 = vmatprep.subr.mxu0 0.0
        %4406 = vmatpush1.msra.mxu0 0.0
        %4407 = vmatprep.subr.mxu0 0.0
        %4408 = vmatpush1.msra.mxu0 0.0
        %4409 = vmatprep.subr.mxu0 0.0
        %4410 = vmatpush1.msra.mxu0 0.0
        %4411 = vmatprep.subr.mxu0 0.0
        %4412 = vmatpush1.msra.mxu0 0.0
        %4413 = vmatprep.mubr.f32.mxu0 0.0
        %v4414 = vand.u32 %v4262, 4294901760
        %4415 = vmatmul.mubr.f32.gmra.mrb[0].mxu0 %v4414
        %v4416 = vpop.f32.mrb[0].mxu0
        %v4417 = vadd.f32 %v4341, %v4416
        %v4418 = vpop.f32.mrb[0].mxu0
        %4419 = vdwg.mxu0
        %4420 = vmatprep.subr.mxu0 0.0
        %v4421 = vand.u32 %v4266, 4294901760
        %v4422 = vsub.f32 %v4266, %v4421
        %4423 = vmatpush1.msra.mxu0 %v4422
        %4424 = vmatprep.subr.mxu0 0.0
        %4425 = vmatpush1.msra.mxu0 0.0
        %4426 = vmatprep.subr.mxu0 0.0
        %4427 = vmatpush1.msra.mxu0 0.0
        %4428 = vmatprep.subr.mxu0 0.0
        %4429 = vmatpush1.msra.mxu0 0.0
        %4430 = vmatprep.subr.mxu0 0.0
        %4431 = vmatpush1.msra.mxu0 0.0
        %4432 = vmatprep.subr.mxu0 0.0
        %4433 = vmatpush1.msra.mxu0 0.0
        %4434 = vmatprep.subr.mxu0 0.0
        %4435 = vmatpush1.msra.mxu0 0.0
        %4436 = vmatprep.subr.mxu0 0.0
        %4437 = vmatpush1.msra.mxu0 0.0
        %4438 = vmatprep.subr.mxu0 0.0
        %4439 = vmatpush1.msra.mxu0 0.0
        %4440 = vmatprep.subr.mxu0 0.0
        %4441 = vmatpush1.msra.mxu0 0.0
        %4442 = vmatprep.subr.mxu0 0.0
        %4443 = vmatpush1.msra.mxu0 0.0
        %4444 = vmatprep.subr.mxu0 0.0
        %4445 = vmatpush1.msra.mxu0 0.0
        %4446 = vmatprep.subr.mxu0 0.0
        %4447 = vmatpush1.msra.mxu0 0.0
        %4448 = vmatprep.subr.mxu0 0.0
        %4449 = vmatpush1.msra.mxu0 0.0
        %4450 = vmatprep.subr.mxu0 0.0
        %4451 = vmatpush1.msra.mxu0 0.0
        %4452 = vmatprep.subr.mxu0 0.0
        %4453 = vmatpush1.msra.mxu0 0.0
        %4454 = vmatprep.subr.mxu0 0.0
        %4455 = vmatpush1.msra.mxu0 0.0
        %4456 = vmatprep.subr.mxu0 0.0
        %4457 = vmatpush1.msra.mxu0 0.0
        %4458 = vmatprep.subr.mxu0 0.0
        %4459 = vmatpush1.msra.mxu0 0.0
        %4460 = vmatprep.subr.mxu0 0.0
        %4461 = vmatpush1.msra.mxu0 0.0
        %4462 = vmatprep.subr.mxu0 0.0
        %4463 = vmatpush1.msra.mxu0 0.0
        %4464 = vmatprep.subr.mxu0 0.0
        %4465 = vmatpush1.msra.mxu0 0.0
        %4466 = vmatprep.subr.mxu0 0.0
        %4467 = vmatpush1.msra.mxu0 0.0
        %4468 = vmatprep.subr.mxu0 0.0
        %4469 = vmatpush1.msra.mxu0 0.0
        %4470 = vmatprep.subr.mxu0 0.0
        %4471 = vmatpush1.msra.mxu0 0.0
        %4472 = vmatprep.subr.mxu0 0.0
        %4473 = vmatpush1.msra.mxu0 0.0
        %4474 = vmatprep.subr.mxu0 0.0
        %4475 = vmatpush1.msra.mxu0 0.0
        %4476 = vmatprep.subr.mxu0 0.0
        %4477 = vmatpush1.msra.mxu0 0.0
        %4478 = vmatprep.subr.mxu0 0.0
        %4479 = vmatpush1.msra.mxu0 0.0
        %4480 = vmatprep.subr.mxu0 0.0
        %4481 = vmatpush1.msra.mxu0 0.0
        %4482 = vmatprep.subr.mxu0 0.0
        %4483 = vmatpush1.msra.mxu0 0.0
        %4484 = vmatprep.subr.mxu0 0.0
        %4485 = vmatpush1.msra.mxu0 0.0
        %4486 = vmatprep.mubr.f32.mxu0 0.0
        %v4487 = vand.u32 %v4262, 4294901760
        %v4488 = vsub.f32 %v4262, %v4487
        %4489 = vmatmul.mubr.f32.gmra.mrb[0].mxu0 %v4488
        %v4490 = vpop.f32.mrb[0].mxu0
        %v4491 = vadd.f32 %v4417, %v4490
        %v4492 = vpop.f32.mrb[0].mxu0
        %4493 = vdwg.mxu0
        %4494 = vmatprep.subr.mxu0 0.0
        %v4495 = vand.u32 %v4266, 4294901760
        %4496 = vmatpush1.msra.mxu0 %v4495
        %4497 = vmatprep.subr.mxu0 0.0
        %4498 = vmatpush1.msra.mxu0 0.0
        %4499 = vmatprep.subr.mxu0 0.0
        %4500 = vmatpush1.msra.mxu0 0.0
        %4501 = vmatprep.subr.mxu0 0.0
        %4502 = vmatpush1.msra.mxu0 0.0
        %4503 = vmatprep.subr.mxu0 0.0
        %4504 = vmatpush1.msra.mxu0 0.0
        %4505 = vmatprep.subr.mxu0 0.0
        %4506 = vmatpush1.msra.mxu0 0.0
        %4507 = vmatprep.subr.mxu0 0.0
        %4508 = vmatpush1.msra.mxu0 0.0
        %4509 = vmatprep.subr.mxu0 0.0
        %4510 = vmatpush1.msra.mxu0 0.0
        %4511 = vmatprep.subr.mxu0 0.0
        %4512 = vmatpush1.msra.mxu0 0.0
        %4513 = vmatprep.subr.mxu0 0.0
        %4514 = vmatpush1.msra.mxu0 0.0
        %4515 = vmatprep.subr.mxu0 0.0
        %4516 = vmatpush1.msra.mxu0 0.0
        %4517 = vmatprep.subr.mxu0 0.0
        %4518 = vmatpush1.msra.mxu0 0.0
        %4519 = vmatprep.subr.mxu0 0.0
        %4520 = vmatpush1.msra.mxu0 0.0
        %4521 = vmatprep.subr.mxu0 0.0
        %4522 = vmatpush1.msra.mxu0 0.0
        %4523 = vmatprep.subr.mxu0 0.0
        %4524 = vmatpush1.msra.mxu0 0.0
        %4525 = vmatprep.subr.mxu0 0.0
        %4526 = vmatpush1.msra.mxu0 0.0
        %4527 = vmatprep.subr.mxu0 0.0
        %4528 = vmatpush1.msra.mxu0 0.0
        %4529 = vmatprep.subr.mxu0 0.0
        %4530 = vmatpush1.msra.mxu0 0.0
        %4531 = vmatprep.subr.mxu0 0.0
        %4532 = vmatpush1.msra.mxu0 0.0
        %4533 = vmatprep.subr.mxu0 0.0
        %4534 = vmatpush1.msra.mxu0 0.0
        %4535 = vmatprep.subr.mxu0 0.0
        %4536 = vmatpush1.msra.mxu0 0.0
        %4537 = vmatprep.subr.mxu0 0.0
        %4538 = vmatpush1.msra.mxu0 0.0
        %4539 = vmatprep.subr.mxu0 0.0
        %4540 = vmatpush1.msra.mxu0 0.0
        %4541 = vmatprep.subr.mxu0 0.0
        %4542 = vmatpush1.msra.mxu0 0.0
        %4543 = vmatprep.subr.mxu0 0.0
        %4544 = vmatpush1.msra.mxu0 0.0
        %4545 = vmatprep.subr.mxu0 0.0
        %4546 = vmatpush1.msra.mxu0 0.0
        %4547 = vmatprep.subr.mxu0 0.0
        %4548 = vmatpush1.msra.mxu0 0.0
        %4549 = vmatprep.subr.mxu0 0.0
        %4550 = vmatpush1.msra.mxu0 0.0
        %4551 = vmatprep.subr.mxu0 0.0
        %4552 = vmatpush1.msra.mxu0 0.0
        %4553 = vmatprep.subr.mxu0 0.0
        %4554 = vmatpush1.msra.mxu0 0.0
        %4555 = vmatprep.subr.mxu0 0.0
        %4556 = vmatpush1.msra.mxu0 0.0
        %4557 = vmatprep.subr.mxu0 0.0
        %4558 = vmatpush1.msra.mxu0 0.0
        %4559 = vmatprep.mubr.f32.mxu0 0.0
        %v4560 = vand.u32 %v4262, 4294901760
        %v4561 = vsub.f32 %v4262, %v4560
        %v4562 = vand.u32 %v4561, 4294901760
        %4563 = vmatmul.mubr.f32.gmra.mrb[0].mxu0 %v4562
        %v4564 = vpop.f32.mrb[0].mxu0
        %v4565 = vadd.f32 %v4491, %v4564
        %v4566 = vpop.f32.mrb[0].mxu0
        %4567 = vdwg.mxu0
        %4568 = vmatprep.subr.mxu0 0.0
        %v4569 = vand.u32 %v4266, 4294901760
        %v4570 = vsub.f32 %v4266, %v4569
        %v4571 = vand.u32 %v4570, 4294901760
        %4572 = vmatpush1.msra.mxu0 %v4571
        %4573 = vmatprep.subr.mxu0 0.0
        %4574 = vmatpush1.msra.mxu0 0.0
        %4575 = vmatprep.subr.mxu0 0.0
        %4576 = vmatpush1.msra.mxu0 0.0
        %4577 = vmatprep.subr.mxu0 0.0
        %4578 = vmatpush1.msra.mxu0 0.0
        %4579 = vmatprep.subr.mxu0 0.0
        %4580 = vmatpush1.msra.mxu0 0.0
        %4581 = vmatprep.subr.mxu0 0.0
        %4582 = vmatpush1.msra.mxu0 0.0
        %4583 = vmatprep.subr.mxu0 0.0
        %4584 = vmatpush1.msra.mxu0 0.0
        %4585 = vmatprep.subr.mxu0 0.0
        %4586 = vmatpush1.msra.mxu0 0.0
        %4587 = vmatprep.subr.mxu0 0.0
        %4588 = vmatpush1.msra.mxu0 0.0
        %4589 = vmatprep.subr.mxu0 0.0
        %4590 = vmatpush1.msra.mxu0 0.0
        %4591 = vmatprep.subr.mxu0 0.0
        %4592 = vmatpush1.msra.mxu0 0.0
        %4593 = vmatprep.subr.mxu0 0.0
        %4594 = vmatpush1.msra.mxu0 0.0
        %4595 = vmatprep.subr.mxu0 0.0
        %4596 = vmatpush1.msra.mxu0 0.0
        %4597 = vmatprep.subr.mxu0 0.0
        %4598 = vmatpush1.msra.mxu0 0.0
        %4599 = vmatprep.subr.mxu0 0.0
        %4600 = vmatpush1.msra.mxu0 0.0
        %4601 = vmatprep.subr.mxu0 0.0
        %4602 = vmatpush1.msra.mxu0 0.0
        %4603 = vmatprep.subr.mxu0 0.0
        %4604 = vmatpush1.msra.mxu0 0.0
        %4605 = vmatprep.subr.mxu0 0.0
        %4606 = vmatpush1.msra.mxu0 0.0
        %4607 = vmatprep.subr.mxu0 0.0
        %4608 = vmatpush1.msra.mxu0 0.0
        %4609 = vmatprep.subr.mxu0 0.0
        %4610 = vmatpush1.msra.mxu0 0.0
        %4611 = vmatprep.subr.mxu0 0.0
        %4612 = vmatpush1.msra.mxu0 0.0
        %4613 = vmatprep.subr.mxu0 0.0
        %4614 = vmatpush1.msra.mxu0 0.0
        %4615 = vmatprep.subr.mxu0 0.0
        %4616 = vmatpush1.msra.mxu0 0.0
        %4617 = vmatprep.subr.mxu0 0.0
        %4618 = vmatpush1.msra.mxu0 0.0
        %4619 = vmatprep.subr.mxu0 0.0
        %4620 = vmatpush1.msra.mxu0 0.0
        %4621 = vmatprep.subr.mxu0 0.0
        %4622 = vmatpush1.msra.mxu0 0.0
        %4623 = vmatprep.subr.mxu0 0.0
        %4624 = vmatpush1.msra.mxu0 0.0
        %4625 = vmatprep.subr.mxu0 0.0
        %4626 = vmatpush1.msra.mxu0 0.0
        %4627 = vmatprep.subr.mxu0 0.0
        %4628 = vmatpush1.msra.mxu0 0.0
        %4629 = vmatprep.subr.mxu0 0.0
        %4630 = vmatpush1.msra.mxu0 0.0
        %4631 = vmatprep.subr.mxu0 0.0
        %4632 = vmatpush1.msra.mxu0 0.0
        %4633 = vmatprep.subr.mxu0 0.0
        %4634 = vmatpush1.msra.mxu0 0.0
        %4635 = vmatprep.mubr.f32.mxu0 0.0
        %v4636 = vand.u32 %v4262, 4294901760
        %4637 = vmatmul.mubr.f32.gmra.mrb[0].mxu0 %v4636
        %v4638 = vpop.f32.mrb[0].mxu0
        %v4639 = vadd.f32 %v4565, %v4638
        %v4640 = vpop.f32.mrb[0].mxu0
        %4641 = vdwg.mxu0
        %4642 = vmatprep.subr.mxu0 0.0
        %v4643 = vand.u32 %v4266, 4294901760
        %4644 = vmatpush1.msra.mxu0 %v4643
        %4645 = vmatprep.subr.mxu0 0.0
        %4646 = vmatpush1.msra.mxu0 0.0
        %4647 = vmatprep.subr.mxu0 0.0
        %4648 = vmatpush1.msra.mxu0 0.0
        %4649 = vmatprep.subr.mxu0 0.0
        %4650 = vmatpush1.msra.mxu0 0.0
        %4651 = vmatprep.subr.mxu0 0.0
        %4652 = vmatpush1.msra.mxu0 0.0
        %4653 = vmatprep.subr.mxu0 0.0
        %4654 = vmatpush1.msra.mxu0 0.0
        %4655 = vmatprep.subr.mxu0 0.0
        %4656 = vmatpush1.msra.mxu0 0.0
        %4657 = vmatprep.subr.mxu0 0.0
        %4658 = vmatpush1.msra.mxu0 0.0
        %4659 = vmatprep.subr.mxu0 0.0
        %4660 = vmatpush1.msra.mxu0 0.0
        %4661 = vmatprep.subr.mxu0 0.0
        %4662 = vmatpush1.msra.mxu0 0.0
        %4663 = vmatprep.subr.mxu0 0.0
        %4664 = vmatpush1.msra.mxu0 0.0
        %4665 = vmatprep.subr.mxu0 0.0
        %4666 = vmatpush1.msra.mxu0 0.0
        %4667 = vmatprep.subr.mxu0 0.0
        %4668 = vmatpush1.msra.mxu0 0.0
        %4669 = vmatprep.subr.mxu0 0.0
        %4670 = vmatpush1.msra.mxu0 0.0
        %4671 = vmatprep.subr.mxu0 0.0
        %4672 = vmatpush1.msra.mxu0 0.0
        %4673 = vmatprep.subr.mxu0 0.0
        %4674 = vmatpush1.msra.mxu0 0.0
        %4675 = vmatprep.subr.mxu0 0.0
        %4676 = vmatpush1.msra.mxu0 0.0
        %4677 = vmatprep.subr.mxu0 0.0
        %4678 = vmatpush1.msra.mxu0 0.0
        %4679 = vmatprep.subr.mxu0 0.0
        %4680 = vmatpush1.msra.mxu0 0.0
        %4681 = vmatprep.subr.mxu0 0.0
        %4682 = vmatpush1.msra.mxu0 0.0
        %4683 = vmatprep.subr.mxu0 0.0
        %4684 = vmatpush1.msra.mxu0 0.0
        %4685 = vmatprep.subr.mxu0 0.0
        %4686 = vmatpush1.msra.mxu0 0.0
        %4687 = vmatprep.subr.mxu0 0.0
        %4688 = vmatpush1.msra.mxu0 0.0
        %4689 = vmatprep.subr.mxu0 0.0
        %4690 = vmatpush1.msra.mxu0 0.0
        %4691 = vmatprep.subr.mxu0 0.0
        %4692 = vmatpush1.msra.mxu0 0.0
        %4693 = vmatprep.subr.mxu0 0.0
        %4694 = vmatpush1.msra.mxu0 0.0
        %4695 = vmatprep.subr.mxu0 0.0
        %4696 = vmatpush1.msra.mxu0 0.0
        %4697 = vmatprep.subr.mxu0 0.0
        %4698 = vmatpush1.msra.mxu0 0.0
        %4699 = vmatprep.subr.mxu0 0.0
        %4700 = vmatpush1.msra.mxu0 0.0
        %4701 = vmatprep.subr.mxu0 0.0
        %4702 = vmatpush1.msra.mxu0 0.0
        %4703 = vmatprep.subr.mxu0 0.0
        %4704 = vmatpush1.msra.mxu0 0.0
        %4705 = vmatprep.subr.mxu0 0.0
        %4706 = vmatpush1.msra.mxu0 0.0
        %4707 = vmatprep.mubr.f32.mxu0 0.0
        %v4708 = vand.u32 %v4262, 4294901760
        %4709 = vmatmul.mubr.f32.gmra.mrb[0].mxu0 %v4708
        %v4710 = vpop.f32.mrb[0].mxu0
        %v4711 = vadd.f32 %v4639, %v4710
        %v4712 = vpop.f32.mrb[0].mxu0
        %4713 = vdwg.mxu0
        %vm4714 = vcmask 523264
        %4715 = vst.msk [vmem:[%s163] sm:$0xff] %vm4714, %v4711
        %s4716 = sand.u32 %s93, 1
        %s4717 = scalar_lea.sflag [#allocation4], %s4716
        %s4718 = sand.u32 %s93, 1
        %s4719 = smul.addr %s4718, 8
        %s4720 = scalar_lea.vmem [#allocation3], %s4719
        // Predicated region
        $region33: #{tpu_custom_call.1} parent=31 // pred_check
          %p4721 = pneg %p103
        $region34: #{tpu_custom_call.1} parent=31 // pred_check_branch
          %4723 = sbr.rel (%p4721) target = $region36
        $region35: #{tpu_custom_call.1} parent=31 // pred_region
          %s4725 = ssub.s32 128, 128
          %4726 = vsyncadd %s4717, %s4725
          %s4727 = smul.addr %s17, 128
          %s4728 = scalar_lea.hbm %s3, %s4727
          %s4730 = sshll.u32 %s4720, 4
          %s4731 = int_to_ptr.vmem [resolvable:$true] %s4730
          %4733 = dma.vmem_to_hbm [thread:$0]  %s4731, 128, %s4728, %s4717
        $region36: #{tpu_custom_call.1} parent=31 // pred_fallthru
          _
      $region32: #{tpu_custom_call.1} parent=5 // pred_fallthru
        _
      %p4734 = scmp.le.s32.totalorder 2, %s12
      // Predicated region
      $region37: #{tpu_custom_call.1} parent=5 // pred_check
        %p4735 = pneg %p4734
      $region38: #{tpu_custom_call.1} parent=5 // pred_check_branch
        %4737 = sbr.rel (%p4735) target = $region40
      $region39: #{tpu_custom_call.1} parent=5 // pred_region
        %s4738 = ssub.s32 %s12, 2
        // Predicated region
        $region41: #{tpu_custom_call.1} parent=39 // pred_check
          %p4739 = pneg %p109
        $region42: #{tpu_custom_call.1} parent=39 // pred_check_branch
          %4741 = sbr.rel (%p4739) target = $region44
        $region43: #{tpu_custom_call.1} parent=39 // pred_region
          %s4742 = sand.u32 %s94, 1
          %s4743 = scalar_lea.sflag [#allocation4], %s4742
          %s4744 = sand.u32 %s94, 1
          %s4745 = smul.addr %s4744, 8
          %s4746 = scalar_lea.vmem [#allocation3], %s4745
          %4747 = dma.done %s4743, 128
        $region44: #{tpu_custom_call.1} parent=39 // pred_fallthru
          _
      $region40: #{tpu_custom_call.1} parent=5 // pred_fallthru
        _
    $region6: #{tpu_custom_call.1} parent=1 // loop_footer
      %s16 = sadd.s32 1, %s12
    $region7: #{tpu_custom_call.1} parent=1 // loop_footer_branch
      %11 = sbr.rel target = $region3
    $region8: #{tpu_custom_call.1} parent=1 // loop_exit
      _
    %4748 = vsyncpa [#allocation4], 1
    %s4749 = scalar_lea.sflag [#allocation4], 1
    %4750 = vsyncpa %s4749, 1

</llo_original>
